<compile_context>
chip_gen: v7x
topology: tpu7x:2x2x1
jax: 0.10.0
libtpu: 0.0.40
codegen_flags: <defaults>
</compile_context>

<pallas_src>
import functools
import math

import numpy as np
import jax
import jax.numpy as jnp
from jax import lax
from jax.experimental import pallas as pl
from jax.experimental.pallas import tpu as pltpu


# ---------------------------------------------------------------------------
# small helpers
# ---------------------------------------------------------------------------
def _round_up(x, m):
    return (x + m - 1) // m * m


def _pad_rows(x, rows):
    pad = rows - x.shape[0]
    if pad == 0:
        return x
    return jnp.pad(x, ((0, pad), (0, 0)))


# ---------------------------------------------------------------------------
# Embeddings (+ positional encoding):  out = one_hot(ids) @ table * sqrt(d) + pe
# ---------------------------------------------------------------------------
def _embed_kernel(ids_ref, table_ref, pe_ref, out_ref, *, scale):
    vocab = table_ref.shape[0]
    tb = ids_ref.shape[0]
    ids = ids_ref[...]                                              # (TB, 1) int32
    iota = lax.broadcasted_iota(jnp.int32, (tb, vocab), 1)
    one_hot = (ids == iota).astype(jnp.float32)                     # (TB, vocab) - MXU gather
    emb = jnp.dot(one_hot, table_ref[...], preferred_element_type=jnp.float32)
    out_ref[...] = emb * scale + pe_ref[...]


def embed_forward(token_ids, table, pe):
    """token_ids: (B, S) int32; table: (vocab, d); pe: (S, d) -> (B, S, d) f32."""
    B, S = token_ids.shape
    vocab, d = table.shape
    n = B * S
    tb = min(256, _round_up(n, 8))          # tokens per grid step (sublane-dense block)
    n_pad = _round_up(n, tb)

    flat_ids = jnp.clip(token_ids.reshape(n).astype(jnp.int32), 0, vocab - 1)
    ids2d = jnp.pad(flat_ids, (0, n_pad - n)).reshape(n_pad, 1)
    pe_flat = _pad_rows(jnp.tile(pe, (B, 1)), n_pad)                # position restarts per seq

    out = pl.pallas_call(
        functools.partial(_embed_kernel, scale=math.sqrt(d)),
        out_shape=jax.ShapeDtypeStruct((n_pad, d), jnp.float32),
        grid=(n_pad // tb,),
        in_specs=[
            pl.BlockSpec((tb, 1), lambda i: (i, 0)),
            pl.BlockSpec((vocab, d), lambda i: (0, 0)),             # table stays VMEM-resident
            pl.BlockSpec((tb, d), lambda i: (i, 0)),
        ],
        out_specs=pl.BlockSpec((tb, d), lambda i: (i, 0)),
        compiler_params=pltpu.CompilerParams(dimension_semantics=("parallel",)),
    )(ids2d, table, pe_flat)
    return out[:n].reshape(B, S, d)


# ---------------------------------------------------------------------------
# Linear: y = x @ W + b, optional ReLU, optional fused residual add
# ---------------------------------------------------------------------------
def _linear_kernel(*refs, activation, has_residual):
    x_ref, w_ref, b_ref = refs[0], refs[1], refs[2]
    out_ref = refs[-1]
    y = jnp.dot(x_ref[...], w_ref[...], preferred_element_type=jnp.float32) + b_ref[...]
    if activation == "relu":
        y = jnp.maximum(y, 0.0)
    if has_residual:
        y = y + refs[3][...]
    out_ref[...] = y


def linear(x, w, b, *, activation=None, residual=None):
    """x: (M, K); w: (K, N); b: (N,) -> (M, N)."""
    M, K = x.shape
    N = w.shape[1]
    tm = min(128, _round_up(M, 8))
    m_pad = _round_up(M, tm)

    inputs = [_pad_rows(x, m_pad), w, b.reshape(1, N)]
    in_specs = [
        pl.BlockSpec((tm, K), lambda i: (i, 0)),
        pl.BlockSpec((K, N), lambda i: (0, 0)),                     # weights VMEM-resident
        pl.BlockSpec((1, N), lambda i: (0, 0)),
    ]
    if residual is not None:
        inputs.append(_pad_rows(residual, m_pad))
        in_specs.append(pl.BlockSpec((tm, N), lambda i: (i, 0)))

    out = pl.pallas_call(
        functools.partial(_linear_kernel, activation=activation,
                          has_residual=residual is not None),
        out_shape=jax.ShapeDtypeStruct((m_pad, N), jnp.float32),
        grid=(m_pad // tm,),
        in_specs=in_specs,
        out_specs=pl.BlockSpec((tm, N), lambda i: (i, 0)),
        compiler_params=pltpu.CompilerParams(dimension_semantics=("parallel",)),
    )(*inputs)
    return out[:M]


# ---------------------------------------------------------------------------
# LayerNorm over the feature axis
# ---------------------------------------------------------------------------
def _layernorm_kernel(x_ref, g_ref, b_ref, out_ref, *, eps):
    x = x_ref[...]
    mean = jnp.mean(x, axis=-1, keepdims=True)
    var = jnp.mean(jnp.square(x - mean), axis=-1, keepdims=True)
    out_ref[...] = (x - mean) * lax.rsqrt(var + eps) * g_ref[...] + b_ref[...]


def layernorm(x, gamma, beta, *, eps=1e-6):
    M, D = x.shape
    tm = min(128, _round_up(M, 8))
    m_pad = _round_up(M, tm)
    out = pl.pallas_call(
        functools.partial(_layernorm_kernel, eps=eps),
        out_shape=jax.ShapeDtypeStruct((m_pad, D), jnp.float32),
        grid=(m_pad // tm,),
        in_specs=[
            pl.BlockSpec((tm, D), lambda i: (i, 0)),
            pl.BlockSpec((1, D), lambda i: (0, 0)),
            pl.BlockSpec((1, D), lambda i: (0, 0)),
        ],
        out_specs=pl.BlockSpec((tm, D), lambda i: (i, 0)),
        compiler_params=pltpu.CompilerParams(dimension_semantics=("parallel",)),
    )(_pad_rows(x, m_pad), gamma.reshape(1, D), beta.reshape(1, D))
    return out[:M]


# ---------------------------------------------------------------------------
# Fused scaled-dot-product attention per (batch, head).  bias is additive (0 / -1e9).
# ---------------------------------------------------------------------------
def _mha_kernel(q_ref, k_ref, v_ref, bias_ref, out_ref, *, scale):
    q = q_ref[...]                                                  # (Sq, dk)
    k = k_ref[...]                                                  # (Sk, dk)
    v = v_ref[...]                                                  # (Sk, dk)
    s = lax.dot_general(q, k, (((1,), (1,)), ((), ())),
                        preferred_element_type=jnp.float32) * scale + bias_ref[...]
    s_max = jnp.max(s, axis=-1, keepdims=True)
    e = jnp.exp(s - s_max)
    p = e / jnp.sum(e, axis=-1, keepdims=True)
    out_ref[...] = jnp.dot(p, v, preferred_element_type=jnp.float32)


def mha_core(q, k, v, bias):
    """q: (B,H,Sq,dk); k,v: (B,H,Sk,dk); bias: (B,Sq,Sk) -> (B,H,Sq,dk)."""
    B, H, Sq, dk = q.shape
    Sk = k.shape[2]
    return pl.pallas_call(
        functools.partial(_mha_kernel, scale=1.0 / math.sqrt(dk)),
        out_shape=jax.ShapeDtypeStruct((B, H, Sq, dk), jnp.float32),
        grid=(B, H),
        in_specs=[
            pl.BlockSpec((None, None, Sq, dk), lambda b, h: (b, h, 0, 0)),
            pl.BlockSpec((None, None, Sk, dk), lambda b, h: (b, h, 0, 0)),
            pl.BlockSpec((None, None, Sk, dk), lambda b, h: (b, h, 0, 0)),
            pl.BlockSpec((None, Sq, Sk), lambda b, h: (b, 0, 0)),
        ],
        out_specs=pl.BlockSpec((None, None, Sq, dk), lambda b, h: (b, h, 0, 0)),
        compiler_params=pltpu.CompilerParams(
            dimension_semantics=("parallel", "parallel")),
    )(q, k, v, bias)


def _mha_heads(p, q_flat, kv_flat, B, Sq, Sk, bias, n_heads):
    """Q/K/V projections + fused attention; returns merged heads (B*Sq, D) (no out-proj)."""
    D = q_flat.shape[-1]
    dk = D // n_heads
    q = linear(q_flat, p["wq"], p["bq"]).reshape(B, Sq, n_heads, dk).transpose(0, 2, 1, 3)
    k = linear(kv_flat, p["wk"], p["bk"]).reshape(B, Sk, n_heads, dk).transpose(0, 2, 1, 3)
    v = linear(kv_flat, p["wv"], p["bv"]).reshape(B, Sk, n_heads, dk).transpose(0, 2, 1, 3)
    o = mha_core(q, k, v, bias)                                     # (B, H, Sq, dk)
    return o.transpose(0, 2, 1, 3).reshape(B * Sq, D)


# ---------------------------------------------------------------------------
# Encoder / decoder layers (pre-norm sublayers: x + sublayer(norm(x)))
# ---------------------------------------------------------------------------
def _encoder_layer(p, x, B, S, bias, n_heads):
    h = layernorm(x, p["ln1_g"], p["ln1_b"])
    a = _mha_heads(p["attn"], h, h, B, S, S, bias, n_heads)
    x = linear(a, p["attn"]["wo"], p["attn"]["bo"], residual=x)
    h = layernorm(x, p["ln2_g"], p["ln2_b"])
    f = linear(h, p["ff_w1"], p["ff_b1"], activation="relu")
    x = linear(f, p["ff_w2"], p["ff_b2"], residual=x)
    return x


def _decoder_layer(p, y, memory, B, St, Ss, self_bias, cross_bias, n_heads):
    h = layernorm(y, p["ln1_g"], p["ln1_b"])
    a = _mha_heads(p["self_attn"], h, h, B, St, St, self_bias, n_heads)
    y = linear(a, p["self_attn"]["wo"], p["self_attn"]["bo"], residual=y)
    h = layernorm(y, p["ln2_g"], p["ln2_b"])
    a = _mha_heads(p["cross_attn"], h, memory, B, St, Ss, cross_bias, n_heads)
    y = linear(a, p["cross_attn"]["wo"], p["cross_attn"]["bo"], residual=y)
    h = layernorm(y, p["ln3_g"], p["ln3_b"])
    f = linear(h, p["ff_w1"], p["ff_b1"], activation="relu")
    y = linear(f, p["ff_w2"], p["ff_b2"], residual=y)
    return y


def encoder_decoder_forward(params, src, tgt, src_mask, tgt_mask, *, n_heads):
    """src:(B,Ss) int32; tgt:(B,St) int32; src_mask:(B,Ss) bool (key mask);
    tgt_mask:(B,St,St) bool.  Returns decoder output (B, St, d_model)."""
    B, Ss = src.shape
    _, St = tgt.shape
    D = params["src_embed"]["table"].shape[1]
    pe = params["pe"]
    neg = jnp.float32(-1e9)

    key_bias = jnp.where(src_mask, 0.0, neg).astype(jnp.float32)            # (B, Ss)
    enc_bias = jnp.broadcast_to(key_bias[:, None, :], (B, Ss, Ss))
    cross_bias = jnp.broadcast_to(key_bias[:, None, :], (B, St, Ss))
    dec_bias = jnp.where(tgt_mask, 0.0, neg).astype(jnp.float32)            # (B, St, St)

    # encode(src, src_mask)
    x = embed_forward(src, params["src_embed"]["table"], pe[:Ss]).reshape(B * Ss, D)
    for lp in params["encoder"]["layers"]:
        x = _encoder_layer(lp, x, B, Ss, enc_bias, n_heads)
    memory = layernorm(x, params["encoder"]["ln_g"], params["encoder"]["ln_b"])

    # decode(memory, src_mask, tgt, tgt_mask)
    y = embed_forward(tgt, params["tgt_embed"]["table"], pe[:St]).reshape(B * St, D)
    for lp in params["decoder"]["layers"]:
        y = _decoder_layer(lp, y, memory, B, St, Ss, dec_bias, cross_bias, n_heads)
    y = layernorm(y, params["decoder"]["ln_g"], params["decoder"]["ln_b"])
    return y.reshape(B, St, D)


# ---------------------------------------------------------------------------
# Parameters (deterministic, synthetic) + pure-JAX reference
# ---------------------------------------------------------------------------
def sinusoidal_pe(max_len, d_model):
    pos = np.arange(max_len, dtype=np.float32)[:, None]
    div = np.exp(np.arange(0, d_model, 2, dtype=np.float32) * -(math.log(10000.0) / d_model))
    pe = np.zeros((max_len, d_model), np.float32)
    pe[:, 0::2] = np.sin(pos * div)
    pe[:, 1::2] = np.cos(pos * div)
    return jnp.asarray(pe)


def init_params(key, *, vocab_src, vocab_tgt, d_model, d_ff, n_layers, max_len):
    key_iter = iter(jax.random.split(key, 256))
    nk = lambda: next(key_iter)

    def lin_p(d_in, d_out):
        return (jax.random.normal(nk(), (d_in, d_out), jnp.float32) / math.sqrt(d_in),
                jnp.zeros((d_out,), jnp.float32))

    def ln_p():
        return jnp.ones((d_model,), jnp.float32), jnp.zeros((d_model,), jnp.float32)

    def attn_p():
        wq, bq = lin_p(d_model, d_model); wk, bk = lin_p(d_model, d_model)
        wv, bv = lin_p(d_model, d_model); wo, bo = lin_p(d_model, d_model)
        return dict(wq=wq, bq=bq, wk=wk, bk=bk, wv=wv, bv=bv, wo=wo, bo=bo)

    def enc_layer_p():
        g1, b1 = ln_p(); g2, b2 = ln_p()
        w1, bb1 = lin_p(d_model, d_ff); w2, bb2 = lin_p(d_ff, d_model)
        return dict(attn=attn_p(), ln1_g=g1, ln1_b=b1, ln2_g=g2, ln2_b=b2,
                    ff_w1=w1, ff_b1=bb1, ff_w2=w2, ff_b2=bb2)

    def dec_layer_p():
        g1, b1 = ln_p(); g2, b2 = ln_p(); g3, b3 = ln_p()
        w1, bb1 = lin_p(d_model, d_ff); w2, bb2 = lin_p(d_ff, d_model)
        return dict(self_attn=attn_p(), cross_attn=attn_p(),
                    ln1_g=g1, ln1_b=b1, ln2_g=g2, ln2_b=b2, ln3_g=g3, ln3_b=b3,
                    ff_w1=w1, ff_b1=bb1, ff_w2=w2, ff_b2=bb2)

    enc_g, enc_b = ln_p(); dec_g, dec_b = ln_p()
    return dict(
        src_embed=dict(table=jax.random.normal(nk(), (vocab_src, d_model), jnp.float32)),
        tgt_embed=dict(table=jax.random.normal(nk(), (vocab_tgt, d_model), jnp.float32)),
        pe=sinusoidal_pe(max_len, d_model),
        encoder=dict(layers=[enc_layer_p() for _ in range(n_layers)], ln_g=enc_g, ln_b=enc_b),
        decoder=dict(layers=[dec_layer_p() for _ in range(n_layers)], ln_g=dec_g, ln_b=dec_b),
    )


def reference_forward(params, src, tgt, src_mask, tgt_mask, *, n_heads):
    """Plain-JAX reference with identical math (same params, same composition)."""
    table_s = params["src_embed"]["table"]
    table_t = params["tgt_embed"]["table"]
    pe = params["pe"]
    D = table_s.shape[1]
    B, Ss = src.shape
    _, St = tgt.shape
    neg = jnp.float32(-1e9)
    enc_bias = jnp.where(src_mask[:, None, :], 0.0, neg).astype(jnp.float32)   # (B,1,Ss)
    dec_bias = jnp.where(tgt_mask, 0.0, neg).astype(jnp.float32)               # (B,St,St)

    def ln(x, g, b, eps=1e-6):
        mean = jnp.mean(x, -1, keepdims=True)
        var = jnp.mean(jnp.square(x - mean), -1, keepdims=True)
        return (x - mean) * lax.rsqrt(var + eps) * g + b

    def lin(x, w, b):
        return x @ w + b

    def attn(p, xq, xkv, bias):
        Bq, Sq, _ = xq.shape
        Sk = xkv.shape[1]
        dk = D // n_heads
        q = lin(xq, p["wq"], p["bq"]).reshape(Bq, Sq, n_heads, dk).transpose(0, 2, 1, 3)
        k = lin(xkv, p["wk"], p["bk"]).reshape(Bq, Sk, n_heads, dk).transpose(0, 2, 1, 3)
        v = lin(xkv, p["wv"], p["bv"]).reshape(Bq, Sk, n_heads, dk).transpose(0, 2, 1, 3)
        s = jnp.einsum("bhqd,bhkd->bhqk", q, k) / math.sqrt(dk) + bias[:, None]
        a = jax.nn.softmax(s, axis=-1)
        o = jnp.einsum("bhqk,bhkd->bhqd", a, v).transpose(0, 2, 1, 3).reshape(Bq, Sq, D)
        return lin(o, p["wo"], p["bo"])

    def ffn(p, x):
        return lin(jnp.maximum(lin(x, p["ff_w1"], p["ff_b1"]), 0.0), p["ff_w2"], p["ff_b2"])

    x = table_s[src] * math.sqrt(D) + pe[None, :Ss]
    for lp in params["encoder"]["layers"]:
        x = x + attn(lp["attn"], ln(x, lp["ln1_g"], lp["ln1_b"]),
                     ln(x, lp["ln1_g"], lp["ln1_b"]), enc_bias)
        x = x + ffn(lp, ln(x, lp["ln2_g"], lp["ln2_b"]))
    memory = ln(x, params["encoder"]["ln_g"], params["encoder"]["ln_b"])

    y = table_t[tgt] * math.sqrt(D) + pe[None, :St]
    for lp in params["decoder"]["layers"]:
        h = ln(y, lp["ln1_g"], lp["ln1_b"])
        y = y + attn(lp["self_attn"], h, h, dec_bias)
        y = y + attn(lp["cross_attn"], ln(y, lp["ln2_g"], lp["ln2_b"]), memory, enc_bias)
        y = y + ffn(lp, ln(y, lp["ln3_g"], lp["ln3_b"]))
    return ln(y, params["decoder"]["ln_g"], params["decoder"]["ln_b"])


# ---------------------------------------------------------------------------
if __name__ == "__main__":
    D_MODEL, D_FF, N_HEADS, N_LAYERS = 128, 256, 4, 2
    VOCAB_SRC, VOCAB_TGT = 128, 128
    B, S_SRC, S_TGT, MAX_LEN, PAD = 2, 8, 16, 64, 0

    root = jax.random.PRNGKey(0)
    k_par, k_src, k_tgt = jax.random.split(root, 3)
    params = init_params(k_par, vocab_src=VOCAB_SRC, vocab_tgt=VOCAB_TGT,
                         d_model=D_MODEL, d_ff=D_FF, n_layers=N_LAYERS, max_len=MAX_LEN)

    src = jax.random.randint(k_src, (B, S_SRC), 1, VOCAB_SRC, dtype=jnp.int32)
    tgt = jax.random.randint(k_tgt, (B, S_TGT), 1, VOCAB_TGT, dtype=jnp.int32)
    src = src.at[1, -2:].set(PAD)           # some padding in the second batch element
    tgt = tgt.at[1, -3:].set(PAD)

    src_mask = src != PAD                                            # (B, S_src) key mask
    causal = jnp.tril(jnp.ones((S_TGT, S_TGT), dtype=bool))
    tgt_mask = (tgt != PAD)[:, None, :] & causal[None]               # (B, S_tgt, S_tgt)

    fwd = jax.jit(functools.partial(encoder_decoder_forward, n_heads=N_HEADS))
    out = jax.block_until_ready(fwd(params, src, tgt, src_mask, tgt_mask))

    ref = reference_forward(params, src, tgt, src_mask, tgt_mask, n_heads=N_HEADS)
    assert out.shape == (B, S_TGT, D_MODEL)
    assert bool(jnp.allclose(out, ref, atol=3e-2, rtol=3e-2)), \
        f"max abs err {float(jnp.max(jnp.abs(out - ref)))}"

    print("KERNEL_OK")
</pallas_src>

<mosaic_0001>
module attributes {stable_mosaic.version = 11 : i64} {
  func.func @_embed_kernel(%arg0: i32, %arg1: memref<32x1xi32, #tpu.memory_space<vmem>>, %arg2: memref<128x128xf32, #tpu.memory_space<vmem>>, %arg3: memref<32x128xf32, #tpu.memory_space<vmem>>, %arg4: memref<32x128xf32, #tpu.memory_space<vmem>>) attributes {dimension_semantics = [#tpu.dimension_semantics<parallel>], iteration_bounds = array<i64: 1>, scalar_prefetch = 0 : i64, scratch_operands = 0 : i64, tpu.core_type = #tpu.core_type<tc>, window_params = [{transform_indices = @transform_0, window_bounds = array<i64: 32, 1>}, {pipeline_mode = #tpu.pipeline_mode<synchronous>, transform_indices = @transform_1, window_bounds = array<i64: 128, 128>}, {transform_indices = @transform_2, window_bounds = array<i64: 32, 128>}, {transform_indices = @transform_3, window_bounds = array<i64: 32, 128>}]} {
    %c0 = arith.constant 0 : index
    %c0_0 = arith.constant 0 : index
    %0 = vector.load %arg1[%c0, %c0_0] : memref<32x1xi32, #tpu.memory_space<vmem>>, vector<32x1xi32>
    %1 = tpu.iota {dimensions = array<i32: 1>} : vector<32x128xi32>
    %2 = vector.broadcast %0 : vector<32x1xi32> to vector<32x128xi32>
    %3 = arith.cmpi eq, %2, %1 : vector<32x128xi32>
    %4 = arith.extui %3 : vector<32x128xi1> to vector<32x128xi32>
    %5 = arith.sitofp %4 : vector<32x128xi32> to vector<32x128xf32>
    %c0_1 = arith.constant 0 : index
    %c0_2 = arith.constant 0 : index
    %6 = vector.load %arg2[%c0_1, %c0_2] : memref<128x128xf32, #tpu.memory_space<vmem>>, vector<128x128xf32>
    %cst = arith.constant dense<0.000000e+00> : vector<32x128xf32>
    %7 = tpu.matmul %5, %6, %cst {dimension_numbers = #tpu.dot_dimension_numbers<[1], [0], [0], [1], [0, 0, 1, 1], [], []>} : vector<32x128xf32>, vector<128x128xf32>, vector<32x128xf32> -> vector<32x128xf32>
    %cst_3 = arith.constant 11.3137083 : f32
    %8 = vector.broadcast %cst_3 : f32 to vector<32x128xf32>
    %9 = arith.mulf %7, %8 : vector<32x128xf32>
    %c0_4 = arith.constant 0 : index
    %c0_5 = arith.constant 0 : index
    %10 = vector.load %arg3[%c0_4, %c0_5] : memref<32x128xf32, #tpu.memory_space<vmem>>, vector<32x128xf32>
    %11 = arith.addf %9, %10 : vector<32x128xf32>
    %c0_6 = arith.constant 0 : index
    %c0_7 = arith.constant 0 : index
    %12 = vector.load %arg4[%c0_6, %c0_7] : memref<32x128xf32, #tpu.memory_space<vmem>>, vector<32x128xf32>
    tpu.vector_store %arg4[%c0_6, %c0_7], %11 {strides = array<i32>} : memref<32x128xf32, #tpu.memory_space<vmem>>, vector<32x128xf32>,
    return
  }
  func.func @transform_0(%arg0: i32) -> (i32, i32) {
    %c0_i32 = arith.constant 0 : i32
    %c0_i32_0 = arith.constant 0 : i32
    return %arg0, %c0_i32 : i32, i32
  }
  func.func @transform_1(%arg0: i32) -> (i32, i32) {
    %c0_i32 = arith.constant 0 : i32
    %c0_i32_0 = arith.constant 0 : i32
    %c0_i32_1 = arith.constant 0 : i32
    return %c0_i32, %c0_i32_0 : i32, i32
  }
  func.func @transform_2(%arg0: i32) -> (i32, i32) {
    %c0_i32 = arith.constant 0 : i32
    %c0_i32_0 = arith.constant 0 : i32
    return %arg0, %c0_i32 : i32, i32
  }
  func.func @transform_3(%arg0: i32) -> (i32, i32) {
    %c0_i32 = arith.constant 0 : i32
    %c0_i32_0 = arith.constant 0 : i32
    return %arg0, %c0_i32 : i32, i32
  }
}

module attributes {stable_mosaic.version = 11 : i64} {
  func.func @_layernorm_kernel(%arg0: i32, %arg1: memref<32x128xf32, #tpu.memory_space<vmem>>, %arg2: memref<1x128xf32, #tpu.memory_space<vmem>>, %arg3: memref<1x128xf32, #tpu.memory_space<vmem>>, %arg4: memref<32x128xf32, #tpu.memory_space<vmem>>) attributes {dimension_semantics = [#tpu.dimension_semantics<parallel>], iteration_bounds = array<i64: 1>, scalar_prefetch = 0 : i64, scratch_operands = 0 : i64, tpu.core_type = #tpu.core_type<tc>, window_params = [{transform_indices = @transform_0, window_bounds = array<i64: 32, 128>}, {pipeline_mode = #tpu.pipeline_mode<synchronous>, transform_indices = @transform_1, window_bounds = array<i64: 1, 128>}, {pipeline_mode = #tpu.pipeline_mode<synchronous>, transform_indices = @transform_2, window_bounds = array<i64: 1, 128>}, {transform_indices = @transform_3, window_bounds = array<i64: 32, 128>}]} {
    %c0 = arith.constant 0 : index
    %c0_0 = arith.constant 0 : index
    %0 = vector.load %arg1[%c0, %c0_0] : memref<32x128xf32, #tpu.memory_space<vmem>>, vector<32x128xf32>
    %cst = arith.constant dense<0.000000e+00> : vector<32xf32>
    %1 = vector.multi_reduction <add>, %0, %cst [1] : vector<32x128xf32> to vector<32xf32>
    %2 = vector.shape_cast %1 : vector<32xf32> to vector<32x1xf32>
    %cst_1 = arith.constant 1.280000e+02 : f32
    %3 = vector.broadcast %cst_1 : f32 to vector<32x1xf32>
    %4 = arith.divf %2, %3 : vector<32x1xf32>
    %5 = vector.broadcast %4 : vector<32x1xf32> to vector<32x128xf32>
    %6 = arith.subf %0, %5 : vector<32x128xf32>
    %7 = arith.mulf %6, %6 : vector<32x128xf32>
    %cst_2 = arith.constant dense<0.000000e+00> : vector<32xf32>
    %8 = vector.multi_reduction <add>, %7, %cst_2 [1] : vector<32x128xf32> to vector<32xf32>
    %9 = vector.shape_cast %8 : vector<32xf32> to vector<32x1xf32>
    %cst_3 = arith.constant 1.280000e+02 : f32
    %10 = vector.broadcast %cst_3 : f32 to vector<32x1xf32>
    %11 = arith.divf %9, %10 : vector<32x1xf32>
    %12 = vector.broadcast %4 : vector<32x1xf32> to vector<32x128xf32>
    %13 = arith.subf %0, %12 : vector<32x128xf32>
    %cst_4 = arith.constant 9.99999997E-7 : f32
    %14 = vector.broadcast %cst_4 : f32 to vector<32x1xf32>
    %15 = arith.addf %11, %14 : vector<32x1xf32>
    %16 = math.rsqrt %15 : vector<32x1xf32>
    %17 = vector.broadcast %16 : vector<32x1xf32> to vector<32x128xf32>
    %18 = arith.mulf %13, %17 : vector<32x128xf32>
    %c0_5 = arith.constant 0 : index
    %c0_6 = arith.constant 0 : index
    %19 = vector.load %arg2[%c0_5, %c0_6] : memref<1x128xf32, #tpu.memory_space<vmem>>, vector<1x128xf32>
    %20 = vector.broadcast %19 : vector<1x128xf32> to vector<32x128xf32>
    %21 = arith.mulf %18, %20 : vector<32x128xf32>
    %c0_7 = arith.constant 0 : index
    %c0_8 = arith.constant 0 : index
    %22 = vector.load %arg3[%c0_7, %c0_8] : memref<1x128xf32, #tpu.memory_space<vmem>>, vector<1x128xf32>
    %23 = vector.broadcast %22 : vector<1x128xf32> to vector<32x128xf32>
    %24 = arith.addf %21, %23 : vector<32x128xf32>
    %c0_9 = arith.constant 0 : index
    %c0_10 = arith.constant 0 : index
    %25 = vector.load %arg4[%c0_9, %c0_10] : memref<32x128xf32, #tpu.memory_space<vmem>>, vector<32x128xf32>
    tpu.vector_store %arg4[%c0_9, %c0_10], %24 {strides = array<i32>} : memref<32x128xf32, #tpu.memory_space<vmem>>, vector<32x128xf32>,
    return
  }
  func.func @transform_0(%arg0: i32) -> (i32, i32) {
    %c0_i32 = arith.constant 0 : i32
    %c0_i32_0 = arith.constant 0 : i32
    return %arg0, %c0_i32 : i32, i32
  }
  func.func @transform_1(%arg0: i32) -> (i32, i32) {
    %c0_i32 = arith.constant 0 : i32
    %c0_i32_0 = arith.constant 0 : i32
    %c0_i32_1 = arith.constant 0 : i32
    return %c0_i32, %c0_i32_0 : i32, i32
  }
  func.func @transform_2(%arg0: i32) -> (i32, i32) {
    %c0_i32 = arith.constant 0 : i32
    %c0_i32_0 = arith.constant 0 : i32
    %c0_i32_1 = arith.constant 0 : i32
    return %c0_i32, %c0_i32_0 : i32, i32
  }
  func.func @transform_3(%arg0: i32) -> (i32, i32) {
    %c0_i32 = arith.constant 0 : i32
    %c0_i32_0 = arith.constant 0 : i32
    return %arg0, %c0_i32 : i32, i32
  }
}

module attributes {stable_mosaic.version = 11 : i64} {
  func.func @_linear_kernel(%arg0: i32, %arg1: memref<32x128xf32, #tpu.memory_space<vmem>>, %arg2: memref<128x128xf32, #tpu.memory_space<vmem>>, %arg3: memref<1x128xf32, #tpu.memory_space<vmem>>, %arg4: memref<32x128xf32, #tpu.memory_space<vmem>>) attributes {dimension_semantics = [#tpu.dimension_semantics<parallel>], iteration_bounds = array<i64: 1>, scalar_prefetch = 0 : i64, scratch_operands = 0 : i64, tpu.core_type = #tpu.core_type<tc>, window_params = [{transform_indices = @transform_0, window_bounds = array<i64: 32, 128>}, {pipeline_mode = #tpu.pipeline_mode<synchronous>, transform_indices = @transform_1, window_bounds = array<i64: 128, 128>}, {pipeline_mode = #tpu.pipeline_mode<synchronous>, transform_indices = @transform_2, window_bounds = array<i64: 1, 128>}, {transform_indices = @transform_3, window_bounds = array<i64: 32, 128>}]} {
    %c0 = arith.constant 0 : index
    %c0_0 = arith.constant 0 : index
    %0 = vector.load %arg1[%c0, %c0_0] : memref<32x128xf32, #tpu.memory_space<vmem>>, vector<32x128xf32>
    %c0_1 = arith.constant 0 : index
    %c0_2 = arith.constant 0 : index
    %1 = vector.load %arg2[%c0_1, %c0_2] : memref<128x128xf32, #tpu.memory_space<vmem>>, vector<128x128xf32>
    %cst = arith.constant dense<0.000000e+00> : vector<32x128xf32>
    %2 = tpu.matmul %0, %1, %cst {dimension_numbers = #tpu.dot_dimension_numbers<[1], [0], [0], [1], [0, 0, 1, 1], [], []>} : vector<32x128xf32>, vector<128x128xf32>, vector<32x128xf32> -> vector<32x128xf32>
    %c0_3 = arith.constant 0 : index
    %c0_4 = arith.constant 0 : index
    %3 = vector.load %arg3[%c0_3, %c0_4] : memref<1x128xf32, #tpu.memory_space<vmem>>, vector<1x128xf32>
    %4 = vector.broadcast %3 : vector<1x128xf32> to vector<32x128xf32>
    %5 = arith.addf %2, %4 : vector<32x128xf32>
    %c0_5 = arith.constant 0 : index
    %c0_6 = arith.constant 0 : index
    %6 = vector.load %arg4[%c0_5, %c0_6] : memref<32x128xf32, #tpu.memory_space<vmem>>, vector<32x128xf32>
    tpu.vector_store %arg4[%c0_5, %c0_6], %5 {strides = array<i32>} : memref<32x128xf32, #tpu.memory_space<vmem>>, vector<32x128xf32>,
    return
  }
  func.func @transform_0(%arg0: i32) -> (i32, i32) {
    %c0_i32 = arith.constant 0 : i32
    %c0_i32_0 = arith.constant 0 : i32
    return %arg0, %c0_i32 : i32, i32
  }
  func.func @transform_1(%arg0: i32) -> (i32, i32) {
    %c0_i32 = arith.constant 0 : i32
    %c0_i32_0 = arith.constant 0 : i32
    %c0_i32_1 = arith.constant 0 : i32
    return %c0_i32, %c0_i32_0 : i32, i32
  }
  func.func @transform_2(%arg0: i32) -> (i32, i32) {
    %c0_i32 = arith.constant 0 : i32
    %c0_i32_0 = arith.constant 0 : i32
    %c0_i32_1 = arith.constant 0 : i32
    return %c0_i32, %c0_i32_0 : i32, i32
  }
  func.func @transform_3(%arg0: i32) -> (i32, i32) {
    %c0_i32 = arith.constant 0 : i32
    %c0_i32_0 = arith.constant 0 : i32
    return %arg0, %c0_i32 : i32, i32
  }
}

module attributes {stable_mosaic.version = 11 : i64} {
  func.func @_linear_kernel(%arg0: i32, %arg1: memref<32x128xf32, #tpu.memory_space<vmem>>, %arg2: memref<128x128xf32, #tpu.memory_space<vmem>>, %arg3: memref<1x128xf32, #tpu.memory_space<vmem>>, %arg4: memref<32x128xf32, #tpu.memory_space<vmem>>, %arg5: memref<32x128xf32, #tpu.memory_space<vmem>>) attributes {dimension_semantics = [#tpu.dimension_semantics<parallel>], iteration_bounds = array<i64: 1>, scalar_prefetch = 0 : i64, scratch_operands = 0 : i64, tpu.core_type = #tpu.core_type<tc>, window_params = [{transform_indices = @transform_0, window_bounds = array<i64: 32, 128>}, {pipeline_mode = #tpu.pipeline_mode<synchronous>, transform_indices = @transform_1, window_bounds = array<i64: 128, 128>}, {pipeline_mode = #tpu.pipeline_mode<synchronous>, transform_indices = @transform_2, window_bounds = array<i64: 1, 128>}, {transform_indices = @transform_3, window_bounds = array<i64: 32, 128>}, {transform_indices = @transform_4, window_bounds = array<i64: 32, 128>}]} {
    %c0 = arith.constant 0 : index
    %c0_0 = arith.constant 0 : index
    %0 = vector.load %arg1[%c0, %c0_0] : memref<32x128xf32, #tpu.memory_space<vmem>>, vector<32x128xf32>
    %c0_1 = arith.constant 0 : index
    %c0_2 = arith.constant 0 : index
    %1 = vector.load %arg2[%c0_1, %c0_2] : memref<128x128xf32, #tpu.memory_space<vmem>>, vector<128x128xf32>
    %cst = arith.constant dense<0.000000e+00> : vector<32x128xf32>
    %2 = tpu.matmul %0, %1, %cst {dimension_numbers = #tpu.dot_dimension_numbers<[1], [0], [0], [1], [0, 0, 1, 1], [], []>} : vector<32x128xf32>, vector<128x128xf32>, vector<32x128xf32> -> vector<32x128xf32>
    %c0_3 = arith.constant 0 : index
    %c0_4 = arith.constant 0 : index
    %3 = vector.load %arg3[%c0_3, %c0_4] : memref<1x128xf32, #tpu.memory_space<vmem>>, vector<1x128xf32>
    %4 = vector.broadcast %3 : vector<1x128xf32> to vector<32x128xf32>
    %5 = arith.addf %2, %4 : vector<32x128xf32>
    %c0_5 = arith.constant 0 : index
    %c0_6 = arith.constant 0 : index
    %6 = vector.load %arg4[%c0_5, %c0_6] : memref<32x128xf32, #tpu.memory_space<vmem>>, vector<32x128xf32>
    %7 = arith.addf %5, %6 : vector<32x128xf32>
    %c0_7 = arith.constant 0 : index
    %c0_8 = arith.constant 0 : index
    %8 = vector.load %arg5[%c0_7, %c0_8] : memref<32x128xf32, #tpu.memory_space<vmem>>, vector<32x128xf32>
    tpu.vector_store %arg5[%c0_7, %c0_8], %7 {strides = array<i32>} : memref<32x128xf32, #tpu.memory_space<vmem>>, vector<32x128xf32>,
    return
  }
  func.func @transform_0(%arg0: i32) -> (i32, i32) {
    %c0_i32 = arith.constant 0 : i32
    %c0_i32_0 = arith.constant 0 : i32
    return %arg0, %c0_i32 : i32, i32
  }
  func.func @transform_1(%arg0: i32) -> (i32, i32) {
    %c0_i32 = arith.constant 0 : i32
    %c0_i32_0 = arith.constant 0 : i32
    %c0_i32_1 = arith.constant 0 : i32
    return %c0_i32, %c0_i32_0 : i32, i32
  }
  func.func @transform_2(%arg0: i32) -> (i32, i32) {
    %c0_i32 = arith.constant 0 : i32
    %c0_i32_0 = arith.constant 0 : i32
    %c0_i32_1 = arith.constant 0 : i32
    return %c0_i32, %c0_i32_0 : i32, i32
  }
  func.func @transform_3(%arg0: i32) -> (i32, i32) {
    %c0_i32 = arith.constant 0 : i32
    %c0_i32_0 = arith.constant 0 : i32
    return %arg0, %c0_i32 : i32, i32
  }
  func.func @transform_4(%arg0: i32) -> (i32, i32) {
    %c0_i32 = arith.constant 0 : i32
    %c0_i32_0 = arith.constant 0 : i32
    return %arg0, %c0_i32 : i32, i32
  }
}

module attributes {stable_mosaic.version = 11 : i64} {
  func.func @_mha_kernel(%arg0: i32, %arg1: i32, %arg2: memref<1x1x16x32xf32, #tpu.memory_space<vmem>>, %arg3: memref<1x1x16x32xf32, #tpu.memory_space<vmem>>, %arg4: memref<1x1x16x32xf32, #tpu.memory_space<vmem>>, %arg5: memref<1x16x16xf32, #tpu.memory_space<vmem>>, %arg6: memref<1x1x16x32xf32, #tpu.memory_space<vmem>>) attributes {dimension_semantics = [#tpu.dimension_semantics<parallel>, #tpu.dimension_semantics<parallel>], iteration_bounds = array<i64: 2, 4>, scalar_prefetch = 0 : i64, scratch_operands = 0 : i64, tpu.core_type = #tpu.core_type<tc>, window_params = [{transform_indices = @transform_0, window_bounds = array<i64: 1, 1, 16, 32>}, {transform_indices = @transform_1, window_bounds = array<i64: 1, 1, 16, 32>}, {transform_indices = @transform_2, window_bounds = array<i64: 1, 1, 16, 32>}, {transform_indices = @transform_3, window_bounds = array<i64: 1, 16, 16>}, {transform_indices = @transform_4, window_bounds = array<i64: 1, 1, 16, 32>}]} {
    %c0 = arith.constant 0 : index
    %c0_0 = arith.constant 0 : index
    %c0_1 = arith.constant 0 : index
    %c0_2 = arith.constant 0 : index
    %0 = vector.load %arg2[%c0, %c0_0, %c0_1, %c0_2] : memref<1x1x16x32xf32, #tpu.memory_space<vmem>>, vector<1x1x16x32xf32>
    %1 = vector.shape_cast %0 : vector<1x1x16x32xf32> to vector<16x32xf32>
    %c0_3 = arith.constant 0 : index
    %c0_4 = arith.constant 0 : index
    %c0_5 = arith.constant 0 : index
    %c0_6 = arith.constant 0 : index
    %2 = vector.load %arg3[%c0_3, %c0_4, %c0_5, %c0_6] : memref<1x1x16x32xf32, #tpu.memory_space<vmem>>, vector<1x1x16x32xf32>
    %3 = vector.shape_cast %2 : vector<1x1x16x32xf32> to vector<16x32xf32>
    %c0_7 = arith.constant 0 : index
    %c0_8 = arith.constant 0 : index
    %c0_9 = arith.constant 0 : index
    %c0_10 = arith.constant 0 : index
    %4 = vector.load %arg4[%c0_7, %c0_8, %c0_9, %c0_10] : memref<1x1x16x32xf32, #tpu.memory_space<vmem>>, vector<1x1x16x32xf32>
    %5 = vector.shape_cast %4 : vector<1x1x16x32xf32> to vector<16x32xf32>
    %cst = arith.constant dense<0.000000e+00> : vector<16x16xf32>
    %6 = tpu.matmul %1, %3, %cst {dimension_numbers = #tpu.dot_dimension_numbers<[1], [1], [0], [0], [0, 0, 1, 0], [], []>} : vector<16x32xf32>, vector<16x32xf32>, vector<16x16xf32> -> vector<16x16xf32>
    %cst_11 = arith.constant 0.176776692 : f32
    %7 = vector.broadcast %cst_11 : f32 to vector<16x16xf32>
    %8 = arith.mulf %6, %7 : vector<16x16xf32>
    %c0_12 = arith.constant 0 : index
    %c0_13 = arith.constant 0 : index
    %c0_14 = arith.constant 0 : index
    %9 = vector.load %arg5[%c0_12, %c0_13, %c0_14] : memref<1x16x16xf32, #tpu.memory_space<vmem>>, vector<1x16x16xf32>
    %10 = vector.shape_cast %9 : vector<1x16x16xf32> to vector<16x16xf32>
    %11 = arith.addf %8, %10 : vector<16x16xf32>
    %cst_15 = arith.constant dense<0xFF800000> : vector<16xf32>
    %12 = vector.multi_reduction <maximumf>, %11, %cst_15 [1] : vector<16x16xf32> to vector<16xf32>
    %13 = vector.shape_cast %12 : vector<16xf32> to vector<16x1xf32>
    %14 = vector.broadcast %13 : vector<16x1xf32> to vector<16x16xf32>
    %15 = arith.subf %11, %14 : vector<16x16xf32>
    %16 = math.exp %15 : vector<16x16xf32>
    %cst_16 = arith.constant dense<0.000000e+00> : vector<16xf32>
    %17 = vector.multi_reduction <add>, %16, %cst_16 [1] : vector<16x16xf32> to vector<16xf32>
    %18 = vector.shape_cast %17 : vector<16xf32> to vector<16x1xf32>
    %19 = vector.broadcast %18 : vector<16x1xf32> to vector<16x16xf32>
    %20 = arith.divf %16, %19 : vector<16x16xf32>
    %cst_17 = arith.constant dense<0.000000e+00> : vector<16x32xf32>
    %21 = tpu.matmul %20, %5, %cst_17 {dimension_numbers = #tpu.dot_dimension_numbers<[1], [0], [0], [1], [0, 0, 1, 1], [], []>} : vector<16x16xf32>, vector<16x32xf32>, vector<16x32xf32> -> vector<16x32xf32>
    %c0_18 = arith.constant 0 : index
    %c0_19 = arith.constant 0 : index
    %c0_20 = arith.constant 0 : index
    %c0_21 = arith.constant 0 : index
    %22 = vector.load %arg6[%c0_18, %c0_19, %c0_20, %c0_21] : memref<1x1x16x32xf32, #tpu.memory_space<vmem>>, vector<1x1x16x32xf32>
    %23 = vector.shape_cast %22 : vector<1x1x16x32xf32> to vector<16x32xf32>
    %24 = vector.shape_cast %21 : vector<16x32xf32> to vector<1x1x16x32xf32>
    tpu.vector_store %arg6[%c0_18, %c0_19, %c0_20, %c0_21], %24 {strides = array<i32>} : memref<1x1x16x32xf32, #tpu.memory_space<vmem>>, vector<1x1x16x32xf32>,
    return
  }
  func.func @transform_0(%arg0: i32, %arg1: i32) -> (i32, i32, i32, i32) {
    %c0_i32 = arith.constant 0 : i32
    %c0_i32_0 = arith.constant 0 : i32
    %c0_i32_1 = arith.constant 0 : i32
    return %arg0, %arg1, %c0_i32, %c0_i32_0 : i32, i32, i32, i32
  }
  func.func @transform_1(%arg0: i32, %arg1: i32) -> (i32, i32, i32, i32) {
    %c0_i32 = arith.constant 0 : i32
    %c0_i32_0 = arith.constant 0 : i32
    %c0_i32_1 = arith.constant 0 : i32
    return %arg0, %arg1, %c0_i32, %c0_i32_0 : i32, i32, i32, i32
  }
  func.func @transform_2(%arg0: i32, %arg1: i32) -> (i32, i32, i32, i32) {
    %c0_i32 = arith.constant 0 : i32
    %c0_i32_0 = arith.constant 0 : i32
    %c0_i32_1 = arith.constant 0 : i32
    return %arg0, %arg1, %c0_i32, %c0_i32_0 : i32, i32, i32, i32
  }
  func.func @transform_3(%arg0: i32, %arg1: i32) -> (i32, i32, i32) {
    %c0_i32 = arith.constant 0 : i32
    %c0_i32_0 = arith.constant 0 : i32
    %c0_i32_1 = arith.constant 0 : i32
    return %arg0, %c0_i32, %c0_i32_0 : i32, i32, i32
  }
  func.func @transform_4(%arg0: i32, %arg1: i32) -> (i32, i32, i32, i32) {
    %c0_i32 = arith.constant 0 : i32
    %c0_i32_0 = arith.constant 0 : i32
    %c0_i32_1 = arith.constant 0 : i32
    return %arg0, %arg1, %c0_i32, %c0_i32_0 : i32, i32, i32, i32
  }
}

module attributes {stable_mosaic.version = 11 : i64} {
  func.func @_layernorm_kernel(%arg0: i32, %arg1: memref<16x128xf32, #tpu.memory_space<vmem>>, %arg2: memref<1x128xf32, #tpu.memory_space<vmem>>, %arg3: memref<1x128xf32, #tpu.memory_space<vmem>>, %arg4: memref<16x128xf32, #tpu.memory_space<vmem>>) attributes {dimension_semantics = [#tpu.dimension_semantics<parallel>], iteration_bounds = array<i64: 1>, scalar_prefetch = 0 : i64, scratch_operands = 0 : i64, tpu.core_type = #tpu.core_type<tc>, window_params = [{transform_indices = @transform_0, window_bounds = array<i64: 16, 128>}, {pipeline_mode = #tpu.pipeline_mode<synchronous>, transform_indices = @transform_1, window_bounds = array<i64: 1, 128>}, {pipeline_mode = #tpu.pipeline_mode<synchronous>, transform_indices = @transform_2, window_bounds = array<i64: 1, 128>}, {transform_indices = @transform_3, window_bounds = array<i64: 16, 128>}]} {
    %c0 = arith.constant 0 : index
    %c0_0 = arith.constant 0 : index
    %0 = vector.load %arg1[%c0, %c0_0] : memref<16x128xf32, #tpu.memory_space<vmem>>, vector<16x128xf32>
    %cst = arith.constant dense<0.000000e+00> : vector<16xf32>
    %1 = vector.multi_reduction <add>, %0, %cst [1] : vector<16x128xf32> to vector<16xf32>
    %2 = vector.shape_cast %1 : vector<16xf32> to vector<16x1xf32>
    %cst_1 = arith.constant 1.280000e+02 : f32
    %3 = vector.broadcast %cst_1 : f32 to vector<16x1xf32>
    %4 = arith.divf %2, %3 : vector<16x1xf32>
    %5 = vector.broadcast %4 : vector<16x1xf32> to vector<16x128xf32>
    %6 = arith.subf %0, %5 : vector<16x128xf32>
    %7 = arith.mulf %6, %6 : vector<16x128xf32>
    %cst_2 = arith.constant dense<0.000000e+00> : vector<16xf32>
    %8 = vector.multi_reduction <add>, %7, %cst_2 [1] : vector<16x128xf32> to vector<16xf32>
    %9 = vector.shape_cast %8 : vector<16xf32> to vector<16x1xf32>
    %cst_3 = arith.constant 1.280000e+02 : f32
    %10 = vector.broadcast %cst_3 : f32 to vector<16x1xf32>
    %11 = arith.divf %9, %10 : vector<16x1xf32>
    %12 = vector.broadcast %4 : vector<16x1xf32> to vector<16x128xf32>
    %13 = arith.subf %0, %12 : vector<16x128xf32>
    %cst_4 = arith.constant 9.99999997E-7 : f32
    %14 = vector.broadcast %cst_4 : f32 to vector<16x1xf32>
    %15 = arith.addf %11, %14 : vector<16x1xf32>
    %16 = math.rsqrt %15 : vector<16x1xf32>
    %17 = vector.broadcast %16 : vector<16x1xf32> to vector<16x128xf32>
    %18 = arith.mulf %13, %17 : vector<16x128xf32>
    %c0_5 = arith.constant 0 : index
    %c0_6 = arith.constant 0 : index
    %19 = vector.load %arg2[%c0_5, %c0_6] : memref<1x128xf32, #tpu.memory_space<vmem>>, vector<1x128xf32>
    %20 = vector.broadcast %19 : vector<1x128xf32> to vector<16x128xf32>
    %21 = arith.mulf %18, %20 : vector<16x128xf32>
    %c0_7 = arith.constant 0 : index
    %c0_8 = arith.constant 0 : index
    %22 = vector.load %arg3[%c0_7, %c0_8] : memref<1x128xf32, #tpu.memory_space<vmem>>, vector<1x128xf32>
    %23 = vector.broadcast %22 : vector<1x128xf32> to vector<16x128xf32>
    %24 = arith.addf %21, %23 : vector<16x128xf32>
    %c0_9 = arith.constant 0 : index
    %c0_10 = arith.constant 0 : index
    %25 = vector.load %arg4[%c0_9, %c0_10] : memref<16x128xf32, #tpu.memory_space<vmem>>, vector<16x128xf32>
    tpu.vector_store %arg4[%c0_9, %c0_10], %24 {strides = array<i32>} : memref<16x128xf32, #tpu.memory_space<vmem>>, vector<16x128xf32>,
    return
  }
  func.func @transform_0(%arg0: i32) -> (i32, i32) {
    %c0_i32 = arith.constant 0 : i32
    %c0_i32_0 = arith.constant 0 : i32
    return %arg0, %c0_i32 : i32, i32
  }
  func.func @transform_1(%arg0: i32) -> (i32, i32) {
    %c0_i32 = arith.constant 0 : i32
    %c0_i32_0 = arith.constant 0 : i32
    %c0_i32_1 = arith.constant 0 : i32
    return %c0_i32, %c0_i32_0 : i32, i32
  }
  func.func @transform_2(%arg0: i32) -> (i32, i32) {
    %c0_i32 = arith.constant 0 : i32
    %c0_i32_0 = arith.constant 0 : i32
    %c0_i32_1 = arith.constant 0 : i32
    return %c0_i32, %c0_i32_0 : i32, i32
  }
  func.func @transform_3(%arg0: i32) -> (i32, i32) {
    %c0_i32 = arith.constant 0 : i32
    %c0_i32_0 = arith.constant 0 : i32
    return %arg0, %c0_i32 : i32, i32
  }
}

module attributes {stable_mosaic.version = 11 : i64} {
  func.func @_embed_kernel(%arg0: i32, %arg1: memref<16x1xi32, #tpu.memory_space<vmem>>, %arg2: memref<128x128xf32, #tpu.memory_space<vmem>>, %arg3: memref<16x128xf32, #tpu.memory_space<vmem>>, %arg4: memref<16x128xf32, #tpu.memory_space<vmem>>) attributes {dimension_semantics = [#tpu.dimension_semantics<parallel>], iteration_bounds = array<i64: 1>, scalar_prefetch = 0 : i64, scratch_operands = 0 : i64, tpu.core_type = #tpu.core_type<tc>, window_params = [{transform_indices = @transform_0, window_bounds = array<i64: 16, 1>}, {pipeline_mode = #tpu.pipeline_mode<synchronous>, transform_indices = @transform_1, window_bounds = array<i64: 128, 128>}, {transform_indices = @transform_2, window_bounds = array<i64: 16, 128>}, {transform_indices = @transform_3, window_bounds = array<i64: 16, 128>}]} {
    %c0 = arith.constant 0 : index
    %c0_0 = arith.constant 0 : index
    %0 = vector.load %arg1[%c0, %c0_0] : memref<16x1xi32, #tpu.memory_space<vmem>>, vector<16x1xi32>
    %1 = tpu.iota {dimensions = array<i32: 1>} : vector<16x128xi32>
    %2 = vector.broadcast %0 : vector<16x1xi32> to vector<16x128xi32>
    %3 = arith.cmpi eq, %2, %1 : vector<16x128xi32>
    %4 = arith.extui %3 : vector<16x128xi1> to vector<16x128xi32>
    %5 = arith.sitofp %4 : vector<16x128xi32> to vector<16x128xf32>
    %c0_1 = arith.constant 0 : index
    %c0_2 = arith.constant 0 : index
    %6 = vector.load %arg2[%c0_1, %c0_2] : memref<128x128xf32, #tpu.memory_space<vmem>>, vector<128x128xf32>
    %cst = arith.constant dense<0.000000e+00> : vector<16x128xf32>
    %7 = tpu.matmul %5, %6, %cst {dimension_numbers = #tpu.dot_dimension_numbers<[1], [0], [0], [1], [0, 0, 1, 1], [], []>} : vector<16x128xf32>, vector<128x128xf32>, vector<16x128xf32> -> vector<16x128xf32>
    %cst_3 = arith.constant 11.3137083 : f32
    %8 = vector.broadcast %cst_3 : f32 to vector<16x128xf32>
    %9 = arith.mulf %7, %8 : vector<16x128xf32>
    %c0_4 = arith.constant 0 : index
    %c0_5 = arith.constant 0 : index
    %10 = vector.load %arg3[%c0_4, %c0_5] : memref<16x128xf32, #tpu.memory_space<vmem>>, vector<16x128xf32>
    %11 = arith.addf %9, %10 : vector<16x128xf32>
    %c0_6 = arith.constant 0 : index
    %c0_7 = arith.constant 0 : index
    %12 = vector.load %arg4[%c0_6, %c0_7] : memref<16x128xf32, #tpu.memory_space<vmem>>, vector<16x128xf32>
    tpu.vector_store %arg4[%c0_6, %c0_7], %11 {strides = array<i32>} : memref<16x128xf32, #tpu.memory_space<vmem>>, vector<16x128xf32>,
    return
  }
  func.func @transform_0(%arg0: i32) -> (i32, i32) {
    %c0_i32 = arith.constant 0 : i32
    %c0_i32_0 = arith.constant 0 : i32
    return %arg0, %c0_i32 : i32, i32
  }
  func.func @transform_1(%arg0: i32) -> (i32, i32) {
    %c0_i32 = arith.constant 0 : i32
    %c0_i32_0 = arith.constant 0 : i32
    %c0_i32_1 = arith.constant 0 : i32
    return %c0_i32, %c0_i32_0 : i32, i32
  }
  func.func @transform_2(%arg0: i32) -> (i32, i32) {
    %c0_i32 = arith.constant 0 : i32
    %c0_i32_0 = arith.constant 0 : i32
    return %arg0, %c0_i32 : i32, i32
  }
  func.func @transform_3(%arg0: i32) -> (i32, i32) {
    %c0_i32 = arith.constant 0 : i32
    %c0_i32_0 = arith.constant 0 : i32
    return %arg0, %c0_i32 : i32, i32
  }
}

module attributes {stable_mosaic.version = 11 : i64} {
  func.func @_linear_kernel(%arg0: i32, %arg1: memref<16x128xf32, #tpu.memory_space<vmem>>, %arg2: memref<128x128xf32, #tpu.memory_space<vmem>>, %arg3: memref<1x128xf32, #tpu.memory_space<vmem>>, %arg4: memref<16x128xf32, #tpu.memory_space<vmem>>) attributes {dimension_semantics = [#tpu.dimension_semantics<parallel>], iteration_bounds = array<i64: 1>, scalar_prefetch = 0 : i64, scratch_operands = 0 : i64, tpu.core_type = #tpu.core_type<tc>, window_params = [{transform_indices = @transform_0, window_bounds = array<i64: 16, 128>}, {pipeline_mode = #tpu.pipeline_mode<synchronous>, transform_indices = @transform_1, window_bounds = array<i64: 128, 128>}, {pipeline_mode = #tpu.pipeline_mode<synchronous>, transform_indices = @transform_2, window_bounds = array<i64: 1, 128>}, {transform_indices = @transform_3, window_bounds = array<i64: 16, 128>}]} {
    %c0 = arith.constant 0 : index
    %c0_0 = arith.constant 0 : index
    %0 = vector.load %arg1[%c0, %c0_0] : memref<16x128xf32, #tpu.memory_space<vmem>>, vector<16x128xf32>
    %c0_1 = arith.constant 0 : index
    %c0_2 = arith.constant 0 : index
    %1 = vector.load %arg2[%c0_1, %c0_2] : memref<128x128xf32, #tpu.memory_space<vmem>>, vector<128x128xf32>
    %cst = arith.constant dense<0.000000e+00> : vector<16x128xf32>
    %2 = tpu.matmul %0, %1, %cst {dimension_numbers = #tpu.dot_dimension_numbers<[1], [0], [0], [1], [0, 0, 1, 1], [], []>} : vector<16x128xf32>, vector<128x128xf32>, vector<16x128xf32> -> vector<16x128xf32>
    %c0_3 = arith.constant 0 : index
    %c0_4 = arith.constant 0 : index
    %3 = vector.load %arg3[%c0_3, %c0_4] : memref<1x128xf32, #tpu.memory_space<vmem>>, vector<1x128xf32>
    %4 = vector.broadcast %3 : vector<1x128xf32> to vector<16x128xf32>
    %5 = arith.addf %2, %4 : vector<16x128xf32>
    %c0_5 = arith.constant 0 : index
    %c0_6 = arith.constant 0 : index
    %6 = vector.load %arg4[%c0_5, %c0_6] : memref<16x128xf32, #tpu.memory_space<vmem>>, vector<16x128xf32>
    tpu.vector_store %arg4[%c0_5, %c0_6], %5 {strides = array<i32>} : memref<16x128xf32, #tpu.memory_space<vmem>>, vector<16x128xf32>,
    return
  }
  func.func @transform_0(%arg0: i32) -> (i32, i32) {
    %c0_i32 = arith.constant 0 : i32
    %c0_i32_0 = arith.constant 0 : i32
    return %arg0, %c0_i32 : i32, i32
  }
  func.func @transform_1(%arg0: i32) -> (i32, i32) {
    %c0_i32 = arith.constant 0 : i32
    %c0_i32_0 = arith.constant 0 : i32
    %c0_i32_1 = arith.constant 0 : i32
    return %c0_i32, %c0_i32_0 : i32, i32
  }
  func.func @transform_2(%arg0: i32) -> (i32, i32) {
    %c0_i32 = arith.constant 0 : i32
    %c0_i32_0 = arith.constant 0 : i32
    %c0_i32_1 = arith.constant 0 : i32
    return %c0_i32, %c0_i32_0 : i32, i32
  }
  func.func @transform_3(%arg0: i32) -> (i32, i32) {
    %c0_i32 = arith.constant 0 : i32
    %c0_i32_0 = arith.constant 0 : i32
    return %arg0, %c0_i32 : i32, i32
  }
}

module attributes {stable_mosaic.version = 11 : i64} {
  func.func @_mha_kernel(%arg0: i32, %arg1: i32, %arg2: memref<1x1x8x32xf32, #tpu.memory_space<vmem>>, %arg3: memref<1x1x8x32xf32, #tpu.memory_space<vmem>>, %arg4: memref<1x1x8x32xf32, #tpu.memory_space<vmem>>, %arg5: memref<1x8x8xf32, #tpu.memory_space<vmem>>, %arg6: memref<1x1x8x32xf32, #tpu.memory_space<vmem>>) attributes {dimension_semantics = [#tpu.dimension_semantics<parallel>, #tpu.dimension_semantics<parallel>], iteration_bounds = array<i64: 2, 4>, scalar_prefetch = 0 : i64, scratch_operands = 0 : i64, tpu.core_type = #tpu.core_type<tc>, window_params = [{transform_indices = @transform_0, window_bounds = array<i64: 1, 1, 8, 32>}, {transform_indices = @transform_1, window_bounds = array<i64: 1, 1, 8, 32>}, {transform_indices = @transform_2, window_bounds = array<i64: 1, 1, 8, 32>}, {transform_indices = @transform_3, window_bounds = array<i64: 1, 8, 8>}, {transform_indices = @transform_4, window_bounds = array<i64: 1, 1, 8, 32>}]} {
    %c0 = arith.constant 0 : index
    %c0_0 = arith.constant 0 : index
    %c0_1 = arith.constant 0 : index
    %c0_2 = arith.constant 0 : index
    %0 = vector.load %arg2[%c0, %c0_0, %c0_1, %c0_2] : memref<1x1x8x32xf32, #tpu.memory_space<vmem>>, vector<1x1x8x32xf32>
    %1 = vector.shape_cast %0 : vector<1x1x8x32xf32> to vector<8x32xf32>
    %c0_3 = arith.constant 0 : index
    %c0_4 = arith.constant 0 : index
    %c0_5 = arith.constant 0 : index
    %c0_6 = arith.constant 0 : index
    %2 = vector.load %arg3[%c0_3, %c0_4, %c0_5, %c0_6] : memref<1x1x8x32xf32, #tpu.memory_space<vmem>>, vector<1x1x8x32xf32>
    %3 = vector.shape_cast %2 : vector<1x1x8x32xf32> to vector<8x32xf32>
    %c0_7 = arith.constant 0 : index
    %c0_8 = arith.constant 0 : index
    %c0_9 = arith.constant 0 : index
    %c0_10 = arith.constant 0 : index
    %4 = vector.load %arg4[%c0_7, %c0_8, %c0_9, %c0_10] : memref<1x1x8x32xf32, #tpu.memory_space<vmem>>, vector<1x1x8x32xf32>
    %5 = vector.shape_cast %4 : vector<1x1x8x32xf32> to vector<8x32xf32>
    %cst = arith.constant dense<0.000000e+00> : vector<8x8xf32>
    %6 = tpu.matmul %1, %3, %cst {dimension_numbers = #tpu.dot_dimension_numbers<[1], [1], [0], [0], [0, 0, 1, 0], [], []>} : vector<8x32xf32>, vector<8x32xf32>, vector<8x8xf32> -> vector<8x8xf32>
    %cst_11 = arith.constant 0.176776692 : f32
    %7 = vector.broadcast %cst_11 : f32 to vector<8x8xf32>
    %8 = arith.mulf %6, %7 : vector<8x8xf32>
    %c0_12 = arith.constant 0 : index
    %c0_13 = arith.constant 0 : index
    %c0_14 = arith.constant 0 : index
    %9 = vector.load %arg5[%c0_12, %c0_13, %c0_14] : memref<1x8x8xf32, #tpu.memory_space<vmem>>, vector<1x8x8xf32>
    %10 = vector.shape_cast %9 : vector<1x8x8xf32> to vector<8x8xf32>
    %11 = arith.addf %8, %10 : vector<8x8xf32>
    %cst_15 = arith.constant dense<0xFF800000> : vector<8xf32>
    %12 = vector.multi_reduction <maximumf>, %11, %cst_15 [1] : vector<8x8xf32> to vector<8xf32>
    %13 = vector.shape_cast %12 : vector<8xf32> to vector<8x1xf32>
    %14 = vector.broadcast %13 : vector<8x1xf32> to vector<8x8xf32>
    %15 = arith.subf %11, %14 : vector<8x8xf32>
    %16 = math.exp %15 : vector<8x8xf32>
    %cst_16 = arith.constant dense<0.000000e+00> : vector<8xf32>
    %17 = vector.multi_reduction <add>, %16, %cst_16 [1] : vector<8x8xf32> to vector<8xf32>
    %18 = vector.shape_cast %17 : vector<8xf32> to vector<8x1xf32>
    %19 = vector.broadcast %18 : vector<8x1xf32> to vector<8x8xf32>
    %20 = arith.divf %16, %19 : vector<8x8xf32>
    %cst_17 = arith.constant dense<0.000000e+00> : vector<8x32xf32>
    %21 = tpu.matmul %20, %5, %cst_17 {dimension_numbers = #tpu.dot_dimension_numbers<[1], [0], [0], [1], [0, 0, 1, 1], [], []>} : vector<8x8xf32>, vector<8x32xf32>, vector<8x32xf32> -> vector<8x32xf32>
    %c0_18 = arith.constant 0 : index
    %c0_19 = arith.constant 0 : index
    %c0_20 = arith.constant 0 : index
    %c0_21 = arith.constant 0 : index
    %22 = vector.load %arg6[%c0_18, %c0_19, %c0_20, %c0_21] : memref<1x1x8x32xf32, #tpu.memory_space<vmem>>, vector<1x1x8x32xf32>
    %23 = vector.shape_cast %22 : vector<1x1x8x32xf32> to vector<8x32xf32>
    %24 = vector.shape_cast %21 : vector<8x32xf32> to vector<1x1x8x32xf32>
    tpu.vector_store %arg6[%c0_18, %c0_19, %c0_20, %c0_21], %24 {strides = array<i32>} : memref<1x1x8x32xf32, #tpu.memory_space<vmem>>, vector<1x1x8x32xf32>,
    return
  }
  func.func @transform_0(%arg0: i32, %arg1: i32) -> (i32, i32, i32, i32) {
    %c0_i32 = arith.constant 0 : i32
    %c0_i32_0 = arith.constant 0 : i32
    %c0_i32_1 = arith.constant 0 : i32
    return %arg0, %arg1, %c0_i32, %c0_i32_0 : i32, i32, i32, i32
  }
  func.func @transform_1(%arg0: i32, %arg1: i32) -> (i32, i32, i32, i32) {
    %c0_i32 = arith.constant 0 : i32
    %c0_i32_0 = arith.constant 0 : i32
    %c0_i32_1 = arith.constant 0 : i32
    return %arg0, %arg1, %c0_i32, %c0_i32_0 : i32, i32, i32, i32
  }
  func.func @transform_2(%arg0: i32, %arg1: i32) -> (i32, i32, i32, i32) {
    %c0_i32 = arith.constant 0 : i32
    %c0_i32_0 = arith.constant 0 : i32
    %c0_i32_1 = arith.constant 0 : i32
    return %arg0, %arg1, %c0_i32, %c0_i32_0 : i32, i32, i32, i32
  }
  func.func @transform_3(%arg0: i32, %arg1: i32) -> (i32, i32, i32) {
    %c0_i32 = arith.constant 0 : i32
    %c0_i32_0 = arith.constant 0 : i32
    %c0_i32_1 = arith.constant 0 : i32
    return %arg0, %c0_i32, %c0_i32_0 : i32, i32, i32
  }
  func.func @transform_4(%arg0: i32, %arg1: i32) -> (i32, i32, i32, i32) {
    %c0_i32 = arith.constant 0 : i32
    %c0_i32_0 = arith.constant 0 : i32
    %c0_i32_1 = arith.constant 0 : i32
    return %arg0, %arg1, %c0_i32, %c0_i32_0 : i32, i32, i32, i32
  }
}

module attributes {stable_mosaic.version = 11 : i64} {
  func.func @_linear_kernel(%arg0: i32, %arg1: memref<16x128xf32, #tpu.memory_space<vmem>>, %arg2: memref<128x256xf32, #tpu.memory_space<vmem>>, %arg3: memref<1x256xf32, #tpu.memory_space<vmem>>, %arg4: memref<16x256xf32, #tpu.memory_space<vmem>>) attributes {dimension_semantics = [#tpu.dimension_semantics<parallel>], iteration_bounds = array<i64: 1>, scalar_prefetch = 0 : i64, scratch_operands = 0 : i64, tpu.core_type = #tpu.core_type<tc>, window_params = [{transform_indices = @transform_0, window_bounds = array<i64: 16, 128>}, {pipeline_mode = #tpu.pipeline_mode<synchronous>, transform_indices = @transform_1, window_bounds = array<i64: 128, 256>}, {pipeline_mode = #tpu.pipeline_mode<synchronous>, transform_indices = @transform_2, window_bounds = array<i64: 1, 256>}, {transform_indices = @transform_3, window_bounds = array<i64: 16, 256>}]} {
    %c0 = arith.constant 0 : index
    %c0_0 = arith.constant 0 : index
    %0 = vector.load %arg1[%c0, %c0_0] : memref<16x128xf32, #tpu.memory_space<vmem>>, vector<16x128xf32>
    %c0_1 = arith.constant 0 : index
    %c0_2 = arith.constant 0 : index
    %1 = vector.load %arg2[%c0_1, %c0_2] : memref<128x256xf32, #tpu.memory_space<vmem>>, vector<128x256xf32>
    %cst = arith.constant dense<0.000000e+00> : vector<16x256xf32>
    %2 = tpu.matmul %0, %1, %cst {dimension_numbers = #tpu.dot_dimension_numbers<[1], [0], [0], [1], [0, 0, 1, 1], [], []>} : vector<16x128xf32>, vector<128x256xf32>, vector<16x256xf32> -> vector<16x256xf32>
    %c0_3 = arith.constant 0 : index
    %c0_4 = arith.constant 0 : index
    %3 = vector.load %arg3[%c0_3, %c0_4] : memref<1x256xf32, #tpu.memory_space<vmem>>, vector<1x256xf32>
    %4 = vector.broadcast %3 : vector<1x256xf32> to vector<16x256xf32>
    %5 = arith.addf %2, %4 : vector<16x256xf32>
    %cst_5 = arith.constant 0.000000e+00 : f32
    %6 = vector.broadcast %cst_5 : f32 to vector<16x256xf32>
    %7 = arith.maximumf %5, %6 : vector<16x256xf32>
    %c0_6 = arith.constant 0 : index
    %c0_7 = arith.constant 0 : index
    %8 = vector.load %arg4[%c0_6, %c0_7] : memref<16x256xf32, #tpu.memory_space<vmem>>, vector<16x256xf32>
    tpu.vector_store %arg4[%c0_6, %c0_7], %7 {strides = array<i32>} : memref<16x256xf32, #tpu.memory_space<vmem>>, vector<16x256xf32>,
    return
  }
  func.func @transform_0(%arg0: i32) -> (i32, i32) {
    %c0_i32 = arith.constant 0 : i32
    %c0_i32_0 = arith.constant 0 : i32
    return %arg0, %c0_i32 : i32, i32
  }
  func.func @transform_1(%arg0: i32) -> (i32, i32) {
    %c0_i32 = arith.constant 0 : i32
    %c0_i32_0 = arith.constant 0 : i32
    %c0_i32_1 = arith.constant 0 : i32
    return %c0_i32, %c0_i32_0 : i32, i32
  }
  func.func @transform_2(%arg0: i32) -> (i32, i32) {
    %c0_i32 = arith.constant 0 : i32
    %c0_i32_0 = arith.constant 0 : i32
    %c0_i32_1 = arith.constant 0 : i32
    return %c0_i32, %c0_i32_0 : i32, i32
  }
  func.func @transform_3(%arg0: i32) -> (i32, i32) {
    %c0_i32 = arith.constant 0 : i32
    %c0_i32_0 = arith.constant 0 : i32
    return %arg0, %c0_i32 : i32, i32
  }
}

module attributes {stable_mosaic.version = 11 : i64} {
  func.func @_linear_kernel(%arg0: i32, %arg1: memref<16x128xf32, #tpu.memory_space<vmem>>, %arg2: memref<128x128xf32, #tpu.memory_space<vmem>>, %arg3: memref<1x128xf32, #tpu.memory_space<vmem>>, %arg4: memref<16x128xf32, #tpu.memory_space<vmem>>, %arg5: memref<16x128xf32, #tpu.memory_space<vmem>>) attributes {dimension_semantics = [#tpu.dimension_semantics<parallel>], iteration_bounds = array<i64: 1>, scalar_prefetch = 0 : i64, scratch_operands = 0 : i64, tpu.core_type = #tpu.core_type<tc>, window_params = [{transform_indices = @transform_0, window_bounds = array<i64: 16, 128>}, {pipeline_mode = #tpu.pipeline_mode<synchronous>, transform_indices = @transform_1, window_bounds = array<i64: 128, 128>}, {pipeline_mode = #tpu.pipeline_mode<synchronous>, transform_indices = @transform_2, window_bounds = array<i64: 1, 128>}, {transform_indices = @transform_3, window_bounds = array<i64: 16, 128>}, {transform_indices = @transform_4, window_bounds = array<i64: 16, 128>}]} {
    %c0 = arith.constant 0 : index
    %c0_0 = arith.constant 0 : index
    %0 = vector.load %arg1[%c0, %c0_0] : memref<16x128xf32, #tpu.memory_space<vmem>>, vector<16x128xf32>
    %c0_1 = arith.constant 0 : index
    %c0_2 = arith.constant 0 : index
    %1 = vector.load %arg2[%c0_1, %c0_2] : memref<128x128xf32, #tpu.memory_space<vmem>>, vector<128x128xf32>
    %cst = arith.constant dense<0.000000e+00> : vector<16x128xf32>
    %2 = tpu.matmul %0, %1, %cst {dimension_numbers = #tpu.dot_dimension_numbers<[1], [0], [0], [1], [0, 0, 1, 1], [], []>} : vector<16x128xf32>, vector<128x128xf32>, vector<16x128xf32> -> vector<16x128xf32>
    %c0_3 = arith.constant 0 : index
    %c0_4 = arith.constant 0 : index
    %3 = vector.load %arg3[%c0_3, %c0_4] : memref<1x128xf32, #tpu.memory_space<vmem>>, vector<1x128xf32>
    %4 = vector.broadcast %3 : vector<1x128xf32> to vector<16x128xf32>
    %5 = arith.addf %2, %4 : vector<16x128xf32>
    %c0_5 = arith.constant 0 : index
    %c0_6 = arith.constant 0 : index
    %6 = vector.load %arg4[%c0_5, %c0_6] : memref<16x128xf32, #tpu.memory_space<vmem>>, vector<16x128xf32>
    %7 = arith.addf %5, %6 : vector<16x128xf32>
    %c0_7 = arith.constant 0 : index
    %c0_8 = arith.constant 0 : index
    %8 = vector.load %arg5[%c0_7, %c0_8] : memref<16x128xf32, #tpu.memory_space<vmem>>, vector<16x128xf32>
    tpu.vector_store %arg5[%c0_7, %c0_8], %7 {strides = array<i32>} : memref<16x128xf32, #tpu.memory_space<vmem>>, vector<16x128xf32>,
    return
  }
  func.func @transform_0(%arg0: i32) -> (i32, i32) {
    %c0_i32 = arith.constant 0 : i32
    %c0_i32_0 = arith.constant 0 : i32
    return %arg0, %c0_i32 : i32, i32
  }
  func.func @transform_1(%arg0: i32) -> (i32, i32) {
    %c0_i32 = arith.constant 0 : i32
    %c0_i32_0 = arith.constant 0 : i32
    %c0_i32_1 = arith.constant 0 : i32
    return %c0_i32, %c0_i32_0 : i32, i32
  }
  func.func @transform_2(%arg0: i32) -> (i32, i32) {
    %c0_i32 = arith.constant 0 : i32
    %c0_i32_0 = arith.constant 0 : i32
    %c0_i32_1 = arith.constant 0 : i32
    return %c0_i32, %c0_i32_0 : i32, i32
  }
  func.func @transform_3(%arg0: i32) -> (i32, i32) {
    %c0_i32 = arith.constant 0 : i32
    %c0_i32_0 = arith.constant 0 : i32
    return %arg0, %c0_i32 : i32, i32
  }
  func.func @transform_4(%arg0: i32) -> (i32, i32) {
    %c0_i32 = arith.constant 0 : i32
    %c0_i32_0 = arith.constant 0 : i32
    return %arg0, %c0_i32 : i32, i32
  }
}

module attributes {stable_mosaic.version = 11 : i64} {
  func.func @_linear_kernel(%arg0: i32, %arg1: memref<16x256xf32, #tpu.memory_space<vmem>>, %arg2: memref<256x128xf32, #tpu.memory_space<vmem>>, %arg3: memref<1x128xf32, #tpu.memory_space<vmem>>, %arg4: memref<16x128xf32, #tpu.memory_space<vmem>>, %arg5: memref<16x128xf32, #tpu.memory_space<vmem>>) attributes {dimension_semantics = [#tpu.dimension_semantics<parallel>], iteration_bounds = array<i64: 1>, scalar_prefetch = 0 : i64, scratch_operands = 0 : i64, tpu.core_type = #tpu.core_type<tc>, window_params = [{transform_indices = @transform_0, window_bounds = array<i64: 16, 256>}, {pipeline_mode = #tpu.pipeline_mode<synchronous>, transform_indices = @transform_1, window_bounds = array<i64: 256, 128>}, {pipeline_mode = #tpu.pipeline_mode<synchronous>, transform_indices = @transform_2, window_bounds = array<i64: 1, 128>}, {transform_indices = @transform_3, window_bounds = array<i64: 16, 128>}, {transform_indices = @transform_4, window_bounds = array<i64: 16, 128>}]} {
    %c0 = arith.constant 0 : index
    %c0_0 = arith.constant 0 : index
    %0 = vector.load %arg1[%c0, %c0_0] : memref<16x256xf32, #tpu.memory_space<vmem>>, vector<16x256xf32>
    %c0_1 = arith.constant 0 : index
    %c0_2 = arith.constant 0 : index
    %1 = vector.load %arg2[%c0_1, %c0_2] : memref<256x128xf32, #tpu.memory_space<vmem>>, vector<256x128xf32>
    %cst = arith.constant dense<0.000000e+00> : vector<16x128xf32>
    %2 = tpu.matmul %0, %1, %cst {dimension_numbers = #tpu.dot_dimension_numbers<[1], [0], [0], [1], [0, 0, 1, 1], [], []>} : vector<16x256xf32>, vector<256x128xf32>, vector<16x128xf32> -> vector<16x128xf32>
    %c0_3 = arith.constant 0 : index
    %c0_4 = arith.constant 0 : index
    %3 = vector.load %arg3[%c0_3, %c0_4] : memref<1x128xf32, #tpu.memory_space<vmem>>, vector<1x128xf32>
    %4 = vector.broadcast %3 : vector<1x128xf32> to vector<16x128xf32>
    %5 = arith.addf %2, %4 : vector<16x128xf32>
    %c0_5 = arith.constant 0 : index
    %c0_6 = arith.constant 0 : index
    %6 = vector.load %arg4[%c0_5, %c0_6] : memref<16x128xf32, #tpu.memory_space<vmem>>, vector<16x128xf32>
    %7 = arith.addf %5, %6 : vector<16x128xf32>
    %c0_7 = arith.constant 0 : index
    %c0_8 = arith.constant 0 : index
    %8 = vector.load %arg5[%c0_7, %c0_8] : memref<16x128xf32, #tpu.memory_space<vmem>>, vector<16x128xf32>
    tpu.vector_store %arg5[%c0_7, %c0_8], %7 {strides = array<i32>} : memref<16x128xf32, #tpu.memory_space<vmem>>, vector<16x128xf32>,
    return
  }
  func.func @transform_0(%arg0: i32) -> (i32, i32) {
    %c0_i32 = arith.constant 0 : i32
    %c0_i32_0 = arith.constant 0 : i32
    return %arg0, %c0_i32 : i32, i32
  }
  func.func @transform_1(%arg0: i32) -> (i32, i32) {
    %c0_i32 = arith.constant 0 : i32
    %c0_i32_0 = arith.constant 0 : i32
    %c0_i32_1 = arith.constant 0 : i32
    return %c0_i32, %c0_i32_0 : i32, i32
  }
  func.func @transform_2(%arg0: i32) -> (i32, i32) {
    %c0_i32 = arith.constant 0 : i32
    %c0_i32_0 = arith.constant 0 : i32
    %c0_i32_1 = arith.constant 0 : i32
    return %c0_i32, %c0_i32_0 : i32, i32
  }
  func.func @transform_3(%arg0: i32) -> (i32, i32) {
    %c0_i32 = arith.constant 0 : i32
    %c0_i32_0 = arith.constant 0 : i32
    return %arg0, %c0_i32 : i32, i32
  }
  func.func @transform_4(%arg0: i32) -> (i32, i32) {
    %c0_i32 = arith.constant 0 : i32
    %c0_i32_0 = arith.constant 0 : i32
    return %arg0, %c0_i32 : i32, i32
  }
}

module attributes {stable_mosaic.version = 11 : i64} {
  func.func @_mha_kernel(%arg0: i32, %arg1: i32, %arg2: memref<1x1x16x32xf32, #tpu.memory_space<vmem>>, %arg3: memref<1x1x8x32xf32, #tpu.memory_space<vmem>>, %arg4: memref<1x1x8x32xf32, #tpu.memory_space<vmem>>, %arg5: memref<1x16x8xf32, #tpu.memory_space<vmem>>, %arg6: memref<1x1x16x32xf32, #tpu.memory_space<vmem>>) attributes {dimension_semantics = [#tpu.dimension_semantics<parallel>, #tpu.dimension_semantics<parallel>], iteration_bounds = array<i64: 2, 4>, scalar_prefetch = 0 : i64, scratch_operands = 0 : i64, tpu.core_type = #tpu.core_type<tc>, window_params = [{transform_indices = @transform_0, window_bounds = array<i64: 1, 1, 16, 32>}, {transform_indices = @transform_1, window_bounds = array<i64: 1, 1, 8, 32>}, {transform_indices = @transform_2, window_bounds = array<i64: 1, 1, 8, 32>}, {transform_indices = @transform_3, window_bounds = array<i64: 1, 16, 8>}, {transform_indices = @transform_4, window_bounds = array<i64: 1, 1, 16, 32>}]} {
    %c0 = arith.constant 0 : index
    %c0_0 = arith.constant 0 : index
    %c0_1 = arith.constant 0 : index
    %c0_2 = arith.constant 0 : index
    %0 = vector.load %arg2[%c0, %c0_0, %c0_1, %c0_2] : memref<1x1x16x32xf32, #tpu.memory_space<vmem>>, vector<1x1x16x32xf32>
    %1 = vector.shape_cast %0 : vector<1x1x16x32xf32> to vector<16x32xf32>
    %c0_3 = arith.constant 0 : index
    %c0_4 = arith.constant 0 : index
    %c0_5 = arith.constant 0 : index
    %c0_6 = arith.constant 0 : index
    %2 = vector.load %arg3[%c0_3, %c0_4, %c0_5, %c0_6] : memref<1x1x8x32xf32, #tpu.memory_space<vmem>>, vector<1x1x8x32xf32>
    %3 = vector.shape_cast %2 : vector<1x1x8x32xf32> to vector<8x32xf32>
    %c0_7 = arith.constant 0 : index
    %c0_8 = arith.constant 0 : index
    %c0_9 = arith.constant 0 : index
    %c0_10 = arith.constant 0 : index
    %4 = vector.load %arg4[%c0_7, %c0_8, %c0_9, %c0_10] : memref<1x1x8x32xf32, #tpu.memory_space<vmem>>, vector<1x1x8x32xf32>
    %5 = vector.shape_cast %4 : vector<1x1x8x32xf32> to vector<8x32xf32>
    %cst = arith.constant dense<0.000000e+00> : vector<16x8xf32>
    %6 = tpu.matmul %1, %3, %cst {dimension_numbers = #tpu.dot_dimension_numbers<[1], [1], [0], [0], [0, 0, 1, 0], [], []>} : vector<16x32xf32>, vector<8x32xf32>, vector<16x8xf32> -> vector<16x8xf32>
    %cst_11 = arith.constant 0.176776692 : f32
    %7 = vector.broadcast %cst_11 : f32 to vector<16x8xf32>
    %8 = arith.mulf %6, %7 : vector<16x8xf32>
    %c0_12 = arith.constant 0 : index
    %c0_13 = arith.constant 0 : index
    %c0_14 = arith.constant 0 : index
    %9 = vector.load %arg5[%c0_12, %c0_13, %c0_14] : memref<1x16x8xf32, #tpu.memory_space<vmem>>, vector<1x16x8xf32>
    %10 = vector.shape_cast %9 : vector<1x16x8xf32> to vector<16x8xf32>
    %11 = arith.addf %8, %10 : vector<16x8xf32>
    %cst_15 = arith.constant dense<0xFF800000> : vector<16xf32>
    %12 = vector.multi_reduction <maximumf>, %11, %cst_15 [1] : vector<16x8xf32> to vector<16xf32>
    %13 = vector.shape_cast %12 : vector<16xf32> to vector<16x1xf32>
    %14 = vector.broadcast %13 : vector<16x1xf32> to vector<16x8xf32>
    %15 = arith.subf %11, %14 : vector<16x8xf32>
    %16 = math.exp %15 : vector<16x8xf32>
    %cst_16 = arith.constant dense<0.000000e+00> : vector<16xf32>
    %17 = vector.multi_reduction <add>, %16, %cst_16 [1] : vector<16x8xf32> to vector<16xf32>
    %18 = vector.shape_cast %17 : vector<16xf32> to vector<16x1xf32>
    %19 = vector.broadcast %18 : vector<16x1xf32> to vector<16x8xf32>
    %20 = arith.divf %16, %19 : vector<16x8xf32>
    %cst_17 = arith.constant dense<0.000000e+00> : vector<16x32xf32>
    %21 = tpu.matmul %20, %5, %cst_17 {dimension_numbers = #tpu.dot_dimension_numbers<[1], [0], [0], [1], [0, 0, 1, 1], [], []>} : vector<16x8xf32>, vector<8x32xf32>, vector<16x32xf32> -> vector<16x32xf32>
    %c0_18 = arith.constant 0 : index
    %c0_19 = arith.constant 0 : index
    %c0_20 = arith.constant 0 : index
    %c0_21 = arith.constant 0 : index
    %22 = vector.load %arg6[%c0_18, %c0_19, %c0_20, %c0_21] : memref<1x1x16x32xf32, #tpu.memory_space<vmem>>, vector<1x1x16x32xf32>
    %23 = vector.shape_cast %22 : vector<1x1x16x32xf32> to vector<16x32xf32>
    %24 = vector.shape_cast %21 : vector<16x32xf32> to vector<1x1x16x32xf32>
    tpu.vector_store %arg6[%c0_18, %c0_19, %c0_20, %c0_21], %24 {strides = array<i32>} : memref<1x1x16x32xf32, #tpu.memory_space<vmem>>, vector<1x1x16x32xf32>,
    return
  }
  func.func @transform_0(%arg0: i32, %arg1: i32) -> (i32, i32, i32, i32) {
    %c0_i32 = arith.constant 0 : i32
    %c0_i32_0 = arith.constant 0 : i32
    %c0_i32_1 = arith.constant 0 : i32
    return %arg0, %arg1, %c0_i32, %c0_i32_0 : i32, i32, i32, i32
  }
  func.func @transform_1(%arg0: i32, %arg1: i32) -> (i32, i32, i32, i32) {
    %c0_i32 = arith.constant 0 : i32
    %c0_i32_0 = arith.constant 0 : i32
    %c0_i32_1 = arith.constant 0 : i32
    return %arg0, %arg1, %c0_i32, %c0_i32_0 : i32, i32, i32, i32
  }
  func.func @transform_2(%arg0: i32, %arg1: i32) -> (i32, i32, i32, i32) {
    %c0_i32 = arith.constant 0 : i32
    %c0_i32_0 = arith.constant 0 : i32
    %c0_i32_1 = arith.constant 0 : i32
    return %arg0, %arg1, %c0_i32, %c0_i32_0 : i32, i32, i32, i32
  }
  func.func @transform_3(%arg0: i32, %arg1: i32) -> (i32, i32, i32) {
    %c0_i32 = arith.constant 0 : i32
    %c0_i32_0 = arith.constant 0 : i32
    %c0_i32_1 = arith.constant 0 : i32
    return %arg0, %c0_i32, %c0_i32_0 : i32, i32, i32
  }
  func.func @transform_4(%arg0: i32, %arg1: i32) -> (i32, i32, i32, i32) {
    %c0_i32 = arith.constant 0 : i32
    %c0_i32_0 = arith.constant 0 : i32
    %c0_i32_1 = arith.constant 0 : i32
    return %arg0, %arg1, %c0_i32, %c0_i32_0 : i32, i32, i32, i32
  }
}

module attributes {stable_mosaic.version = 11 : i64} {
  func.func @_linear_kernel(%arg0: i32, %arg1: memref<32x128xf32, #tpu.memory_space<vmem>>, %arg2: memref<128x256xf32, #tpu.memory_space<vmem>>, %arg3: memref<1x256xf32, #tpu.memory_space<vmem>>, %arg4: memref<32x256xf32, #tpu.memory_space<vmem>>) attributes {dimension_semantics = [#tpu.dimension_semantics<parallel>], iteration_bounds = array<i64: 1>, scalar_prefetch = 0 : i64, scratch_operands = 0 : i64, tpu.core_type = #tpu.core_type<tc>, window_params = [{transform_indices = @transform_0, window_bounds = array<i64: 32, 128>}, {pipeline_mode = #tpu.pipeline_mode<synchronous>, transform_indices = @transform_1, window_bounds = array<i64: 128, 256>}, {pipeline_mode = #tpu.pipeline_mode<synchronous>, transform_indices = @transform_2, window_bounds = array<i64: 1, 256>}, {transform_indices = @transform_3, window_bounds = array<i64: 32, 256>}]} {
    %c0 = arith.constant 0 : index
    %c0_0 = arith.constant 0 : index
    %0 = vector.load %arg1[%c0, %c0_0] : memref<32x128xf32, #tpu.memory_space<vmem>>, vector<32x128xf32>
    %c0_1 = arith.constant 0 : index
    %c0_2 = arith.constant 0 : index
    %1 = vector.load %arg2[%c0_1, %c0_2] : memref<128x256xf32, #tpu.memory_space<vmem>>, vector<128x256xf32>
    %cst = arith.constant dense<0.000000e+00> : vector<32x256xf32>
    %2 = tpu.matmul %0, %1, %cst {dimension_numbers = #tpu.dot_dimension_numbers<[1], [0], [0], [1], [0, 0, 1, 1], [], []>} : vector<32x128xf32>, vector<128x256xf32>, vector<32x256xf32> -> vector<32x256xf32>
    %c0_3 = arith.constant 0 : index
    %c0_4 = arith.constant 0 : index
    %3 = vector.load %arg3[%c0_3, %c0_4] : memref<1x256xf32, #tpu.memory_space<vmem>>, vector<1x256xf32>
    %4 = vector.broadcast %3 : vector<1x256xf32> to vector<32x256xf32>
    %5 = arith.addf %2, %4 : vector<32x256xf32>
    %cst_5 = arith.constant 0.000000e+00 : f32
    %6 = vector.broadcast %cst_5 : f32 to vector<32x256xf32>
    %7 = arith.maximumf %5, %6 : vector<32x256xf32>
    %c0_6 = arith.constant 0 : index
    %c0_7 = arith.constant 0 : index
    %8 = vector.load %arg4[%c0_6, %c0_7] : memref<32x256xf32, #tpu.memory_space<vmem>>, vector<32x256xf32>
    tpu.vector_store %arg4[%c0_6, %c0_7], %7 {strides = array<i32>} : memref<32x256xf32, #tpu.memory_space<vmem>>, vector<32x256xf32>,
    return
  }
  func.func @transform_0(%arg0: i32) -> (i32, i32) {
    %c0_i32 = arith.constant 0 : i32
    %c0_i32_0 = arith.constant 0 : i32
    return %arg0, %c0_i32 : i32, i32
  }
  func.func @transform_1(%arg0: i32) -> (i32, i32) {
    %c0_i32 = arith.constant 0 : i32
    %c0_i32_0 = arith.constant 0 : i32
    %c0_i32_1 = arith.constant 0 : i32
    return %c0_i32, %c0_i32_0 : i32, i32
  }
  func.func @transform_2(%arg0: i32) -> (i32, i32) {
    %c0_i32 = arith.constant 0 : i32
    %c0_i32_0 = arith.constant 0 : i32
    %c0_i32_1 = arith.constant 0 : i32
    return %c0_i32, %c0_i32_0 : i32, i32
  }
  func.func @transform_3(%arg0: i32) -> (i32, i32) {
    %c0_i32 = arith.constant 0 : i32
    %c0_i32_0 = arith.constant 0 : i32
    return %arg0, %c0_i32 : i32, i32
  }
}

module attributes {stable_mosaic.version = 11 : i64} {
  func.func @_linear_kernel(%arg0: i32, %arg1: memref<32x256xf32, #tpu.memory_space<vmem>>, %arg2: memref<256x128xf32, #tpu.memory_space<vmem>>, %arg3: memref<1x128xf32, #tpu.memory_space<vmem>>, %arg4: memref<32x128xf32, #tpu.memory_space<vmem>>, %arg5: memref<32x128xf32, #tpu.memory_space<vmem>>) attributes {dimension_semantics = [#tpu.dimension_semantics<parallel>], iteration_bounds = array<i64: 1>, scalar_prefetch = 0 : i64, scratch_operands = 0 : i64, tpu.core_type = #tpu.core_type<tc>, window_params = [{transform_indices = @transform_0, window_bounds = array<i64: 32, 256>}, {pipeline_mode = #tpu.pipeline_mode<synchronous>, transform_indices = @transform_1, window_bounds = array<i64: 256, 128>}, {pipeline_mode = #tpu.pipeline_mode<synchronous>, transform_indices = @transform_2, window_bounds = array<i64: 1, 128>}, {transform_indices = @transform_3, window_bounds = array<i64: 32, 128>}, {transform_indices = @transform_4, window_bounds = array<i64: 32, 128>}]} {
    %c0 = arith.constant 0 : index
    %c0_0 = arith.constant 0 : index
    %0 = vector.load %arg1[%c0, %c0_0] : memref<32x256xf32, #tpu.memory_space<vmem>>, vector<32x256xf32>
    %c0_1 = arith.constant 0 : index
    %c0_2 = arith.constant 0 : index
    %1 = vector.load %arg2[%c0_1, %c0_2] : memref<256x128xf32, #tpu.memory_space<vmem>>, vector<256x128xf32>
    %cst = arith.constant dense<0.000000e+00> : vector<32x128xf32>
    %2 = tpu.matmul %0, %1, %cst {dimension_numbers = #tpu.dot_dimension_numbers<[1], [0], [0], [1], [0, 0, 1, 1], [], []>} : vector<32x256xf32>, vector<256x128xf32>, vector<32x128xf32> -> vector<32x128xf32>
    %c0_3 = arith.constant 0 : index
    %c0_4 = arith.constant 0 : index
    %3 = vector.load %arg3[%c0_3, %c0_4] : memref<1x128xf32, #tpu.memory_space<vmem>>, vector<1x128xf32>
    %4 = vector.broadcast %3 : vector<1x128xf32> to vector<32x128xf32>
    %5 = arith.addf %2, %4 : vector<32x128xf32>
    %c0_5 = arith.constant 0 : index
    %c0_6 = arith.constant 0 : index
    %6 = vector.load %arg4[%c0_5, %c0_6] : memref<32x128xf32, #tpu.memory_space<vmem>>, vector<32x128xf32>
    %7 = arith.addf %5, %6 : vector<32x128xf32>
    %c0_7 = arith.constant 0 : index
    %c0_8 = arith.constant 0 : index
    %8 = vector.load %arg5[%c0_7, %c0_8] : memref<32x128xf32, #tpu.memory_space<vmem>>, vector<32x128xf32>
    tpu.vector_store %arg5[%c0_7, %c0_8], %7 {strides = array<i32>} : memref<32x128xf32, #tpu.memory_space<vmem>>, vector<32x128xf32>,
    return
  }
  func.func @transform_0(%arg0: i32) -> (i32, i32) {
    %c0_i32 = arith.constant 0 : i32
    %c0_i32_0 = arith.constant 0 : i32
    return %arg0, %c0_i32 : i32, i32
  }
  func.func @transform_1(%arg0: i32) -> (i32, i32) {
    %c0_i32 = arith.constant 0 : i32
    %c0_i32_0 = arith.constant 0 : i32
    %c0_i32_1 = arith.constant 0 : i32
    return %c0_i32, %c0_i32_0 : i32, i32
  }
  func.func @transform_2(%arg0: i32) -> (i32, i32) {
    %c0_i32 = arith.constant 0 : i32
    %c0_i32_0 = arith.constant 0 : i32
    %c0_i32_1 = arith.constant 0 : i32
    return %c0_i32, %c0_i32_0 : i32, i32
  }
  func.func @transform_3(%arg0: i32) -> (i32, i32) {
    %c0_i32 = arith.constant 0 : i32
    %c0_i32_0 = arith.constant 0 : i32
    return %arg0, %c0_i32 : i32, i32
  }
  func.func @transform_4(%arg0: i32) -> (i32, i32) {
    %c0_i32 = arith.constant 0 : i32
    %c0_i32_0 = arith.constant 0 : i32
    return %arg0, %c0_i32 : i32, i32
  }
}

module attributes {stable_mosaic.version = 11 : i64} {
  func.func @_layernorm_kernel(%arg0: i32, %arg1: memref<32x128xf32, #tpu.memory_space<vmem>>, %arg2: memref<1x128xf32, #tpu.memory_space<vmem>>, %arg3: memref<1x128xf32, #tpu.memory_space<vmem>>, %arg4: memref<32x128xf32, #tpu.memory_space<vmem>>) attributes {dimension_semantics = [#tpu.dimension_semantics<parallel>], iteration_bounds = array<i64: 1>, scalar_prefetch = 0 : i64, scratch_operands = 0 : i64, tpu.core_type = #tpu.core_type<tc>, window_params = [{transform_indices = @transform_0, window_bounds = array<i64: 32, 128>}, {pipeline_mode = #tpu.pipeline_mode<synchronous>, transform_indices = @transform_1, window_bounds = array<i64: 1, 128>}, {pipeline_mode = #tpu.pipeline_mode<synchronous>, transform_indices = @transform_2, window_bounds = array<i64: 1, 128>}, {transform_indices = @transform_3, window_bounds = array<i64: 32, 128>}]} {
    %c0 = arith.constant 0 : index
    %c0_0 = arith.constant 0 : index
    %0 = vector.load %arg1[%c0, %c0_0] : memref<32x128xf32, #tpu.memory_space<vmem>>, vector<32x128xf32>
    %cst = arith.constant dense<0.000000e+00> : vector<32xf32>
    %1 = vector.multi_reduction <add>, %0, %cst [1] : vector<32x128xf32> to vector<32xf32>
    %2 = vector.shape_cast %1 : vector<32xf32> to vector<32x1xf32>
    %cst_1 = arith.constant 1.280000e+02 : f32
    %3 = vector.broadcast %cst_1 : f32 to vector<32x1xf32>
    %4 = arith.divf %2, %3 : vector<32x1xf32>
    %5 = vector.broadcast %4 : vector<32x1xf32> to vector<32x128xf32>
    %6 = arith.subf %0, %5 : vector<32x128xf32>
    %7 = arith.mulf %6, %6 : vector<32x128xf32>
    %cst_2 = arith.constant dense<0.000000e+00> : vector<32xf32>
    %8 = vector.multi_reduction <add>, %7, %cst_2 [1] : vector<32x128xf32> to vector<32xf32>
    %9 = vector.shape_cast %8 : vector<32xf32> to vector<32x1xf32>
    %cst_3 = arith.constant 1.280000e+02 : f32
    %10 = vector.broadcast %cst_3 : f32 to vector<32x1xf32>
    %11 = arith.divf %9, %10 : vector<32x1xf32>
    %12 = vector.broadcast %4 : vector<32x1xf32> to vector<32x128xf32>
    %13 = arith.subf %0, %12 : vector<32x128xf32>
    %cst_4 = arith.constant 9.99999997E-7 : f32
    %14 = vector.broadcast %cst_4 : f32 to vector<32x1xf32>
    %15 = arith.addf %11, %14 : vector<32x1xf32>
    %16 = math.rsqrt %15 : vector<32x1xf32>
    %17 = vector.broadcast %16 : vector<32x1xf32> to vector<32x128xf32>
    %18 = arith.mulf %13, %17 : vector<32x128xf32>
    %c0_5 = arith.constant 0 : index
    %c0_6 = arith.constant 0 : index
    %19 = vector.load %arg2[%c0_5, %c0_6] : memref<1x128xf32, #tpu.memory_space<vmem>>, vector<1x128xf32>
    %20 = vector.broadcast %19 : vector<1x128xf32> to vector<32x128xf32>
    %21 = arith.mulf %18, %20 : vector<32x128xf32>
    %c0_7 = arith.constant 0 : index
    %c0_8 = arith.constant 0 : index
    %22 = vector.load %arg3[%c0_7, %c0_8] : memref<1x128xf32, #tpu.memory_space<vmem>>, vector<1x128xf32>
    %23 = vector.broadcast %22 : vector<1x128xf32> to vector<32x128xf32>
    %24 = arith.addf %21, %23 : vector<32x128xf32>
    %c0_9 = arith.constant 0 : index
    %c0_10 = arith.constant 0 : index
    %25 = vector.load %arg4[%c0_9, %c0_10] : memref<32x128xf32, #tpu.memory_space<vmem>>, vector<32x128xf32>
    tpu.vector_store %arg4[%c0_9, %c0_10], %24 {strides = array<i32>} : memref<32x128xf32, #tpu.memory_space<vmem>>, vector<32x128xf32>,
    return
  }
  func.func @transform_0(%arg0: i32) -> (i32, i32) {
    %c0_i32 = arith.constant 0 : i32
    %c0_i32_0 = arith.constant 0 : i32
    return %arg0, %c0_i32 : i32, i32
  }
  func.func @transform_1(%arg0: i32) -> (i32, i32) {
    %c0_i32 = arith.constant 0 : i32
    %c0_i32_0 = arith.constant 0 : i32
    %c0_i32_1 = arith.constant 0 : i32
    return %c0_i32, %c0_i32_0 : i32, i32
  }
  func.func @transform_2(%arg0: i32) -> (i32, i32) {
    %c0_i32 = arith.constant 0 : i32
    %c0_i32_0 = arith.constant 0 : i32
    %c0_i32_1 = arith.constant 0 : i32
    return %c0_i32, %c0_i32_0 : i32, i32
  }
  func.func @transform_3(%arg0: i32) -> (i32, i32) {
    %c0_i32 = arith.constant 0 : i32
    %c0_i32_0 = arith.constant 0 : i32
    return %arg0, %c0_i32 : i32, i32
  }
}

</mosaic_0001>

<llo_original>
// kernel: encoder_decoder_forward.72
$region0: #{encoder_decoder_forward.72}
  #allocation0 [shape = 'u32[]', space=smem, size = 0x4, offset = 0x4, fixed_abs, tag = 'smem constant byte address 0x4 - core index']
  #allocation1 [shape = 'u32[144,128]{1,0:T(1,128)}', space=vmem, size = 0x12000, scoped, tag = 'internal scratch']
  %s0 = inlined_call_operand.vmem [shape: s32[32,1], index: 0, kind: input, shape index: {}]
  %s1 = inlined_call_operand.vmem [shape: f32[128,128], index: 1, kind: input, shape index: {}]
  %s2 = inlined_call_operand.vmem [shape: f32[32,128], index: 2, kind: input, shape index: {}]
  %s3 = inlined_call_operand.vmem [shape: f32[32,128], index: 3, kind: output, shape index: {}]
  %s4 = sld [smem:[#allocation0]]
  $region22: #{encoder_decoder_forward.72} parent=0
    _
  %s6 = ssub.s32 1, %s4
  %s7 = scalar_select 0, %s6, %s4
  // Predicated region
  $region2: #{encoder_decoder_forward.72} parent=0 // pred_check
    _
  $region3: #{encoder_decoder_forward.72} parent=0 // pred_check_branch
    %9 = sbr.rel (0) target = $region5
  $region4: #{encoder_decoder_forward.72} parent=0 // pred_region
    _
  $region5: #{encoder_decoder_forward.72} parent=0 // pred_fallthru
    _
  // Predicated region
  $region6: #{encoder_decoder_forward.72} parent=0 // pred_check
    _
  $region7: #{encoder_decoder_forward.72} parent=0 // pred_check_branch
    %11 = sbr.rel (0) target = $region9
  $region8: #{encoder_decoder_forward.72} parent=0 // pred_region
    _
  $region9: #{encoder_decoder_forward.72} parent=0 // pred_fallthru
    _
  // Predicated region
  $region10: #{encoder_decoder_forward.72} parent=0 // pred_check
    _
  $region11: #{encoder_decoder_forward.72} parent=0 // pred_check_branch
    %13 = sbr.rel (0) target = $region13
  $region12: #{encoder_decoder_forward.72} parent=0 // pred_region
    _
  $region13: #{encoder_decoder_forward.72} parent=0 // pred_fallthru
    _
  %v14 = vld [vmem:[%s0] sm:$0xff]
  %v15 = vld [vmem:[%s0 + $0x8] sm:$0xff]
  %v16 = vld [vmem:[%s0 + $0x10] sm:$0xff]
  %v17 = vld [vmem:[%s0 + $0x18] sm:$0xff]
  %v18 = vlaneseq
  %v19 = vand.u32 %v18, 127
  %20 = vset.pattern.permute.xlu0 0
  %21 = vperm.xlu0 %20, %v14
  %v22 = vpop.permute.xlu0 %21
  %23 = vset.pattern.permute.xlu0 0
  %24 = vperm.xlu0 %23, %v15
  %v25 = vpop.permute.xlu0 %24
  %26 = vset.pattern.permute.xlu0 0
  %27 = vperm.xlu0 %26, %v16
  %v28 = vpop.permute.xlu0 %27
  %29 = vset.pattern.permute.xlu0 0
  %30 = vperm.xlu0 %29, %v17
  %v31 = vpop.permute.xlu0 %30
  %vm32 = vcmp.eq.s32.totalorder %v22, %v19
  %vm33 = vcmp.eq.s32.totalorder %v25, %v19
  %vm34 = vcmp.eq.s32.totalorder %v28, %v19
  %vm35 = vcmp.eq.s32.totalorder %v31, %v19
  %v36 = vsel %vm32, 1, 0
  %v37 = vsel %vm33, 1, 0
  %v38 = vsel %vm34, 1, 0
  %v39 = vsel %vm35, 1, 0
  %v40 = vcvt.s32.f32 %v36
  %v41 = vcvt.s32.f32 %v37
  %v42 = vcvt.s32.f32 %v38
  %v43 = vcvt.s32.f32 %v39
  %v44 = vld [vmem:[%s1] sm:$0xff]
  %v45 = vld [vmem:[%s1 + $0x8] sm:$0xff]
  %v46 = vld [vmem:[%s1 + $0x10] sm:$0xff]
  %v47 = vld [vmem:[%s1 + $0x18] sm:$0xff]
  %v48 = vld [vmem:[%s1 + $0x20] sm:$0xff]
  %v49 = vld [vmem:[%s1 + $0x28] sm:$0xff]
  %v50 = vld [vmem:[%s1 + $0x30] sm:$0xff]
  %v51 = vld [vmem:[%s1 + $0x38] sm:$0xff]
  %v52 = vld [vmem:[%s1 + $0x40] sm:$0xff]
  %v53 = vld [vmem:[%s1 + $0x48] sm:$0xff]
  %v54 = vld [vmem:[%s1 + $0x50] sm:$0xff]
  %v55 = vld [vmem:[%s1 + $0x58] sm:$0xff]
  %v56 = vld [vmem:[%s1 + $0x60] sm:$0xff]
  %v57 = vld [vmem:[%s1 + $0x68] sm:$0xff]
  %v58 = vld [vmem:[%s1 + $0x70] sm:$0xff]
  %v59 = vld [vmem:[%s1 + $0x78] sm:$0xff]
  %60 = vmatprep.subr.mxu0 0.0
  %61 = vmatpush1.msra.mxu0 %v44
  %62 = vmatprep.subr.mxu0 0.0
  %63 = vmatpush1.msra.mxu0 %v45
  %64 = vmatprep.subr.mxu0 0.0
  %65 = vmatpush1.msra.mxu0 %v46
  %66 = vmatprep.subr.mxu0 0.0
  %67 = vmatpush1.msra.mxu0 %v47
  %68 = vmatprep.subr.mxu0 0.0
  %69 = vmatpush1.msra.mxu0 %v48
  %70 = vmatprep.subr.mxu0 0.0
  %71 = vmatpush1.msra.mxu0 %v49
  %72 = vmatprep.subr.mxu0 0.0
  %73 = vmatpush1.msra.mxu0 %v50
  %74 = vmatprep.subr.mxu0 0.0
  %75 = vmatpush1.msra.mxu0 %v51
  %76 = vmatprep.subr.mxu0 0.0
  %77 = vmatpush1.msra.mxu0 %v52
  %78 = vmatprep.subr.mxu0 0.0
  %79 = vmatpush1.msra.mxu0 %v53
  %80 = vmatprep.subr.mxu0 0.0
  %81 = vmatpush1.msra.mxu0 %v54
  %82 = vmatprep.subr.mxu0 0.0
  %83 = vmatpush1.msra.mxu0 %v55
  %84 = vmatprep.subr.mxu0 0.0
  %85 = vmatpush1.msra.mxu0 %v56
  %86 = vmatprep.subr.mxu0 0.0
  %87 = vmatpush1.msra.mxu0 %v57
  %88 = vmatprep.subr.mxu0 0.0
  %89 = vmatpush1.msra.mxu0 %v58
  %90 = vmatprep.subr.mxu0 0.0
  %91 = vmatpush1.msra.mxu0 %v59
  %92 = vmatprep.subr.mxu0 0.0
  %93 = vmatpush1.msra.mxu0 0.0
  %94 = vmatprep.subr.mxu0 0.0
  %95 = vmatpush1.msra.mxu0 0.0
  %96 = vmatprep.subr.mxu0 0.0
  %97 = vmatpush1.msra.mxu0 0.0
  %98 = vmatprep.subr.mxu0 0.0
  %99 = vmatpush1.msra.mxu0 0.0
  %100 = vmatprep.subr.mxu0 0.0
  %101 = vmatpush1.msra.mxu0 0.0
  %102 = vmatprep.subr.mxu0 0.0
  %103 = vmatpush1.msra.mxu0 0.0
  %104 = vmatprep.subr.mxu0 0.0
  %105 = vmatpush1.msra.mxu0 0.0
  %106 = vmatprep.subr.mxu0 0.0
  %107 = vmatpush1.msra.mxu0 0.0
  %108 = vmatprep.subr.mxu0 0.0
  %109 = vmatpush1.msra.mxu0 0.0
  %110 = vmatprep.subr.mxu0 0.0
  %111 = vmatpush1.msra.mxu0 0.0
  %112 = vmatprep.subr.mxu0 0.0
  %113 = vmatpush1.msra.mxu0 0.0
  %114 = vmatprep.subr.mxu0 0.0
  %115 = vmatpush1.msra.mxu0 0.0
  %116 = vmatprep.subr.mxu0 0.0
  %117 = vmatpush1.msra.mxu0 0.0
  %118 = vmatprep.subr.mxu0 0.0
  %119 = vmatpush1.msra.mxu0 0.0
  %120 = vmatprep.subr.mxu0 0.0
  %121 = vmatpush1.msra.mxu0 0.0
  %122 = vmatprep.subr.mxu0 0.0
  %123 = vmatpush1.msra.mxu0 0.0
  %124 = vmatprep.mubr.f32.mxu0 0.0
  %125 = vmatmul.mubr.f32.gmra.mrb[0].mxu0 %v40
  %v126 = vpop.f32.mrb[0].mxu0
  %v127 = vadd.f32 0.0, %v126
  %v128 = vpop.f32.mrb[0].mxu0
  %129 = vmatprep.mubr.f32.mxu0 0.0
  %130 = vmatmul.mubr.f32.gmra.mrb[0].mxu0 %v41
  %v131 = vpop.f32.mrb[0].mxu0
  %v132 = vadd.f32 0.0, %v131
  %v133 = vpop.f32.mrb[0].mxu0
  %134 = vmatprep.mubr.f32.mxu0 0.0
  %135 = vmatmul.mubr.f32.gmra.mrb[0].mxu0 %v42
  %v136 = vpop.f32.mrb[0].mxu0
  %v137 = vadd.f32 0.0, %v136
  %v138 = vpop.f32.mrb[0].mxu0
  %139 = vmatprep.mubr.f32.mxu0 0.0
  %140 = vmatmul.mubr.f32.gmra.mrb[0].mxu0 %v43
  %v141 = vpop.f32.mrb[0].mxu0
  %v142 = vadd.f32 0.0, %v141
  %v143 = vpop.f32.mrb[0].mxu0
  %144 = vdwg.mxu0
  %v145 = vmul.f32 %v127, 11.313708
  %v146 = vmul.f32 %v132, 11.313708
  %v147 = vmul.f32 %v137, 11.313708
  %v148 = vmul.f32 %v142, 11.313708
  %v149 = vld [vmem:[%s2] sm:$0xff]
  %v150 = vld [vmem:[%s2 + $0x8] sm:$0xff]
  %v151 = vld [vmem:[%s2 + $0x10] sm:$0xff]
  %v152 = vld [vmem:[%s2 + $0x18] sm:$0xff]
  %v153 = vadd.f32 %v145, %v149
  %v154 = vadd.f32 %v146, %v150
  %v155 = vadd.f32 %v147, %v151
  %v156 = vadd.f32 %v148, %v152
  %157 = vst [vmem:[%s3] sm:$0xff] %v153
  %158 = vst [vmem:[%s3 + $0x8] sm:$0xff] %v154
  %159 = vst [vmem:[%s3 + $0x10] sm:$0xff] %v155
  %160 = vst [vmem:[%s3 + $0x18] sm:$0xff] %v156
  // Predicated region
  $region14: #{encoder_decoder_forward.72} parent=0 // pred_check
    _
  $region15: #{encoder_decoder_forward.72} parent=0 // pred_check_branch
    %162 = sbr.rel (0) target = $region17
  $region16: #{encoder_decoder_forward.72} parent=0 // pred_region
    _
  $region17: #{encoder_decoder_forward.72} parent=0 // pred_fallthru
    _
  // Predicated region
  $region18: #{encoder_decoder_forward.72} parent=0 // pred_check
    _
  $region19: #{encoder_decoder_forward.72} parent=0 // pred_check_branch
    %164 = sbr.rel (0) target = $region21
  $region20: #{encoder_decoder_forward.72} parent=0 // pred_region
    _
  $region21: #{encoder_decoder_forward.72} parent=0 // pred_fallthru
    _

// kernel: encoder_decoder_forward.73
$region0: #{encoder_decoder_forward.73}
  #allocation0 [shape = 'u32[]', space=smem, size = 0x4, offset = 0x4, fixed_abs, tag = 'smem constant byte address 0x4 - core index']
  #allocation1 [shape = 'u32[144,128]{1,0:T(1,128)}', space=vmem, size = 0x12000, scoped, tag = 'internal scratch']
  %s0 = inlined_call_operand.vmem [shape: f32[32,128], index: 0, kind: input, shape index: {}]
  %s1 = inlined_call_operand.vmem [shape: f32[1,128], index: 1, kind: input, shape index: {}]
  %s2 = inlined_call_operand.vmem [shape: f32[1,128], index: 2, kind: input, shape index: {}]
  %s3 = inlined_call_operand.vmem [shape: f32[32,128], index: 3, kind: output, shape index: {}]
  %s4 = sld [smem:[#allocation0]]
  $region22: #{encoder_decoder_forward.73} parent=0
    _
  %s6 = ssub.s32 1, %s4
  %s7 = scalar_select 0, %s6, %s4
  // Predicated region
  $region2: #{encoder_decoder_forward.73} parent=0 // pred_check
    _
  $region3: #{encoder_decoder_forward.73} parent=0 // pred_check_branch
    %9 = sbr.rel (0) target = $region5
  $region4: #{encoder_decoder_forward.73} parent=0 // pred_region
    _
  $region5: #{encoder_decoder_forward.73} parent=0 // pred_fallthru
    _
  // Predicated region
  $region6: #{encoder_decoder_forward.73} parent=0 // pred_check
    _
  $region7: #{encoder_decoder_forward.73} parent=0 // pred_check_branch
    %11 = sbr.rel (0) target = $region9
  $region8: #{encoder_decoder_forward.73} parent=0 // pred_region
    _
  $region9: #{encoder_decoder_forward.73} parent=0 // pred_fallthru
    _
  // Predicated region
  $region10: #{encoder_decoder_forward.73} parent=0 // pred_check
    _
  $region11: #{encoder_decoder_forward.73} parent=0 // pred_check_branch
    %13 = sbr.rel (0) target = $region13
  $region12: #{encoder_decoder_forward.73} parent=0 // pred_region
    _
  $region13: #{encoder_decoder_forward.73} parent=0 // pred_fallthru
    _
  %v14 = vld [vmem:[%s0] sm:$0xff]
  %v15 = vld [vmem:[%s0 + $0x8] sm:$0xff]
  %v16 = vld [vmem:[%s0 + $0x10] sm:$0xff]
  %v17 = vld [vmem:[%s0 + $0x18] sm:$0xff]
  %18 = vadd.xlane.f32.xlu0 %v14
  %v19 = vpop.xlane.xlu0 %18
  %20 = vadd.xlane.f32.xlu0 %v15
  %v21 = vpop.xlane.xlu0 %20
  %22 = vadd.xlane.f32.xlu0 %v16
  %v23 = vpop.xlane.xlu0 %22
  %24 = vadd.xlane.f32.xlu0 %v17
  %v25 = vpop.xlane.xlu0 %24
  %v26 = vrcp.pop 128.0
  %v27 = vmul.f32 %v19, %v26
  %v28 = vmul.f32 %v21, %v26
  %v29 = vmul.f32 %v23, %v26
  %v30 = vmul.f32 %v25, %v26
  %v31 = vsub.f32 %v14, %v27
  %v32 = vsub.f32 %v15, %v28
  %v33 = vsub.f32 %v16, %v29
  %v34 = vsub.f32 %v17, %v30
  %v35 = vmul.f32 %v31, %v31
  %v36 = vmul.f32 %v32, %v32
  %v37 = vmul.f32 %v33, %v33
  %v38 = vmul.f32 %v34, %v34
  %39 = vadd.xlane.f32.xlu0 %v35
  %v40 = vpop.xlane.xlu0 %39
  %41 = vadd.xlane.f32.xlu0 %v36
  %v42 = vpop.xlane.xlu0 %41
  %43 = vadd.xlane.f32.xlu0 %v37
  %v44 = vpop.xlane.xlu0 %43
  %45 = vadd.xlane.f32.xlu0 %v38
  %v46 = vpop.xlane.xlu0 %45
  %v47 = vmul.f32 %v40, %v26
  %v48 = vmul.f32 %v42, %v26
  %v49 = vmul.f32 %v44, %v26
  %v50 = vmul.f32 %v46, %v26
  %v51 = vadd.f32 %v47, 1e-06
  %v52 = vadd.f32 %v48, 1e-06
  %v53 = vadd.f32 %v49, 1e-06
  %v54 = vadd.f32 %v50, 1e-06
  %v55 = vrsqrt.pop %v51
  %v56 = vrsqrt.pop %v52
  %v57 = vrsqrt.pop %v53
  %v58 = vrsqrt.pop %v54
  %v59 = vmul.f32 %v31, %v55
  %v60 = vmul.f32 %v32, %v56
  %v61 = vmul.f32 %v33, %v57
  %v62 = vmul.f32 %v34, %v58
  %v63 = vld [vmem:[%s1] sm:$0x1]
  %v65 = vlaneseq
  %v66 = vshrl.u32 %v65, 7
  %v67 = vsub.s32 0, %v66
  %v68 = vrot.slane %v63, %v67
  %v70 = vmul.f32 %v59, %v68
  %v71 = vmul.f32 %v60, %v68
  %v72 = vmul.f32 %v61, %v68
  %v73 = vmul.f32 %v62, %v68
  %v74 = vld [vmem:[%s2] sm:$0x1]
  %v76 = vlaneseq
  %v77 = vshrl.u32 %v76, 7
  %v78 = vsub.s32 0, %v77
  %v79 = vrot.slane %v74, %v78
  %v81 = vadd.f32 %v70, %v79
  %v82 = vadd.f32 %v71, %v79
  %v83 = vadd.f32 %v72, %v79
  %v84 = vadd.f32 %v73, %v79
  %85 = vst [vmem:[%s3] sm:$0xff] %v81
  %86 = vst [vmem:[%s3 + $0x8] sm:$0xff] %v82
  %87 = vst [vmem:[%s3 + $0x10] sm:$0xff] %v83
  %88 = vst [vmem:[%s3 + $0x18] sm:$0xff] %v84
  // Predicated region
  $region14: #{encoder_decoder_forward.73} parent=0 // pred_check
    _
  $region15: #{encoder_decoder_forward.73} parent=0 // pred_check_branch
    %90 = sbr.rel (0) target = $region17
  $region16: #{encoder_decoder_forward.73} parent=0 // pred_region
    _
  $region17: #{encoder_decoder_forward.73} parent=0 // pred_fallthru
    _
  // Predicated region
  $region18: #{encoder_decoder_forward.73} parent=0 // pred_check
    _
  $region19: #{encoder_decoder_forward.73} parent=0 // pred_check_branch
    %92 = sbr.rel (0) target = $region21
  $region20: #{encoder_decoder_forward.73} parent=0 // pred_region
    _
  $region21: #{encoder_decoder_forward.73} parent=0 // pred_fallthru
    _

// kernel: encoder_decoder_forward.74
$region0: #{encoder_decoder_forward.74}
  #allocation0 [shape = 'u32[]', space=smem, size = 0x4, offset = 0x4, fixed_abs, tag = 'smem constant byte address 0x4 - core index']
  #allocation1 [shape = 'u32[144,128]{1,0:T(1,128)}', space=vmem, size = 0x12000, scoped, tag = 'internal scratch']
  %s0 = inlined_call_operand.vmem [shape: f32[32,128], index: 0, kind: input, shape index: {}]
  %s1 = inlined_call_operand.vmem [shape: f32[128,128], index: 1, kind: input, shape index: {}]
  %s2 = inlined_call_operand.vmem [shape: f32[1,128], index: 2, kind: input, shape index: {}]
  %s3 = inlined_call_operand.vmem [shape: f32[32,128], index: 3, kind: output, shape index: {}]
  %s4 = sld [smem:[#allocation0]]
  $region22: #{encoder_decoder_forward.74} parent=0
    _
  %s6 = ssub.s32 1, %s4
  %s7 = scalar_select 0, %s6, %s4
  // Predicated region
  $region2: #{encoder_decoder_forward.74} parent=0 // pred_check
    _
  $region3: #{encoder_decoder_forward.74} parent=0 // pred_check_branch
    %9 = sbr.rel (0) target = $region5
  $region4: #{encoder_decoder_forward.74} parent=0 // pred_region
    _
  $region5: #{encoder_decoder_forward.74} parent=0 // pred_fallthru
    _
  // Predicated region
  $region6: #{encoder_decoder_forward.74} parent=0 // pred_check
    _
  $region7: #{encoder_decoder_forward.74} parent=0 // pred_check_branch
    %11 = sbr.rel (0) target = $region9
  $region8: #{encoder_decoder_forward.74} parent=0 // pred_region
    _
  $region9: #{encoder_decoder_forward.74} parent=0 // pred_fallthru
    _
  // Predicated region
  $region10: #{encoder_decoder_forward.74} parent=0 // pred_check
    _
  $region11: #{encoder_decoder_forward.74} parent=0 // pred_check_branch
    %13 = sbr.rel (0) target = $region13
  $region12: #{encoder_decoder_forward.74} parent=0 // pred_region
    _
  $region13: #{encoder_decoder_forward.74} parent=0 // pred_fallthru
    _
  %v14 = vld [vmem:[%s0] sm:$0xff]
  %v15 = vld [vmem:[%s0 + $0x8] sm:$0xff]
  %v16 = vld [vmem:[%s0 + $0x10] sm:$0xff]
  %v17 = vld [vmem:[%s0 + $0x18] sm:$0xff]
  %v18 = vld [vmem:[%s1] sm:$0xff]
  %v19 = vld [vmem:[%s1 + $0x8] sm:$0xff]
  %v20 = vld [vmem:[%s1 + $0x10] sm:$0xff]
  %v21 = vld [vmem:[%s1 + $0x18] sm:$0xff]
  %v22 = vld [vmem:[%s1 + $0x20] sm:$0xff]
  %v23 = vld [vmem:[%s1 + $0x28] sm:$0xff]
  %v24 = vld [vmem:[%s1 + $0x30] sm:$0xff]
  %v25 = vld [vmem:[%s1 + $0x38] sm:$0xff]
  %v26 = vld [vmem:[%s1 + $0x40] sm:$0xff]
  %v27 = vld [vmem:[%s1 + $0x48] sm:$0xff]
  %v28 = vld [vmem:[%s1 + $0x50] sm:$0xff]
  %v29 = vld [vmem:[%s1 + $0x58] sm:$0xff]
  %v30 = vld [vmem:[%s1 + $0x60] sm:$0xff]
  %v31 = vld [vmem:[%s1 + $0x68] sm:$0xff]
  %v32 = vld [vmem:[%s1 + $0x70] sm:$0xff]
  %v33 = vld [vmem:[%s1 + $0x78] sm:$0xff]
  %v34 = vld [vmem:[%s2] sm:$0x1]
  %v36 = vlaneseq
  %v37 = vshrl.u32 %v36, 7
  %v38 = vsub.s32 0, %v37
  %v39 = vrot.slane %v34, %v38
  %41 = vmatprep.subr.mxu0 0.0
  %42 = vmatpush1.msra.mxu0 %v18
  %43 = vmatprep.subr.mxu0 0.0
  %44 = vmatpush1.msra.mxu0 %v19
  %45 = vmatprep.subr.mxu0 0.0
  %46 = vmatpush1.msra.mxu0 %v20
  %47 = vmatprep.subr.mxu0 0.0
  %48 = vmatpush1.msra.mxu0 %v21
  %49 = vmatprep.subr.mxu0 0.0
  %50 = vmatpush1.msra.mxu0 %v22
  %51 = vmatprep.subr.mxu0 0.0
  %52 = vmatpush1.msra.mxu0 %v23
  %53 = vmatprep.subr.mxu0 0.0
  %54 = vmatpush1.msra.mxu0 %v24
  %55 = vmatprep.subr.mxu0 0.0
  %56 = vmatpush1.msra.mxu0 %v25
  %57 = vmatprep.subr.mxu0 0.0
  %58 = vmatpush1.msra.mxu0 %v26
  %59 = vmatprep.subr.mxu0 0.0
  %60 = vmatpush1.msra.mxu0 %v27
  %61 = vmatprep.subr.mxu0 0.0
  %62 = vmatpush1.msra.mxu0 %v28
  %63 = vmatprep.subr.mxu0 0.0
  %64 = vmatpush1.msra.mxu0 %v29
  %65 = vmatprep.subr.mxu0 0.0
  %66 = vmatpush1.msra.mxu0 %v30
  %67 = vmatprep.subr.mxu0 0.0
  %68 = vmatpush1.msra.mxu0 %v31
  %69 = vmatprep.subr.mxu0 0.0
  %70 = vmatpush1.msra.mxu0 %v32
  %71 = vmatprep.subr.mxu0 0.0
  %72 = vmatpush1.msra.mxu0 %v33
  %73 = vmatprep.subr.mxu0 0.0
  %74 = vmatpush1.msra.mxu0 0.0
  %75 = vmatprep.subr.mxu0 0.0
  %76 = vmatpush1.msra.mxu0 0.0
  %77 = vmatprep.subr.mxu0 0.0
  %78 = vmatpush1.msra.mxu0 0.0
  %79 = vmatprep.subr.mxu0 0.0
  %80 = vmatpush1.msra.mxu0 0.0
  %81 = vmatprep.subr.mxu0 0.0
  %82 = vmatpush1.msra.mxu0 0.0
  %83 = vmatprep.subr.mxu0 0.0
  %84 = vmatpush1.msra.mxu0 0.0
  %85 = vmatprep.subr.mxu0 0.0
  %86 = vmatpush1.msra.mxu0 0.0
  %87 = vmatprep.subr.mxu0 0.0
  %88 = vmatpush1.msra.mxu0 0.0
  %89 = vmatprep.subr.mxu0 0.0
  %90 = vmatpush1.msra.mxu0 0.0
  %91 = vmatprep.subr.mxu0 0.0
  %92 = vmatpush1.msra.mxu0 0.0
  %93 = vmatprep.subr.mxu0 0.0
  %94 = vmatpush1.msra.mxu0 0.0
  %95 = vmatprep.subr.mxu0 0.0
  %96 = vmatpush1.msra.mxu0 0.0
  %97 = vmatprep.subr.mxu0 0.0
  %98 = vmatpush1.msra.mxu0 0.0
  %99 = vmatprep.subr.mxu0 0.0
  %100 = vmatpush1.msra.mxu0 0.0
  %101 = vmatprep.subr.mxu0 0.0
  %102 = vmatpush1.msra.mxu0 0.0
  %103 = vmatprep.subr.mxu0 0.0
  %104 = vmatpush1.msra.mxu0 0.0
  %105 = vmatprep.mubr.f32.mxu0 0.0
  %106 = vmatmul.mubr.f32.gmra.mrb[0].mxu0 %v14
  %v107 = vpop.f32.mrb[0].mxu0
  %v108 = vadd.f32 %v39, %v107
  %v109 = vpop.f32.mrb[0].mxu0
  %110 = vmatprep.mubr.f32.mxu0 0.0
  %111 = vmatmul.mubr.f32.gmra.mrb[0].mxu0 %v15
  %v112 = vpop.f32.mrb[0].mxu0
  %v113 = vadd.f32 %v39, %v112
  %v114 = vpop.f32.mrb[0].mxu0
  %115 = vmatprep.mubr.f32.mxu0 0.0
  %116 = vmatmul.mubr.f32.gmra.mrb[0].mxu0 %v16
  %v117 = vpop.f32.mrb[0].mxu0
  %v118 = vadd.f32 %v39, %v117
  %v119 = vpop.f32.mrb[0].mxu0
  %120 = vmatprep.mubr.f32.mxu0 0.0
  %121 = vmatmul.mubr.f32.gmra.mrb[0].mxu0 %v17
  %v122 = vpop.f32.mrb[0].mxu0
  %v123 = vadd.f32 %v39, %v122
  %v124 = vpop.f32.mrb[0].mxu0
  %125 = vdwg.mxu0
  %126 = vst [vmem:[%s3] sm:$0xff] %v108
  %127 = vst [vmem:[%s3 + $0x8] sm:$0xff] %v113
  %128 = vst [vmem:[%s3 + $0x10] sm:$0xff] %v118
  %129 = vst [vmem:[%s3 + $0x18] sm:$0xff] %v123
  // Predicated region
  $region14: #{encoder_decoder_forward.74} parent=0 // pred_check
    _
  $region15: #{encoder_decoder_forward.74} parent=0 // pred_check_branch
    %131 = sbr.rel (0) target = $region17
  $region16: #{encoder_decoder_forward.74} parent=0 // pred_region
    _
  $region17: #{encoder_decoder_forward.74} parent=0 // pred_fallthru
    _
  // Predicated region
  $region18: #{encoder_decoder_forward.74} parent=0 // pred_check
    _
  $region19: #{encoder_decoder_forward.74} parent=0 // pred_check_branch
    %133 = sbr.rel (0) target = $region21
  $region20: #{encoder_decoder_forward.74} parent=0 // pred_region
    _
  $region21: #{encoder_decoder_forward.74} parent=0 // pred_fallthru
    _

// kernel: encoder_decoder_forward.53
$region0: #{encoder_decoder_forward.53}
  #allocation0 [shape = 'u32[]', space=smem, size = 0x4, offset = 0x4, fixed_abs, tag = 'smem constant byte address 0x4 - core index']
  #allocation1 [shape = 'u32[144,128]{1,0:T(1,128)}', space=vmem, size = 0x12000, scoped, tag = 'internal scratch']
  %s0 = inlined_call_operand.vmem [shape: f32[16,128], index: 0, kind: input, shape index: {}]
  %s1 = inlined_call_operand.vmem [shape: f32[1,128], index: 1, kind: input, shape index: {}]
  %s2 = inlined_call_operand.vmem [shape: f32[1,128], index: 2, kind: input, shape index: {}]
  %s3 = inlined_call_operand.vmem [shape: f32[16,128], index: 3, kind: output, shape index: {}]
  %s4 = sld [smem:[#allocation0]]
  $region22: #{encoder_decoder_forward.53} parent=0
    _
  %s6 = ssub.s32 1, %s4
  %s7 = scalar_select 0, %s6, %s4
  // Predicated region
  $region2: #{encoder_decoder_forward.53} parent=0 // pred_check
    _
  $region3: #{encoder_decoder_forward.53} parent=0 // pred_check_branch
    %9 = sbr.rel (0) target = $region5
  $region4: #{encoder_decoder_forward.53} parent=0 // pred_region
    _
  $region5: #{encoder_decoder_forward.53} parent=0 // pred_fallthru
    _
  // Predicated region
  $region6: #{encoder_decoder_forward.53} parent=0 // pred_check
    _
  $region7: #{encoder_decoder_forward.53} parent=0 // pred_check_branch
    %11 = sbr.rel (0) target = $region9
  $region8: #{encoder_decoder_forward.53} parent=0 // pred_region
    _
  $region9: #{encoder_decoder_forward.53} parent=0 // pred_fallthru
    _
  // Predicated region
  $region10: #{encoder_decoder_forward.53} parent=0 // pred_check
    _
  $region11: #{encoder_decoder_forward.53} parent=0 // pred_check_branch
    %13 = sbr.rel (0) target = $region13
  $region12: #{encoder_decoder_forward.53} parent=0 // pred_region
    _
  $region13: #{encoder_decoder_forward.53} parent=0 // pred_fallthru
    _
  %v14 = vld [vmem:[%s0] sm:$0xff]
  %v15 = vld [vmem:[%s0 + $0x8] sm:$0xff]
  %16 = vadd.xlane.f32.xlu0 %v14
  %v17 = vpop.xlane.xlu0 %16
  %18 = vadd.xlane.f32.xlu0 %v15
  %v19 = vpop.xlane.xlu0 %18
  %v20 = vrcp.pop 128.0
  %v21 = vmul.f32 %v17, %v20
  %v22 = vmul.f32 %v19, %v20
  %v23 = vsub.f32 %v14, %v21
  %v24 = vsub.f32 %v15, %v22
  %v25 = vmul.f32 %v23, %v23
  %v26 = vmul.f32 %v24, %v24
  %27 = vadd.xlane.f32.xlu0 %v25
  %v28 = vpop.xlane.xlu0 %27
  %29 = vadd.xlane.f32.xlu0 %v26
  %v30 = vpop.xlane.xlu0 %29
  %v31 = vmul.f32 %v28, %v20
  %v32 = vmul.f32 %v30, %v20
  %v33 = vadd.f32 %v31, 1e-06
  %v34 = vadd.f32 %v32, 1e-06
  %v35 = vrsqrt.pop %v33
  %v36 = vrsqrt.pop %v34
  %v37 = vmul.f32 %v23, %v35
  %v38 = vmul.f32 %v24, %v36
  %v39 = vld [vmem:[%s1] sm:$0x1]
  %v41 = vlaneseq
  %v42 = vshrl.u32 %v41, 7
  %v43 = vsub.s32 0, %v42
  %v44 = vrot.slane %v39, %v43
  %v46 = vmul.f32 %v37, %v44
  %v47 = vmul.f32 %v38, %v44
  %v48 = vld [vmem:[%s2] sm:$0x1]
  %v50 = vlaneseq
  %v51 = vshrl.u32 %v50, 7
  %v52 = vsub.s32 0, %v51
  %v53 = vrot.slane %v48, %v52
  %v55 = vadd.f32 %v46, %v53
  %v56 = vadd.f32 %v47, %v53
  %57 = vst [vmem:[%s3] sm:$0xff] %v55
  %58 = vst [vmem:[%s3 + $0x8] sm:$0xff] %v56
  // Predicated region
  $region14: #{encoder_decoder_forward.53} parent=0 // pred_check
    _
  $region15: #{encoder_decoder_forward.53} parent=0 // pred_check_branch
    %60 = sbr.rel (0) target = $region17
  $region16: #{encoder_decoder_forward.53} parent=0 // pred_region
    _
  $region17: #{encoder_decoder_forward.53} parent=0 // pred_fallthru
    _
  // Predicated region
  $region18: #{encoder_decoder_forward.53} parent=0 // pred_check
    _
  $region19: #{encoder_decoder_forward.53} parent=0 // pred_check_branch
    %62 = sbr.rel (0) target = $region21
  $region20: #{encoder_decoder_forward.53} parent=0 // pred_region
    _
  $region21: #{encoder_decoder_forward.53} parent=0 // pred_fallthru
    _

// kernel: encoder_decoder_forward.78
$region0: #{encoder_decoder_forward.78}
  #allocation0 [shape = 'u32[]', space=smem, size = 0x4, offset = 0x4, fixed_abs, tag = 'smem constant byte address 0x4 - core index']
  #allocation1 [shape = 'u32[144,128]{1,0:T(1,128)}', space=vmem, size = 0x12000, scoped, tag = 'internal scratch']
  %s0 = inlined_call_operand.vmem [shape: f32[32,128], index: 0, kind: input, shape index: {}]
  %s1 = inlined_call_operand.vmem [shape: f32[128,128], index: 1, kind: input, shape index: {}]
  %s2 = inlined_call_operand.vmem [shape: f32[1,128], index: 2, kind: input, shape index: {}]
  %s3 = inlined_call_operand.vmem [shape: f32[32,128], index: 3, kind: input, shape index: {}]
  %s4 = inlined_call_operand.vmem [shape: f32[32,128], index: 4, kind: output, shape index: {}]
  %s5 = sld [smem:[#allocation0]]
  $region26: #{encoder_decoder_forward.78} parent=0
    _
  %s7 = ssub.s32 1, %s5
  %s8 = scalar_select 0, %s7, %s5
  // Predicated region
  $region2: #{encoder_decoder_forward.78} parent=0 // pred_check
    _
  $region3: #{encoder_decoder_forward.78} parent=0 // pred_check_branch
    %10 = sbr.rel (0) target = $region5
  $region4: #{encoder_decoder_forward.78} parent=0 // pred_region
    _
  $region5: #{encoder_decoder_forward.78} parent=0 // pred_fallthru
    _
  // Predicated region
  $region6: #{encoder_decoder_forward.78} parent=0 // pred_check
    _
  $region7: #{encoder_decoder_forward.78} parent=0 // pred_check_branch
    %12 = sbr.rel (0) target = $region9
  $region8: #{encoder_decoder_forward.78} parent=0 // pred_region
    _
  $region9: #{encoder_decoder_forward.78} parent=0 // pred_fallthru
    _
  // Predicated region
  $region10: #{encoder_decoder_forward.78} parent=0 // pred_check
    _
  $region11: #{encoder_decoder_forward.78} parent=0 // pred_check_branch
    %14 = sbr.rel (0) target = $region13
  $region12: #{encoder_decoder_forward.78} parent=0 // pred_region
    _
  $region13: #{encoder_decoder_forward.78} parent=0 // pred_fallthru
    _
  // Predicated region
  $region14: #{encoder_decoder_forward.78} parent=0 // pred_check
    _
  $region15: #{encoder_decoder_forward.78} parent=0 // pred_check_branch
    %16 = sbr.rel (0) target = $region17
  $region16: #{encoder_decoder_forward.78} parent=0 // pred_region
    _
  $region17: #{encoder_decoder_forward.78} parent=0 // pred_fallthru
    _
  %v17 = vld [vmem:[%s0] sm:$0xff]
  %v18 = vld [vmem:[%s0 + $0x8] sm:$0xff]
  %v19 = vld [vmem:[%s0 + $0x10] sm:$0xff]
  %v20 = vld [vmem:[%s0 + $0x18] sm:$0xff]
  %v21 = vld [vmem:[%s1] sm:$0xff]
  %v22 = vld [vmem:[%s1 + $0x8] sm:$0xff]
  %v23 = vld [vmem:[%s1 + $0x10] sm:$0xff]
  %v24 = vld [vmem:[%s1 + $0x18] sm:$0xff]
  %v25 = vld [vmem:[%s1 + $0x20] sm:$0xff]
  %v26 = vld [vmem:[%s1 + $0x28] sm:$0xff]
  %v27 = vld [vmem:[%s1 + $0x30] sm:$0xff]
  %v28 = vld [vmem:[%s1 + $0x38] sm:$0xff]
  %v29 = vld [vmem:[%s1 + $0x40] sm:$0xff]
  %v30 = vld [vmem:[%s1 + $0x48] sm:$0xff]
  %v31 = vld [vmem:[%s1 + $0x50] sm:$0xff]
  %v32 = vld [vmem:[%s1 + $0x58] sm:$0xff]
  %v33 = vld [vmem:[%s1 + $0x60] sm:$0xff]
  %v34 = vld [vmem:[%s1 + $0x68] sm:$0xff]
  %v35 = vld [vmem:[%s1 + $0x70] sm:$0xff]
  %v36 = vld [vmem:[%s1 + $0x78] sm:$0xff]
  %v37 = vld [vmem:[%s2] sm:$0x1]
  %v39 = vlaneseq
  %v40 = vshrl.u32 %v39, 7
  %v41 = vsub.s32 0, %v40
  %v42 = vrot.slane %v37, %v41
  %44 = vmatprep.subr.mxu0 0.0
  %45 = vmatpush1.msra.mxu0 %v21
  %46 = vmatprep.subr.mxu0 0.0
  %47 = vmatpush1.msra.mxu0 %v22
  %48 = vmatprep.subr.mxu0 0.0
  %49 = vmatpush1.msra.mxu0 %v23
  %50 = vmatprep.subr.mxu0 0.0
  %51 = vmatpush1.msra.mxu0 %v24
  %52 = vmatprep.subr.mxu0 0.0
  %53 = vmatpush1.msra.mxu0 %v25
  %54 = vmatprep.subr.mxu0 0.0
  %55 = vmatpush1.msra.mxu0 %v26
  %56 = vmatprep.subr.mxu0 0.0
  %57 = vmatpush1.msra.mxu0 %v27
  %58 = vmatprep.subr.mxu0 0.0
  %59 = vmatpush1.msra.mxu0 %v28
  %60 = vmatprep.subr.mxu0 0.0
  %61 = vmatpush1.msra.mxu0 %v29
  %62 = vmatprep.subr.mxu0 0.0
  %63 = vmatpush1.msra.mxu0 %v30
  %64 = vmatprep.subr.mxu0 0.0
  %65 = vmatpush1.msra.mxu0 %v31
  %66 = vmatprep.subr.mxu0 0.0
  %67 = vmatpush1.msra.mxu0 %v32
  %68 = vmatprep.subr.mxu0 0.0
  %69 = vmatpush1.msra.mxu0 %v33
  %70 = vmatprep.subr.mxu0 0.0
  %71 = vmatpush1.msra.mxu0 %v34
  %72 = vmatprep.subr.mxu0 0.0
  %73 = vmatpush1.msra.mxu0 %v35
  %74 = vmatprep.subr.mxu0 0.0
  %75 = vmatpush1.msra.mxu0 %v36
  %76 = vmatprep.subr.mxu0 0.0
  %77 = vmatpush1.msra.mxu0 0.0
  %78 = vmatprep.subr.mxu0 0.0
  %79 = vmatpush1.msra.mxu0 0.0
  %80 = vmatprep.subr.mxu0 0.0
  %81 = vmatpush1.msra.mxu0 0.0
  %82 = vmatprep.subr.mxu0 0.0
  %83 = vmatpush1.msra.mxu0 0.0
  %84 = vmatprep.subr.mxu0 0.0
  %85 = vmatpush1.msra.mxu0 0.0
  %86 = vmatprep.subr.mxu0 0.0
  %87 = vmatpush1.msra.mxu0 0.0
  %88 = vmatprep.subr.mxu0 0.0
  %89 = vmatpush1.msra.mxu0 0.0
  %90 = vmatprep.subr.mxu0 0.0
  %91 = vmatpush1.msra.mxu0 0.0
  %92 = vmatprep.subr.mxu0 0.0
  %93 = vmatpush1.msra.mxu0 0.0
  %94 = vmatprep.subr.mxu0 0.0
  %95 = vmatpush1.msra.mxu0 0.0
  %96 = vmatprep.subr.mxu0 0.0
  %97 = vmatpush1.msra.mxu0 0.0
  %98 = vmatprep.subr.mxu0 0.0
  %99 = vmatpush1.msra.mxu0 0.0
  %100 = vmatprep.subr.mxu0 0.0
  %101 = vmatpush1.msra.mxu0 0.0
  %102 = vmatprep.subr.mxu0 0.0
  %103 = vmatpush1.msra.mxu0 0.0
  %104 = vmatprep.subr.mxu0 0.0
  %105 = vmatpush1.msra.mxu0 0.0
  %106 = vmatprep.subr.mxu0 0.0
  %107 = vmatpush1.msra.mxu0 0.0
  %108 = vmatprep.mubr.f32.mxu0 0.0
  %109 = vmatmul.mubr.f32.gmra.mrb[0].mxu0 %v17
  %v110 = vpop.f32.mrb[0].mxu0
  %v111 = vadd.f32 %v42, %v110
  %v112 = vpop.f32.mrb[0].mxu0
  %113 = vmatprep.mubr.f32.mxu0 0.0
  %114 = vmatmul.mubr.f32.gmra.mrb[0].mxu0 %v18
  %v115 = vpop.f32.mrb[0].mxu0
  %v116 = vadd.f32 %v42, %v115
  %v117 = vpop.f32.mrb[0].mxu0
  %118 = vmatprep.mubr.f32.mxu0 0.0
  %119 = vmatmul.mubr.f32.gmra.mrb[0].mxu0 %v19
  %v120 = vpop.f32.mrb[0].mxu0
  %v121 = vadd.f32 %v42, %v120
  %v122 = vpop.f32.mrb[0].mxu0
  %123 = vmatprep.mubr.f32.mxu0 0.0
  %124 = vmatmul.mubr.f32.gmra.mrb[0].mxu0 %v20
  %v125 = vpop.f32.mrb[0].mxu0
  %v126 = vadd.f32 %v42, %v125
  %v127 = vpop.f32.mrb[0].mxu0
  %128 = vdwg.mxu0
  %v129 = vld [vmem:[%s3] sm:$0xff]
  %v130 = vld [vmem:[%s3 + $0x8] sm:$0xff]
  %v131 = vld [vmem:[%s3 + $0x10] sm:$0xff]
  %v132 = vld [vmem:[%s3 + $0x18] sm:$0xff]
  %v133 = vadd.f32 %v111, %v129
  %v134 = vadd.f32 %v116, %v130
  %v135 = vadd.f32 %v121, %v131
  %v136 = vadd.f32 %v126, %v132
  %137 = vst [vmem:[%s4] sm:$0xff] %v133
  %138 = vst [vmem:[%s4 + $0x8] sm:$0xff] %v134
  %139 = vst [vmem:[%s4 + $0x10] sm:$0xff] %v135
  %140 = vst [vmem:[%s4 + $0x18] sm:$0xff] %v136
  // Predicated region
  $region18: #{encoder_decoder_forward.78} parent=0 // pred_check
    _
  $region19: #{encoder_decoder_forward.78} parent=0 // pred_check_branch
    %142 = sbr.rel (0) target = $region21
  $region20: #{encoder_decoder_forward.78} parent=0 // pred_region
    _
  $region21: #{encoder_decoder_forward.78} parent=0 // pred_fallthru
    _
  // Predicated region
  $region22: #{encoder_decoder_forward.78} parent=0 // pred_check
    _
  $region23: #{encoder_decoder_forward.78} parent=0 // pred_check_branch
    %144 = sbr.rel (0) target = $region25
  $region24: #{encoder_decoder_forward.78} parent=0 // pred_region
    _
  $region25: #{encoder_decoder_forward.78} parent=0 // pred_fallthru
    _

// kernel: encoder_decoder_forward.52
$region0: #{encoder_decoder_forward.52}
  #allocation0 [shape = 'u32[]', space=smem, size = 0x4, offset = 0x4, fixed_abs, tag = 'smem constant byte address 0x4 - core index']
  #allocation1 [shape = 'u32[144,128]{1,0:T(1,128)}', space=vmem, size = 0x12000, scoped, tag = 'internal scratch']
  %s0 = inlined_call_operand.vmem [shape: s32[16,1], index: 0, kind: input, shape index: {}]
  %s1 = inlined_call_operand.vmem [shape: f32[128,128], index: 1, kind: input, shape index: {}]
  %s2 = inlined_call_operand.vmem [shape: f32[16,128], index: 2, kind: input, shape index: {}]
  %s3 = inlined_call_operand.vmem [shape: f32[16,128], index: 3, kind: output, shape index: {}]
  %s4 = sld [smem:[#allocation0]]
  $region22: #{encoder_decoder_forward.52} parent=0
    _
  %s6 = ssub.s32 1, %s4
  %s7 = scalar_select 0, %s6, %s4
  // Predicated region
  $region2: #{encoder_decoder_forward.52} parent=0 // pred_check
    _
  $region3: #{encoder_decoder_forward.52} parent=0 // pred_check_branch
    %9 = sbr.rel (0) target = $region5
  $region4: #{encoder_decoder_forward.52} parent=0 // pred_region
    _
  $region5: #{encoder_decoder_forward.52} parent=0 // pred_fallthru
    _
  // Predicated region
  $region6: #{encoder_decoder_forward.52} parent=0 // pred_check
    _
  $region7: #{encoder_decoder_forward.52} parent=0 // pred_check_branch
    %11 = sbr.rel (0) target = $region9
  $region8: #{encoder_decoder_forward.52} parent=0 // pred_region
    _
  $region9: #{encoder_decoder_forward.52} parent=0 // pred_fallthru
    _
  // Predicated region
  $region10: #{encoder_decoder_forward.52} parent=0 // pred_check
    _
  $region11: #{encoder_decoder_forward.52} parent=0 // pred_check_branch
    %13 = sbr.rel (0) target = $region13
  $region12: #{encoder_decoder_forward.52} parent=0 // pred_region
    _
  $region13: #{encoder_decoder_forward.52} parent=0 // pred_fallthru
    _
  %v14 = vld [vmem:[%s0] sm:$0xff]
  %v15 = vld [vmem:[%s0 + $0x8] sm:$0xff]
  %v16 = vlaneseq
  %v17 = vand.u32 %v16, 127
  %18 = vset.pattern.permute.xlu0 0
  %19 = vperm.xlu0 %18, %v14
  %v20 = vpop.permute.xlu0 %19
  %21 = vset.pattern.permute.xlu0 0
  %22 = vperm.xlu0 %21, %v15
  %v23 = vpop.permute.xlu0 %22
  %vm24 = vcmp.eq.s32.totalorder %v20, %v17
  %vm25 = vcmp.eq.s32.totalorder %v23, %v17
  %v26 = vsel %vm24, 1, 0
  %v27 = vsel %vm25, 1, 0
  %v28 = vcvt.s32.f32 %v26
  %v29 = vcvt.s32.f32 %v27
  %v30 = vld [vmem:[%s1] sm:$0xff]
  %v31 = vld [vmem:[%s1 + $0x8] sm:$0xff]
  %v32 = vld [vmem:[%s1 + $0x10] sm:$0xff]
  %v33 = vld [vmem:[%s1 + $0x18] sm:$0xff]
  %v34 = vld [vmem:[%s1 + $0x20] sm:$0xff]
  %v35 = vld [vmem:[%s1 + $0x28] sm:$0xff]
  %v36 = vld [vmem:[%s1 + $0x30] sm:$0xff]
  %v37 = vld [vmem:[%s1 + $0x38] sm:$0xff]
  %v38 = vld [vmem:[%s1 + $0x40] sm:$0xff]
  %v39 = vld [vmem:[%s1 + $0x48] sm:$0xff]
  %v40 = vld [vmem:[%s1 + $0x50] sm:$0xff]
  %v41 = vld [vmem:[%s1 + $0x58] sm:$0xff]
  %v42 = vld [vmem:[%s1 + $0x60] sm:$0xff]
  %v43 = vld [vmem:[%s1 + $0x68] sm:$0xff]
  %v44 = vld [vmem:[%s1 + $0x70] sm:$0xff]
  %v45 = vld [vmem:[%s1 + $0x78] sm:$0xff]
  %46 = vmatprep.subr.mxu0 0.0
  %47 = vmatpush1.msra.mxu0 %v30
  %48 = vmatprep.subr.mxu0 0.0
  %49 = vmatpush1.msra.mxu0 %v31
  %50 = vmatprep.subr.mxu0 0.0
  %51 = vmatpush1.msra.mxu0 %v32
  %52 = vmatprep.subr.mxu0 0.0
  %53 = vmatpush1.msra.mxu0 %v33
  %54 = vmatprep.subr.mxu0 0.0
  %55 = vmatpush1.msra.mxu0 %v34
  %56 = vmatprep.subr.mxu0 0.0
  %57 = vmatpush1.msra.mxu0 %v35
  %58 = vmatprep.subr.mxu0 0.0
  %59 = vmatpush1.msra.mxu0 %v36
  %60 = vmatprep.subr.mxu0 0.0
  %61 = vmatpush1.msra.mxu0 %v37
  %62 = vmatprep.subr.mxu0 0.0
  %63 = vmatpush1.msra.mxu0 %v38
  %64 = vmatprep.subr.mxu0 0.0
  %65 = vmatpush1.msra.mxu0 %v39
  %66 = vmatprep.subr.mxu0 0.0
  %67 = vmatpush1.msra.mxu0 %v40
  %68 = vmatprep.subr.mxu0 0.0
  %69 = vmatpush1.msra.mxu0 %v41
  %70 = vmatprep.subr.mxu0 0.0
  %71 = vmatpush1.msra.mxu0 %v42
  %72 = vmatprep.subr.mxu0 0.0
  %73 = vmatpush1.msra.mxu0 %v43
  %74 = vmatprep.subr.mxu0 0.0
  %75 = vmatpush1.msra.mxu0 %v44
  %76 = vmatprep.subr.mxu0 0.0
  %77 = vmatpush1.msra.mxu0 %v45
  %78 = vmatprep.subr.mxu0 0.0
  %79 = vmatpush1.msra.mxu0 0.0
  %80 = vmatprep.subr.mxu0 0.0
  %81 = vmatpush1.msra.mxu0 0.0
  %82 = vmatprep.subr.mxu0 0.0
  %83 = vmatpush1.msra.mxu0 0.0
  %84 = vmatprep.subr.mxu0 0.0
  %85 = vmatpush1.msra.mxu0 0.0
  %86 = vmatprep.subr.mxu0 0.0
  %87 = vmatpush1.msra.mxu0 0.0
  %88 = vmatprep.subr.mxu0 0.0
  %89 = vmatpush1.msra.mxu0 0.0
  %90 = vmatprep.subr.mxu0 0.0
  %91 = vmatpush1.msra.mxu0 0.0
  %92 = vmatprep.subr.mxu0 0.0
  %93 = vmatpush1.msra.mxu0 0.0
  %94 = vmatprep.subr.mxu0 0.0
  %95 = vmatpush1.msra.mxu0 0.0
  %96 = vmatprep.subr.mxu0 0.0
  %97 = vmatpush1.msra.mxu0 0.0
  %98 = vmatprep.subr.mxu0 0.0
  %99 = vmatpush1.msra.mxu0 0.0
  %100 = vmatprep.subr.mxu0 0.0
  %101 = vmatpush1.msra.mxu0 0.0
  %102 = vmatprep.subr.mxu0 0.0
  %103 = vmatpush1.msra.mxu0 0.0
  %104 = vmatprep.subr.mxu0 0.0
  %105 = vmatpush1.msra.mxu0 0.0
  %106 = vmatprep.subr.mxu0 0.0
  %107 = vmatpush1.msra.mxu0 0.0
  %108 = vmatprep.subr.mxu0 0.0
  %109 = vmatpush1.msra.mxu0 0.0
  %110 = vmatprep.mubr.f32.mxu0 0.0
  %111 = vmatmul.mubr.f32.gmra.mrb[0].mxu0 %v28
  %v112 = vpop.f32.mrb[0].mxu0
  %v113 = vadd.f32 0.0, %v112
  %v114 = vpop.f32.mrb[0].mxu0
  %115 = vmatprep.mubr.f32.mxu0 0.0
  %116 = vmatmul.mubr.f32.gmra.mrb[0].mxu0 %v29
  %v117 = vpop.f32.mrb[0].mxu0
  %v118 = vadd.f32 0.0, %v117
  %v119 = vpop.f32.mrb[0].mxu0
  %120 = vdwg.mxu0
  %v121 = vmul.f32 %v113, 11.313708
  %v122 = vmul.f32 %v118, 11.313708
  %v123 = vld [vmem:[%s2] sm:$0xff]
  %v124 = vld [vmem:[%s2 + $0x8] sm:$0xff]
  %v125 = vadd.f32 %v121, %v123
  %v126 = vadd.f32 %v122, %v124
  %127 = vst [vmem:[%s3] sm:$0xff] %v125
  %128 = vst [vmem:[%s3 + $0x8] sm:$0xff] %v126
  // Predicated region
  $region14: #{encoder_decoder_forward.52} parent=0 // pred_check
    _
  $region15: #{encoder_decoder_forward.52} parent=0 // pred_check_branch
    %130 = sbr.rel (0) target = $region17
  $region16: #{encoder_decoder_forward.52} parent=0 // pred_region
    _
  $region17: #{encoder_decoder_forward.52} parent=0 // pred_fallthru
    _
  // Predicated region
  $region18: #{encoder_decoder_forward.52} parent=0 // pred_check
    _
  $region19: #{encoder_decoder_forward.52} parent=0 // pred_check_branch
    %132 = sbr.rel (0) target = $region21
  $region20: #{encoder_decoder_forward.52} parent=0 // pred_region
    _
  $region21: #{encoder_decoder_forward.52} parent=0 // pred_fallthru
    _

// kernel: encoder_decoder_forward.77
$region0: #{encoder_decoder_forward.77}
  #allocation0 [shape = 'u32[]', space=smem, size = 0x4, offset = 0x4, fixed_abs, tag = 'smem constant byte address 0x4 - core index']
  #allocation1 [shape = 'u32[144,128]{1,0:T(1,128)}', space=vmem, size = 0x12000, scoped, tag = 'internal scratch']
  %s0 = inlined_call_operand.vmem [shape: f32[2,4,16,32], index: 0, kind: input, shape index: {}]
  %s1 = inlined_call_operand.vmem [shape: f32[2,4,16,32], index: 1, kind: input, shape index: {}]
  %s2 = inlined_call_operand.vmem [shape: f32[2,4,16,32], index: 2, kind: input, shape index: {}]
  %s3 = inlined_call_operand.vmem [shape: f32[2,16,16], index: 3, kind: input, shape index: {}]
  %s4 = inlined_call_operand.vmem [shape: f32[2,4,16,32], index: 4, kind: output, shape index: {}]
  %s5 = sld [smem:[#allocation0]]
  $region49: #{encoder_decoder_forward.77} parent=0
    _
  %s7 = ssub.s32 1, %s5
  %s8 = scalar_select 0, %s7, %s5
  loop: start=0, step=1, limit=10
  $region2: #{encoder_decoder_forward.77} parent=0 // loop_pre_header
    _
  $region3: #{encoder_decoder_forward.77} parent=0 // loop_header
    %s10 = sphi 0, %s14
    %p11 = scmp.ge.s32.totalorder %s10, 10
    %s17 = sphi 0, %s29
    %s18 = sphi 0, %s25
    %s19 = sphi 0, %s17
    %s20 = sphi 0, %s18
    %s21 = sphi 0, %s19
    %s22 = sphi 0, %s20
    %s34 = sphi 0, %s36
    %s37 = sphi 0, %s34
    %s38 = sphi 0, %s37
    %s54 = sphi 0, %s38
    %s62 = sphi 0, %s64
    %s65 = sphi 0, %s62
    %s66 = sphi 0, %s65
    %s82 = sphi 0, %s66
    %s90 = sphi 0, %s92
    %s93 = sphi 0, %s90
    %s94 = sphi 0, %s93
    %s110 = sphi 0, %s94
    %s116 = sphi 0, %s118
    %s119 = sphi 0, %s116
    %s120 = sphi 0, %s119
    %s136 = sphi 0, %s120
    %s144 = sphi 0, %s146
    %s147 = sphi 0, %s144
    %s148 = sphi 0, %s147
    %s164 = sphi 0, %s148
  $region4: #{encoder_decoder_forward.77} parent=0 // loop_header_branch
    %13 = sbr.rel (%p11) target = $region8
  $region5: #{encoder_decoder_forward.77} parent=0 // loop_body
    %s15 = ssub.s32 %s10, 1
    %s16 = ssub.s32 %s10, 2
    %s23 = sadd.s32 1, %s18
    %p24 = scmp.ge.s32.totalorder %s23, 4
    %s25 = scalar_select %p24, 0, %s23
    %s26 = sadd.s32 1, %s17
    %s27 = scalar_select %p24, %s26, %s17
    %p28 = scmp.ge.s32.totalorder %s27, 2
    %s29 = scalar_select %p28, 0, %s27
    %s30 = ssub.s32 %s17, %s29
    %s31 = ssub.s32 %s18, %s25
    %s32 = sor.u32 %s30, %s31
    %p33 = scmp.eq.s32.totalorder %s32, 0
    %s35 = sadd.s32 %s34, 1
    %s36 = scalar_select %p33, %s34, %s35
    %p39 = pneg %p33
    %p40 = scmp.eq.s32.totalorder %s10, 7
    %p41 = por %p39, %p40
    %p42 = scmp.ne.s32.totalorder %s34, %s37
    %p43 = scmp.eq.s32.totalorder %s10, 0
    %p44 = por %p42, %p43
    %p45 = scmp.ne.s32.totalorder %s34, %s37
    %p46 = scmp.eq.s32.totalorder %s15, 7
    %p47 = por %p45, %p46
    %p48 = scmp.ne.s32.totalorder %s37, %s38
    %p49 = scmp.eq.s32.totalorder %s15, 0
    %p50 = por %p48, %p49
    %p51 = scmp.ne.s32.totalorder %s37, %s38
    %p52 = scmp.eq.s32.totalorder %s16, 7
    %p53 = por %p51, %p52
    %p55 = scmp.ne.s32.totalorder %s38, %s54
    %p56 = scmp.eq.s32.totalorder %s16, 0
    %p57 = por %p55, %p56
    %s58 = ssub.s32 %s17, %s29
    %s59 = ssub.s32 %s18, %s25
    %s60 = sor.u32 %s58, %s59
    %p61 = scmp.eq.s32.totalorder %s60, 0
    %s63 = sadd.s32 %s62, 1
    %s64 = scalar_select %p61, %s62, %s63
    %p67 = pneg %p61
    %p68 = scmp.eq.s32.totalorder %s10, 7
    %p69 = por %p67, %p68
    %p70 = scmp.ne.s32.totalorder %s62, %s65
    %p71 = scmp.eq.s32.totalorder %s10, 0
    %p72 = por %p70, %p71
    %p73 = scmp.ne.s32.totalorder %s62, %s65
    %p74 = scmp.eq.s32.totalorder %s15, 7
    %p75 = por %p73, %p74
    %p76 = scmp.ne.s32.totalorder %s65, %s66
    %p77 = scmp.eq.s32.totalorder %s15, 0
    %p78 = por %p76, %p77
    %p79 = scmp.ne.s32.totalorder %s65, %s66
    %p80 = scmp.eq.s32.totalorder %s16, 7
    %p81 = por %p79, %p80
    %p83 = scmp.ne.s32.totalorder %s66, %s82
    %p84 = scmp.eq.s32.totalorder %s16, 0
    %p85 = por %p83, %p84
    %s86 = ssub.s32 %s17, %s29
    %s87 = ssub.s32 %s18, %s25
    %s88 = sor.u32 %s86, %s87
    %p89 = scmp.eq.s32.totalorder %s88, 0
    %s91 = sadd.s32 %s90, 1
    %s92 = scalar_select %p89, %s90, %s91
    %p95 = pneg %p89
    %p96 = scmp.eq.s32.totalorder %s10, 7
    %p97 = por %p95, %p96
    %p98 = scmp.ne.s32.totalorder %s90, %s93
    %p99 = scmp.eq.s32.totalorder %s10, 0
    %p100 = por %p98, %p99
    %p101 = scmp.ne.s32.totalorder %s90, %s93
    %p102 = scmp.eq.s32.totalorder %s15, 7
    %p103 = por %p101, %p102
    %p104 = scmp.ne.s32.totalorder %s93, %s94
    %p105 = scmp.eq.s32.totalorder %s15, 0
    %p106 = por %p104, %p105
    %p107 = scmp.ne.s32.totalorder %s93, %s94
    %p108 = scmp.eq.s32.totalorder %s16, 7
    %p109 = por %p107, %p108
    %p111 = scmp.ne.s32.totalorder %s94, %s110
    %p112 = scmp.eq.s32.totalorder %s16, 0
    %p113 = por %p111, %p112
    %s114 = ssub.s32 %s17, %s29
    %p115 = scmp.eq.s32.totalorder %s114, 0
    %s117 = sadd.s32 %s116, 1
    %s118 = scalar_select %p115, %s116, %s117
    %p121 = pneg %p115
    %p122 = scmp.eq.s32.totalorder %s10, 7
    %p123 = por %p121, %p122
    %p124 = scmp.ne.s32.totalorder %s116, %s119
    %p125 = scmp.eq.s32.totalorder %s10, 0
    %p126 = por %p124, %p125
    %p127 = scmp.ne.s32.totalorder %s116, %s119
    %p128 = scmp.eq.s32.totalorder %s15, 7
    %p129 = por %p127, %p128
    %p130 = scmp.ne.s32.totalorder %s119, %s120
    %p131 = scmp.eq.s32.totalorder %s15, 0
    %p132 = por %p130, %p131
    %p133 = scmp.ne.s32.totalorder %s119, %s120
    %p134 = scmp.eq.s32.totalorder %s16, 7
    %p135 = por %p133, %p134
    %p137 = scmp.ne.s32.totalorder %s120, %s136
    %p138 = scmp.eq.s32.totalorder %s16, 0
    %p139 = por %p137, %p138
    %s140 = ssub.s32 %s17, %s29
    %s141 = ssub.s32 %s18, %s25
    %s142 = sor.u32 %s140, %s141
    %p143 = scmp.eq.s32.totalorder %s142, 0
    %s145 = sadd.s32 %s144, 1
    %s146 = scalar_select %p143, %s144, %s145
    %p149 = pneg %p143
    %p150 = scmp.eq.s32.totalorder %s10, 7
    %p151 = por %p149, %p150
    %p152 = scmp.ne.s32.totalorder %s144, %s147
    %p153 = scmp.eq.s32.totalorder %s10, 0
    %p154 = por %p152, %p153
    %p155 = scmp.ne.s32.totalorder %s144, %s147
    %p156 = scmp.eq.s32.totalorder %s15, 7
    %p157 = por %p155, %p156
    %p158 = scmp.ne.s32.totalorder %s147, %s148
    %p159 = scmp.eq.s32.totalorder %s15, 0
    %p160 = por %p158, %p159
    %p161 = scmp.ne.s32.totalorder %s147, %s148
    %p162 = scmp.eq.s32.totalorder %s16, 7
    %p163 = por %p161, %p162
    %p165 = scmp.ne.s32.totalorder %s148, %s164
    %p166 = scmp.eq.s32.totalorder %s16, 0
    %p167 = por %p165, %p166
    %p168 = scmp.le.s32.totalorder 1, %s10
    %p169 = scmp.lt.s32.totalorder %s10, 9
    %p170 = pnand %p168, %p169
    %p171 = pneg %p170
    // Predicated region
    $region9: #{encoder_decoder_forward.77} parent=5 // pred_check
      _
    $region10: #{encoder_decoder_forward.77} parent=5 // pred_check_branch
      %173 = sbr.rel (%p170) target = $region12
    $region11: #{encoder_decoder_forward.77} parent=5 // pred_region
      %s174 = ssub.s32 %s10, 1
    $region12: #{encoder_decoder_forward.77} parent=5 // pred_fallthru
      _
    %p175 = scmp.lt.s32.totalorder %s10, 8
    // Predicated region
    $region13: #{encoder_decoder_forward.77} parent=5 // pred_check
      %p176 = pneg %p175
    $region14: #{encoder_decoder_forward.77} parent=5 // pred_check_branch
      %178 = sbr.rel (%p176) target = $region16
    $region15: #{encoder_decoder_forward.77} parent=5 // pred_region
      // Predicated region
      $region17: #{encoder_decoder_forward.77} parent=15 // pred_check
        %p179 = pneg %p44
      $region18: #{encoder_decoder_forward.77} parent=15 // pred_check_branch
        %181 = sbr.rel (%p179) target = $region20
      $region19: #{encoder_decoder_forward.77} parent=15 // pred_region
        %p182 = scmp.lt.s32.totalorder %s17, 1
        %s183 = scalar_select %p182, %s17, 1
        %p184 = scmp.lt.s32.totalorder %s18, 3
        %s185 = scalar_select %p184, %s18, 3
        %s186 = smul.addr %s185, 2
        %s187 = smul.addr %s183, 8
        %s188 = sadd.s32 %s186, %s187
        %s189 = smul.addr %s188, 8
        %s190 = scalar_lea.vmem %s0, %s189
      $region20: #{encoder_decoder_forward.77} parent=15 // pred_fallthru
        _
      // Predicated region
      $region21: #{encoder_decoder_forward.77} parent=15 // pred_check
        %p191 = pneg %p72
      $region22: #{encoder_decoder_forward.77} parent=15 // pred_check_branch
        %193 = sbr.rel (%p191) target = $region24
      $region23: #{encoder_decoder_forward.77} parent=15 // pred_region
        %p194 = scmp.lt.s32.totalorder %s17, 1
        %s195 = scalar_select %p194, %s17, 1
        %p196 = scmp.lt.s32.totalorder %s18, 3
        %s197 = scalar_select %p196, %s18, 3
        %s198 = smul.addr %s197, 2
        %s199 = smul.addr %s195, 8
        %s200 = sadd.s32 %s198, %s199
        %s201 = smul.addr %s200, 8
        %s202 = scalar_lea.vmem %s1, %s201
      $region24: #{encoder_decoder_forward.77} parent=15 // pred_fallthru
        _
      // Predicated region
      $region25: #{encoder_decoder_forward.77} parent=15 // pred_check
        %p203 = pneg %p100
      $region26: #{encoder_decoder_forward.77} parent=15 // pred_check_branch
        %205 = sbr.rel (%p203) target = $region28
      $region27: #{encoder_decoder_forward.77} parent=15 // pred_region
        %p206 = scmp.lt.s32.totalorder %s17, 1
        %s207 = scalar_select %p206, %s17, 1
        %p208 = scmp.lt.s32.totalorder %s18, 3
        %s209 = scalar_select %p208, %s18, 3
        %s210 = smul.addr %s209, 2
        %s211 = smul.addr %s207, 8
        %s212 = sadd.s32 %s210, %s211
        %s213 = smul.addr %s212, 8
        %s214 = scalar_lea.vmem %s2, %s213
      $region28: #{encoder_decoder_forward.77} parent=15 // pred_fallthru
        _
      // Predicated region
      $region29: #{encoder_decoder_forward.77} parent=15 // pred_check
        %p215 = pneg %p126
      $region30: #{encoder_decoder_forward.77} parent=15 // pred_check_branch
        %217 = sbr.rel (%p215) target = $region32
      $region31: #{encoder_decoder_forward.77} parent=15 // pred_region
        %p218 = scmp.lt.s32.totalorder %s17, 1
        %s219 = scalar_select %p218, %s17, 1
        %s220 = smul.addr %s219, 2
        %s221 = smul.addr %s220, 8
        %s222 = scalar_lea.vmem %s3, %s221
      $region32: #{encoder_decoder_forward.77} parent=15 // pred_fallthru
        _
    $region16: #{encoder_decoder_forward.77} parent=5 // pred_fallthru
      _
    %p223 = scmp.le.s32.totalorder 1, %s10
    %p224 = scmp.lt.s32.totalorder %s10, 9
    %p225 = pnand %p223, %p224
    %p226 = pneg %p225
    // Predicated region
    $region33: #{encoder_decoder_forward.77} parent=5 // pred_check
      _
    $region34: #{encoder_decoder_forward.77} parent=5 // pred_check_branch
      %228 = sbr.rel (%p225) target = $region36
    $region35: #{encoder_decoder_forward.77} parent=5 // pred_region
      %s229 = ssub.s32 %s10, 1
      %p230 = scmp.lt.s32.totalorder %s19, 1
      %s231 = scalar_select %p230, %s19, 1
      %p232 = scmp.lt.s32.totalorder %s20, 3
      %s233 = scalar_select %p232, %s20, 3
      %s234 = smul.addr %s233, 2
      %s235 = smul.addr %s231, 8
      %s236 = sadd.s32 %s234, %s235
      %s237 = smul.addr %s236, 8
      %s238 = scalar_lea.vmem %s0, %s237
      %p239 = pneg %p50
      %p240 = pneg %p47
      %p241 = scmp.lt.s32.totalorder %s19, 1
      %s242 = scalar_select %p241, %s19, 1
      %p243 = scmp.lt.s32.totalorder %s20, 3
      %s244 = scalar_select %p243, %s20, 3
      %s245 = smul.addr %s244, 2
      %s246 = smul.addr %s242, 8
      %s247 = sadd.s32 %s245, %s246
      %s248 = smul.addr %s247, 8
      %s249 = scalar_lea.vmem %s1, %s248
      %p250 = pneg %p78
      %p251 = pneg %p75
      %p252 = scmp.lt.s32.totalorder %s19, 1
      %s253 = scalar_select %p252, %s19, 1
      %p254 = scmp.lt.s32.totalorder %s20, 3
      %s255 = scalar_select %p254, %s20, 3
      %s256 = smul.addr %s255, 2
      %s257 = smul.addr %s253, 8
      %s258 = sadd.s32 %s256, %s257
      %s259 = smul.addr %s258, 8
      %s260 = scalar_lea.vmem %s2, %s259
      %p261 = pneg %p106
      %p262 = pneg %p103
      %p263 = scmp.lt.s32.totalorder %s19, 1
      %s264 = scalar_select %p263, %s19, 1
      %s265 = smul.addr %s264, 2
      %s266 = smul.addr %s265, 8
      %s267 = scalar_lea.vmem %s3, %s266
      %p268 = pneg %p132
      %p269 = pneg %p129
      %p270 = pneg %p160
      %p271 = pneg %p157
      %p272 = scmp.lt.s32.totalorder %s19, 1
      %s273 = scalar_select %p272, %s19, 1
      %p274 = scmp.lt.s32.totalorder %s20, 3
      %s275 = scalar_select %p274, %s20, 3
      %s276 = smul.addr %s275, 2
      %s277 = smul.addr %s273, 8
      %s278 = sadd.s32 %s276, %s277
      %s279 = smul.addr %s278, 8
      %s280 = scalar_lea.vmem %s4, %s279
      %p281 = scmp.lt.s32.totalorder %s19, 1
      %s282 = scalar_select %p281, %s19, 1
      %p283 = scmp.lt.s32.totalorder %s20, 3
      %s284 = scalar_select %p283, %s20, 3
      %s285 = smul.addr %s284, 2
      %s286 = smul.addr %s282, 8
      %s287 = sadd.s32 %s285, %s286
      %s288 = smul.addr %s287, 8
      %s289 = scalar_lea.vmem %s0, %s288
      %p290 = scmp.lt.s32.totalorder %s19, 1
      %s291 = scalar_select %p290, %s19, 1
      %p292 = scmp.lt.s32.totalorder %s20, 3
      %s293 = scalar_select %p292, %s20, 3
      %s294 = smul.addr %s293, 2
      %s295 = smul.addr %s291, 8
      %s296 = sadd.s32 %s294, %s295
      %s297 = smul.addr %s296, 8
      %s298 = scalar_lea.vmem %s1, %s297
      %p299 = scmp.lt.s32.totalorder %s19, 1
      %s300 = scalar_select %p299, %s19, 1
      %p301 = scmp.lt.s32.totalorder %s20, 3
      %s302 = scalar_select %p301, %s20, 3
      %s303 = smul.addr %s302, 2
      %s304 = smul.addr %s300, 8
      %s305 = sadd.s32 %s303, %s304
      %s306 = smul.addr %s305, 8
      %s307 = scalar_lea.vmem %s2, %s306
      %p308 = scmp.lt.s32.totalorder %s19, 1
      %s309 = scalar_select %p308, %s19, 1
      %s310 = smul.addr %s309, 2
      %s311 = smul.addr %s310, 8
      %s312 = scalar_lea.vmem %s3, %s311
      %p313 = scmp.lt.s32.totalorder %s19, 1
      %s314 = scalar_select %p313, %s19, 1
      %p315 = scmp.lt.s32.totalorder %s20, 3
      %s316 = scalar_select %p315, %s20, 3
      %s317 = smul.addr %s316, 2
      %s318 = smul.addr %s314, 8
      %s319 = sadd.s32 %s317, %s318
      %s320 = smul.addr %s319, 8
      %s321 = scalar_lea.vmem %s4, %s320
      %v322 = vld [vmem:[%s289] sm:$0xff]
      %v323 = vld [vmem:[%s289 + $0x8] sm:$0xff]
      %v324 = vld [vmem:[%s298] sm:$0xff]
      %v325 = vld [vmem:[%s298 + $0x8] sm:$0xff]
      %v326 = vld [vmem:[%s307] sm:$0xff]
      %v327 = vld [vmem:[%s307 + $0x8] sm:$0xff]
      %vm328 = vcmask 261120
      %v330 = vsel %vm328, %v322, 0
      %v333 = vsel %vm328, %v323, 0
      %v336 = vsel %vm328, %v324, 0
      %v339 = vsel %vm328, %v325, 0
      %341 = vmatprep.subr.mxu0 0.0
      %342 = vmatpush1.xpose.msra.mxu0 %v336
      %343 = vmatprep.subr.mxu0 0.0
      %344 = vmatpush1.xpose.msra.mxu0 %v339
      %345 = vmatprep.subr.mxu0 0.0
      %346 = vmatpush1.xpose.msra.mxu0 0.0
      %347 = vmatprep.subr.mxu0 0.0
      %348 = vmatpush1.xpose.msra.mxu0 0.0
      %349 = vmatprep.subr.mxu0 0.0
      %350 = vmatpush1.xpose.msra.mxu0 0.0
      %351 = vmatprep.subr.mxu0 0.0
      %352 = vmatpush1.xpose.msra.mxu0 0.0
      %353 = vmatprep.subr.mxu0 0.0
      %354 = vmatpush1.xpose.msra.mxu0 0.0
      %355 = vmatprep.subr.mxu0 0.0
      %356 = vmatpush1.xpose.msra.mxu0 0.0
      %357 = vmatprep.subr.mxu0 0.0
      %358 = vmatpush1.xpose.msra.mxu0 0.0
      %359 = vmatprep.subr.mxu0 0.0
      %360 = vmatpush1.xpose.msra.mxu0 0.0
      %361 = vmatprep.subr.mxu0 0.0
      %362 = vmatpush1.xpose.msra.mxu0 0.0
      %363 = vmatprep.subr.mxu0 0.0
      %364 = vmatpush1.xpose.msra.mxu0 0.0
      %365 = vmatprep.subr.mxu0 0.0
      %366 = vmatpush1.xpose.msra.mxu0 0.0
      %367 = vmatprep.subr.mxu0 0.0
      %368 = vmatpush1.xpose.msra.mxu0 0.0
      %369 = vmatprep.subr.mxu0 0.0
      %370 = vmatpush1.xpose.msra.mxu0 0.0
      %371 = vmatprep.subr.mxu0 0.0
      %372 = vmatpush1.xpose.msra.mxu0 0.0
      %373 = vmatprep.subr.mxu0 0.0
      %374 = vmatpush1.xpose.msra.mxu0 0.0
      %375 = vmatprep.subr.mxu0 0.0
      %376 = vmatpush1.xpose.msra.mxu0 0.0
      %377 = vmatprep.subr.mxu0 0.0
      %378 = vmatpush1.xpose.msra.mxu0 0.0
      %379 = vmatprep.subr.mxu0 0.0
      %380 = vmatpush1.xpose.msra.mxu0 0.0
      %381 = vmatprep.subr.mxu0 0.0
      %382 = vmatpush1.xpose.msra.mxu0 0.0
      %383 = vmatprep.subr.mxu0 0.0
      %384 = vmatpush1.xpose.msra.mxu0 0.0
      %385 = vmatprep.subr.mxu0 0.0
      %386 = vmatpush1.xpose.msra.mxu0 0.0
      %387 = vmatprep.subr.mxu0 0.0
      %388 = vmatpush1.xpose.msra.mxu0 0.0
      %389 = vmatprep.subr.mxu0 0.0
      %390 = vmatpush1.xpose.msra.mxu0 0.0
      %391 = vmatprep.subr.mxu0 0.0
      %392 = vmatpush1.xpose.msra.mxu0 0.0
      %393 = vmatprep.subr.mxu0 0.0
      %394 = vmatpush1.xpose.msra.mxu0 0.0
      %395 = vmatprep.subr.mxu0 0.0
      %396 = vmatpush1.xpose.msra.mxu0 0.0
      %397 = vmatprep.subr.mxu0 0.0
      %398 = vmatpush1.xpose.msra.mxu0 0.0
      %399 = vmatprep.subr.mxu0 0.0
      %400 = vmatpush1.xpose.msra.mxu0 0.0
      %401 = vmatprep.subr.mxu0 0.0
      %402 = vmatpush1.xpose.msra.mxu0 0.0
      %403 = vmatprep.subr.mxu0 0.0
      %404 = vmatpush1.xpose.msra.mxu0 0.0
      %405 = vmatprep.mubr.f32.mxu0 0.0
      %406 = vmatmul.mubr.f32.gmra.mrb[0].mxu0 %v330
      %v407 = vpop.f32.mrb[0].mxu0
      %v408 = vadd.f32 0.0, %v407
      %v409 = vpop.f32.mrb[0].mxu0
      %410 = vmatprep.mubr.f32.mxu0 0.0
      %411 = vmatmul.mubr.f32.gmra.mrb[0].mxu0 %v333
      %v412 = vpop.f32.mrb[0].mxu0
      %v413 = vadd.f32 0.0, %v412
      %v414 = vpop.f32.mrb[0].mxu0
      %415 = vdwg.mxu0
      %v416 = vmul.f32 %v408, 0.17677669
      %v417 = vmul.f32 %v413, 0.17677669
      %v418 = vld [vmem:[%s312] sm:$0xff]
      %v419 = vld [vmem:[%s312 + $0x8] sm:$0xff]
      %v420 = vadd.f32 %v416, %v418
      %v421 = vadd.f32 %v417, %v419
      %vm422 = vcmask 130048
      %v423 = vsel %vm422, %v420, -inf
      %424 = vmax.xlane.f32.xlu0 %v423
      %v425 = vpop.xlane.xlu0 %424
      %v426 = vsel %vm422, %v421, -inf
      %427 = vmax.xlane.f32.xlu0 %v426
      %v428 = vpop.xlane.xlu0 %427
      %v429 = vsub.f32 %v420, %v425
      %v430 = vsub.f32 %v421, %v428
      %v431 = vmul.f32 %v429, 1.442695
      %v432 = vpow.pop %v431
      %v433 = vmul.f32 %v430, 1.442695
      %v434 = vpow.pop %v433
      %v435 = vsel %vm422, %v432, 0.0
      %436 = vadd.xlane.f32.xlu0 %v435
      %v437 = vpop.xlane.xlu0 %436
      %v438 = vsel %vm422, %v434, 0.0
      %439 = vadd.xlane.f32.xlu0 %v438
      %v440 = vpop.xlane.xlu0 %439
      %v441 = vrcp.pop %v437
      %v442 = vmul.f32 %v432, %v441
      %v443 = vrcp.pop %v440
      %v444 = vmul.f32 %v434, %v443
      %v446 = vsel %vm422, %v442, 0
      %v449 = vsel %vm422, %v444, 0
      %451 = vmatprep.subr.mxu0 0.0
      %452 = vmatpush1.msra.mxu0 %v326
      %453 = vmatprep.subr.mxu0 0.0
      %454 = vmatpush1.msra.mxu0 %v327
      %455 = vmatprep.subr.mxu0 0.0
      %456 = vmatpush1.msra.mxu0 0.0
      %457 = vmatprep.subr.mxu0 0.0
      %458 = vmatpush1.msra.mxu0 0.0
      %459 = vmatprep.subr.mxu0 0.0
      %460 = vmatpush1.msra.mxu0 0.0
      %461 = vmatprep.subr.mxu0 0.0
      %462 = vmatpush1.msra.mxu0 0.0
      %463 = vmatprep.subr.mxu0 0.0
      %464 = vmatpush1.msra.mxu0 0.0
      %465 = vmatprep.subr.mxu0 0.0
      %466 = vmatpush1.msra.mxu0 0.0
      %467 = vmatprep.subr.mxu0 0.0
      %468 = vmatpush1.msra.mxu0 0.0
      %469 = vmatprep.subr.mxu0 0.0
      %470 = vmatpush1.msra.mxu0 0.0
      %471 = vmatprep.subr.mxu0 0.0
      %472 = vmatpush1.msra.mxu0 0.0
      %473 = vmatprep.subr.mxu0 0.0
      %474 = vmatpush1.msra.mxu0 0.0
      %475 = vmatprep.subr.mxu0 0.0
      %476 = vmatpush1.msra.mxu0 0.0
      %477 = vmatprep.subr.mxu0 0.0
      %478 = vmatpush1.msra.mxu0 0.0
      %479 = vmatprep.subr.mxu0 0.0
      %480 = vmatpush1.msra.mxu0 0.0
      %481 = vmatprep.subr.mxu0 0.0
      %482 = vmatpush1.msra.mxu0 0.0
      %483 = vmatprep.subr.mxu0 0.0
      %484 = vmatpush1.msra.mxu0 0.0
      %485 = vmatprep.subr.mxu0 0.0
      %486 = vmatpush1.msra.mxu0 0.0
      %487 = vmatprep.subr.mxu0 0.0
      %488 = vmatpush1.msra.mxu0 0.0
      %489 = vmatprep.subr.mxu0 0.0
      %490 = vmatpush1.msra.mxu0 0.0
      %491 = vmatprep.subr.mxu0 0.0
      %492 = vmatpush1.msra.mxu0 0.0
      %493 = vmatprep.subr.mxu0 0.0
      %494 = vmatpush1.msra.mxu0 0.0
      %495 = vmatprep.subr.mxu0 0.0
      %496 = vmatpush1.msra.mxu0 0.0
      %497 = vmatprep.subr.mxu0 0.0
      %498 = vmatpush1.msra.mxu0 0.0
      %499 = vmatprep.subr.mxu0 0.0
      %500 = vmatpush1.msra.mxu0 0.0
      %501 = vmatprep.subr.mxu0 0.0
      %502 = vmatpush1.msra.mxu0 0.0
      %503 = vmatprep.subr.mxu0 0.0
      %504 = vmatpush1.msra.mxu0 0.0
      %505 = vmatprep.subr.mxu0 0.0
      %506 = vmatpush1.msra.mxu0 0.0
      %507 = vmatprep.subr.mxu0 0.0
      %508 = vmatpush1.msra.mxu0 0.0
      %509 = vmatprep.subr.mxu0 0.0
      %510 = vmatpush1.msra.mxu0 0.0
      %511 = vmatprep.subr.mxu0 0.0
      %512 = vmatpush1.msra.mxu0 0.0
      %513 = vmatprep.subr.mxu0 0.0
      %514 = vmatpush1.msra.mxu0 0.0
      %515 = vmatprep.mubr.f32.mxu0 0.0
      %516 = vmatmul.mubr.f32.gmra.mrb[0].mxu0 %v446
      %v517 = vpop.f32.mrb[0].mxu0
      %v518 = vadd.f32 0.0, %v517
      %v519 = vpop.f32.mrb[0].mxu0
      %520 = vmatprep.mubr.f32.mxu0 0.0
      %521 = vmatmul.mubr.f32.gmra.mrb[0].mxu0 %v449
      %v522 = vpop.f32.mrb[0].mxu0
      %v523 = vadd.f32 0.0, %v522
      %v524 = vpop.f32.mrb[0].mxu0
      %525 = vdwg.mxu0
      %526 = vst.msk [vmem:[%s321] sm:$0xff] %vm328, %v518
      %527 = vst.msk [vmem:[%s321 + $0x8] sm:$0xff] %vm328, %v523
      %p528 = scmp.lt.s32.totalorder %s19, 1
      %s529 = scalar_select %p528, %s19, 1
      %p530 = scmp.lt.s32.totalorder %s20, 3
      %s531 = scalar_select %p530, %s20, 3
      %s532 = smul.addr %s531, 2
      %s533 = smul.addr %s529, 8
      %s534 = sadd.s32 %s532, %s533
      %s535 = smul.addr %s534, 8
      %s536 = scalar_lea.vmem %s4, %s535
      // Predicated region
      $region37: #{encoder_decoder_forward.77} parent=35 // pred_check
        %p537 = pneg %p157
      $region38: #{encoder_decoder_forward.77} parent=35 // pred_check_branch
        %539 = sbr.rel (%p537) target = $region40
      $region39: #{encoder_decoder_forward.77} parent=35 // pred_region
        _
      $region40: #{encoder_decoder_forward.77} parent=35 // pred_fallthru
        _
    $region36: #{encoder_decoder_forward.77} parent=5 // pred_fallthru
      _
    %p540 = scmp.le.s32.totalorder 2, %s10
    // Predicated region
    $region41: #{encoder_decoder_forward.77} parent=5 // pred_check
      %p541 = pneg %p540
    $region42: #{encoder_decoder_forward.77} parent=5 // pred_check_branch
      %543 = sbr.rel (%p541) target = $region44
    $region43: #{encoder_decoder_forward.77} parent=5 // pred_region
      %s544 = ssub.s32 %s10, 2
      // Predicated region
      $region45: #{encoder_decoder_forward.77} parent=43 // pred_check
        %p545 = pneg %p163
      $region46: #{encoder_decoder_forward.77} parent=43 // pred_check_branch
        %547 = sbr.rel (%p545) target = $region48
      $region47: #{encoder_decoder_forward.77} parent=43 // pred_region
        %p548 = scmp.lt.s32.totalorder %s21, 1
        %s549 = scalar_select %p548, %s21, 1
        %p550 = scmp.lt.s32.totalorder %s22, 3
        %s551 = scalar_select %p550, %s22, 3
        %s552 = smul.addr %s551, 2
        %s553 = smul.addr %s549, 8
        %s554 = sadd.s32 %s552, %s553
        %s555 = smul.addr %s554, 8
        %s556 = scalar_lea.vmem %s4, %s555
      $region48: #{encoder_decoder_forward.77} parent=43 // pred_fallthru
        _
    $region44: #{encoder_decoder_forward.77} parent=5 // pred_fallthru
      _
  $region6: #{encoder_decoder_forward.77} parent=0 // loop_footer
    %s14 = sadd.s32 1, %s10
  $region7: #{encoder_decoder_forward.77} parent=0 // loop_footer_branch
    %9 = sbr.rel target = $region3
  $region8: #{encoder_decoder_forward.77} parent=0 // loop_exit
    _

// kernel: encoder_decoder_forward.54
$region0: #{encoder_decoder_forward.54}
  #allocation0 [shape = 'u32[]', space=smem, size = 0x4, offset = 0x4, fixed_abs, tag = 'smem constant byte address 0x4 - core index']
  #allocation1 [shape = 'u32[144,128]{1,0:T(1,128)}', space=vmem, size = 0x12000, scoped, tag = 'internal scratch']
  %s0 = inlined_call_operand.vmem [shape: f32[16,128], index: 0, kind: input, shape index: {}]
  %s1 = inlined_call_operand.vmem [shape: f32[128,128], index: 1, kind: input, shape index: {}]
  %s2 = inlined_call_operand.vmem [shape: f32[1,128], index: 2, kind: input, shape index: {}]
  %s3 = inlined_call_operand.vmem [shape: f32[16,128], index: 3, kind: output, shape index: {}]
  %s4 = sld [smem:[#allocation0]]
  $region22: #{encoder_decoder_forward.54} parent=0
    _
  %s6 = ssub.s32 1, %s4
  %s7 = scalar_select 0, %s6, %s4
  // Predicated region
  $region2: #{encoder_decoder_forward.54} parent=0 // pred_check
    _
  $region3: #{encoder_decoder_forward.54} parent=0 // pred_check_branch
    %9 = sbr.rel (0) target = $region5
  $region4: #{encoder_decoder_forward.54} parent=0 // pred_region
    _
  $region5: #{encoder_decoder_forward.54} parent=0 // pred_fallthru
    _
  // Predicated region
  $region6: #{encoder_decoder_forward.54} parent=0 // pred_check
    _
  $region7: #{encoder_decoder_forward.54} parent=0 // pred_check_branch
    %11 = sbr.rel (0) target = $region9
  $region8: #{encoder_decoder_forward.54} parent=0 // pred_region
    _
  $region9: #{encoder_decoder_forward.54} parent=0 // pred_fallthru
    _
  // Predicated region
  $region10: #{encoder_decoder_forward.54} parent=0 // pred_check
    _
  $region11: #{encoder_decoder_forward.54} parent=0 // pred_check_branch
    %13 = sbr.rel (0) target = $region13
  $region12: #{encoder_decoder_forward.54} parent=0 // pred_region
    _
  $region13: #{encoder_decoder_forward.54} parent=0 // pred_fallthru
    _
  %v14 = vld [vmem:[%s0] sm:$0xff]
  %v15 = vld [vmem:[%s0 + $0x8] sm:$0xff]
  %v16 = vld [vmem:[%s1] sm:$0xff]
  %v17 = vld [vmem:[%s1 + $0x8] sm:$0xff]
  %v18 = vld [vmem:[%s1 + $0x10] sm:$0xff]
  %v19 = vld [vmem:[%s1 + $0x18] sm:$0xff]
  %v20 = vld [vmem:[%s1 + $0x20] sm:$0xff]
  %v21 = vld [vmem:[%s1 + $0x28] sm:$0xff]
  %v22 = vld [vmem:[%s1 + $0x30] sm:$0xff]
  %v23 = vld [vmem:[%s1 + $0x38] sm:$0xff]
  %v24 = vld [vmem:[%s1 + $0x40] sm:$0xff]
  %v25 = vld [vmem:[%s1 + $0x48] sm:$0xff]
  %v26 = vld [vmem:[%s1 + $0x50] sm:$0xff]
  %v27 = vld [vmem:[%s1 + $0x58] sm:$0xff]
  %v28 = vld [vmem:[%s1 + $0x60] sm:$0xff]
  %v29 = vld [vmem:[%s1 + $0x68] sm:$0xff]
  %v30 = vld [vmem:[%s1 + $0x70] sm:$0xff]
  %v31 = vld [vmem:[%s1 + $0x78] sm:$0xff]
  %v32 = vld [vmem:[%s2] sm:$0x1]
  %v34 = vlaneseq
  %v35 = vshrl.u32 %v34, 7
  %v36 = vsub.s32 0, %v35
  %v37 = vrot.slane %v32, %v36
  %39 = vmatprep.subr.mxu0 0.0
  %40 = vmatpush1.msra.mxu0 %v16
  %41 = vmatprep.subr.mxu0 0.0
  %42 = vmatpush1.msra.mxu0 %v17
  %43 = vmatprep.subr.mxu0 0.0
  %44 = vmatpush1.msra.mxu0 %v18
  %45 = vmatprep.subr.mxu0 0.0
  %46 = vmatpush1.msra.mxu0 %v19
  %47 = vmatprep.subr.mxu0 0.0
  %48 = vmatpush1.msra.mxu0 %v20
  %49 = vmatprep.subr.mxu0 0.0
  %50 = vmatpush1.msra.mxu0 %v21
  %51 = vmatprep.subr.mxu0 0.0
  %52 = vmatpush1.msra.mxu0 %v22
  %53 = vmatprep.subr.mxu0 0.0
  %54 = vmatpush1.msra.mxu0 %v23
  %55 = vmatprep.subr.mxu0 0.0
  %56 = vmatpush1.msra.mxu0 %v24
  %57 = vmatprep.subr.mxu0 0.0
  %58 = vmatpush1.msra.mxu0 %v25
  %59 = vmatprep.subr.mxu0 0.0
  %60 = vmatpush1.msra.mxu0 %v26
  %61 = vmatprep.subr.mxu0 0.0
  %62 = vmatpush1.msra.mxu0 %v27
  %63 = vmatprep.subr.mxu0 0.0
  %64 = vmatpush1.msra.mxu0 %v28
  %65 = vmatprep.subr.mxu0 0.0
  %66 = vmatpush1.msra.mxu0 %v29
  %67 = vmatprep.subr.mxu0 0.0
  %68 = vmatpush1.msra.mxu0 %v30
  %69 = vmatprep.subr.mxu0 0.0
  %70 = vmatpush1.msra.mxu0 %v31
  %71 = vmatprep.subr.mxu0 0.0
  %72 = vmatpush1.msra.mxu0 0.0
  %73 = vmatprep.subr.mxu0 0.0
  %74 = vmatpush1.msra.mxu0 0.0
  %75 = vmatprep.subr.mxu0 0.0
  %76 = vmatpush1.msra.mxu0 0.0
  %77 = vmatprep.subr.mxu0 0.0
  %78 = vmatpush1.msra.mxu0 0.0
  %79 = vmatprep.subr.mxu0 0.0
  %80 = vmatpush1.msra.mxu0 0.0
  %81 = vmatprep.subr.mxu0 0.0
  %82 = vmatpush1.msra.mxu0 0.0
  %83 = vmatprep.subr.mxu0 0.0
  %84 = vmatpush1.msra.mxu0 0.0
  %85 = vmatprep.subr.mxu0 0.0
  %86 = vmatpush1.msra.mxu0 0.0
  %87 = vmatprep.subr.mxu0 0.0
  %88 = vmatpush1.msra.mxu0 0.0
  %89 = vmatprep.subr.mxu0 0.0
  %90 = vmatpush1.msra.mxu0 0.0
  %91 = vmatprep.subr.mxu0 0.0
  %92 = vmatpush1.msra.mxu0 0.0
  %93 = vmatprep.subr.mxu0 0.0
  %94 = vmatpush1.msra.mxu0 0.0
  %95 = vmatprep.subr.mxu0 0.0
  %96 = vmatpush1.msra.mxu0 0.0
  %97 = vmatprep.subr.mxu0 0.0
  %98 = vmatpush1.msra.mxu0 0.0
  %99 = vmatprep.subr.mxu0 0.0
  %100 = vmatpush1.msra.mxu0 0.0
  %101 = vmatprep.subr.mxu0 0.0
  %102 = vmatpush1.msra.mxu0 0.0
  %103 = vmatprep.mubr.f32.mxu0 0.0
  %104 = vmatmul.mubr.f32.gmra.mrb[0].mxu0 %v14
  %v105 = vpop.f32.mrb[0].mxu0
  %v106 = vadd.f32 %v37, %v105
  %v107 = vpop.f32.mrb[0].mxu0
  %108 = vmatprep.mubr.f32.mxu0 0.0
  %109 = vmatmul.mubr.f32.gmra.mrb[0].mxu0 %v15
  %v110 = vpop.f32.mrb[0].mxu0
  %v111 = vadd.f32 %v37, %v110
  %v112 = vpop.f32.mrb[0].mxu0
  %113 = vdwg.mxu0
  %114 = vst [vmem:[%s3] sm:$0xff] %v106
  %115 = vst [vmem:[%s3 + $0x8] sm:$0xff] %v111
  // Predicated region
  $region14: #{encoder_decoder_forward.54} parent=0 // pred_check
    _
  $region15: #{encoder_decoder_forward.54} parent=0 // pred_check_branch
    %117 = sbr.rel (0) target = $region17
  $region16: #{encoder_decoder_forward.54} parent=0 // pred_region
    _
  $region17: #{encoder_decoder_forward.54} parent=0 // pred_fallthru
    _
  // Predicated region
  $region18: #{encoder_decoder_forward.54} parent=0 // pred_check
    _
  $region19: #{encoder_decoder_forward.54} parent=0 // pred_check_branch
    %119 = sbr.rel (0) target = $region21
  $region20: #{encoder_decoder_forward.54} parent=0 // pred_region
    _
  $region21: #{encoder_decoder_forward.54} parent=0 // pred_fallthru
    _

// kernel: encoder_decoder_forward.60
$region0: #{encoder_decoder_forward.60}
  #allocation0 [shape = 'u32[]', space=smem, size = 0x4, offset = 0x4, fixed_abs, tag = 'smem constant byte address 0x4 - core index']
  #allocation1 [shape = 'u32[144,128]{1,0:T(1,128)}', space=vmem, size = 0x12000, scoped, tag = 'internal scratch']
  %s0 = inlined_call_operand.vmem [shape: f32[16,128], index: 0, kind: input, shape index: {}]
  %s1 = inlined_call_operand.vmem [shape: f32[128,256], index: 1, kind: input, shape index: {}]
  %s2 = inlined_call_operand.vmem [shape: f32[1,256], index: 2, kind: input, shape index: {}]
  %s3 = inlined_call_operand.vmem [shape: f32[16,256], index: 3, kind: output, shape index: {}]
  %s4 = sld [smem:[#allocation0]]
  $region22: #{encoder_decoder_forward.60} parent=0
    _
  %s6 = ssub.s32 1, %s4
  %s7 = scalar_select 0, %s6, %s4
  // Predicated region
  $region2: #{encoder_decoder_forward.60} parent=0 // pred_check
    _
  $region3: #{encoder_decoder_forward.60} parent=0 // pred_check_branch
    %9 = sbr.rel (0) target = $region5
  $region4: #{encoder_decoder_forward.60} parent=0 // pred_region
    _
  $region5: #{encoder_decoder_forward.60} parent=0 // pred_fallthru
    _
  // Predicated region
  $region6: #{encoder_decoder_forward.60} parent=0 // pred_check
    _
  $region7: #{encoder_decoder_forward.60} parent=0 // pred_check_branch
    %11 = sbr.rel (0) target = $region9
  $region8: #{encoder_decoder_forward.60} parent=0 // pred_region
    _
  $region9: #{encoder_decoder_forward.60} parent=0 // pred_fallthru
    _
  // Predicated region
  $region10: #{encoder_decoder_forward.60} parent=0 // pred_check
    _
  $region11: #{encoder_decoder_forward.60} parent=0 // pred_check_branch
    %13 = sbr.rel (0) target = $region13
  $region12: #{encoder_decoder_forward.60} parent=0 // pred_region
    _
  $region13: #{encoder_decoder_forward.60} parent=0 // pred_fallthru
    _
  %v14 = vld [vmem:[%s0] sm:$0xff]
  %v15 = vld [vmem:[%s0 + $0x8] sm:$0xff]
  %v16 = vld [vmem:[%s1] sm:$0xff]
  %v17 = vld [vmem:[%s1 + $0x8] sm:$0xff]
  %v18 = vld [vmem:[%s1 + $0x10] sm:$0xff]
  %v19 = vld [vmem:[%s1 + $0x18] sm:$0xff]
  %v20 = vld [vmem:[%s1 + $0x20] sm:$0xff]
  %v21 = vld [vmem:[%s1 + $0x28] sm:$0xff]
  %v22 = vld [vmem:[%s1 + $0x30] sm:$0xff]
  %v23 = vld [vmem:[%s1 + $0x38] sm:$0xff]
  %v24 = vld [vmem:[%s1 + $0x40] sm:$0xff]
  %v25 = vld [vmem:[%s1 + $0x48] sm:$0xff]
  %v26 = vld [vmem:[%s1 + $0x50] sm:$0xff]
  %v27 = vld [vmem:[%s1 + $0x58] sm:$0xff]
  %v28 = vld [vmem:[%s1 + $0x60] sm:$0xff]
  %v29 = vld [vmem:[%s1 + $0x68] sm:$0xff]
  %v30 = vld [vmem:[%s1 + $0x70] sm:$0xff]
  %v31 = vld [vmem:[%s1 + $0x78] sm:$0xff]
  %v32 = vld [vmem:[%s1 + $0x80] sm:$0xff]
  %v33 = vld [vmem:[%s1 + $0x88] sm:$0xff]
  %v34 = vld [vmem:[%s1 + $0x90] sm:$0xff]
  %v35 = vld [vmem:[%s1 + $0x98] sm:$0xff]
  %v36 = vld [vmem:[%s1 + $0xa0] sm:$0xff]
  %v37 = vld [vmem:[%s1 + $0xa8] sm:$0xff]
  %v38 = vld [vmem:[%s1 + $0xb0] sm:$0xff]
  %v39 = vld [vmem:[%s1 + $0xb8] sm:$0xff]
  %v40 = vld [vmem:[%s1 + $0xc0] sm:$0xff]
  %v41 = vld [vmem:[%s1 + $0xc8] sm:$0xff]
  %v42 = vld [vmem:[%s1 + $0xd0] sm:$0xff]
  %v43 = vld [vmem:[%s1 + $0xd8] sm:$0xff]
  %v44 = vld [vmem:[%s1 + $0xe0] sm:$0xff]
  %v45 = vld [vmem:[%s1 + $0xe8] sm:$0xff]
  %v46 = vld [vmem:[%s1 + $0xf0] sm:$0xff]
  %v47 = vld [vmem:[%s1 + $0xf8] sm:$0xff]
  %v48 = vld [vmem:[%s2] sm:$0x3]
  %v50 = vlaneseq
  %v51 = vshrl.u32 %v50, 7
  %v52 = vsub.s32 0, %v51
  %v53 = vrot.slane %v48, %v52
  %v54 = vlaneseq
  %v55 = vshrl.u32 %v54, 7
  %v56 = vsub.s32 1, %v55
  %v57 = vrot.slane %v48, %v56
  %60 = vmatprep.subr.mxu0 %v17
  %61 = vmatpush1.msra.mxu0 %v16
  %62 = vmatprep.subr.mxu0 %v19
  %63 = vmatpush1.msra.mxu0 %v18
  %64 = vmatprep.subr.mxu0 %v21
  %65 = vmatpush1.msra.mxu0 %v20
  %66 = vmatprep.subr.mxu0 %v23
  %67 = vmatpush1.msra.mxu0 %v22
  %68 = vmatprep.subr.mxu0 %v25
  %69 = vmatpush1.msra.mxu0 %v24
  %70 = vmatprep.subr.mxu0 %v27
  %71 = vmatpush1.msra.mxu0 %v26
  %72 = vmatprep.subr.mxu0 %v29
  %73 = vmatpush1.msra.mxu0 %v28
  %74 = vmatprep.subr.mxu0 %v31
  %75 = vmatpush1.msra.mxu0 %v30
  %76 = vmatprep.subr.mxu0 %v33
  %77 = vmatpush1.msra.mxu0 %v32
  %78 = vmatprep.subr.mxu0 %v35
  %79 = vmatpush1.msra.mxu0 %v34
  %80 = vmatprep.subr.mxu0 %v37
  %81 = vmatpush1.msra.mxu0 %v36
  %82 = vmatprep.subr.mxu0 %v39
  %83 = vmatpush1.msra.mxu0 %v38
  %84 = vmatprep.subr.mxu0 %v41
  %85 = vmatpush1.msra.mxu0 %v40
  %86 = vmatprep.subr.mxu0 %v43
  %87 = vmatpush1.msra.mxu0 %v42
  %88 = vmatprep.subr.mxu0 %v45
  %89 = vmatpush1.msra.mxu0 %v44
  %90 = vmatprep.subr.mxu0 %v47
  %91 = vmatpush1.msra.mxu0 %v46
  %92 = vmatprep.subr.mxu0 0.0
  %93 = vmatpush1.msra.mxu0 0.0
  %94 = vmatprep.subr.mxu0 0.0
  %95 = vmatpush1.msra.mxu0 0.0
  %96 = vmatprep.subr.mxu0 0.0
  %97 = vmatpush1.msra.mxu0 0.0
  %98 = vmatprep.subr.mxu0 0.0
  %99 = vmatpush1.msra.mxu0 0.0
  %100 = vmatprep.subr.mxu0 0.0
  %101 = vmatpush1.msra.mxu0 0.0
  %102 = vmatprep.subr.mxu0 0.0
  %103 = vmatpush1.msra.mxu0 0.0
  %104 = vmatprep.subr.mxu0 0.0
  %105 = vmatpush1.msra.mxu0 0.0
  %106 = vmatprep.subr.mxu0 0.0
  %107 = vmatpush1.msra.mxu0 0.0
  %108 = vmatprep.subr.mxu0 0.0
  %109 = vmatpush1.msra.mxu0 0.0
  %110 = vmatprep.subr.mxu0 0.0
  %111 = vmatpush1.msra.mxu0 0.0
  %112 = vmatprep.subr.mxu0 0.0
  %113 = vmatpush1.msra.mxu0 0.0
  %114 = vmatprep.subr.mxu0 0.0
  %115 = vmatpush1.msra.mxu0 0.0
  %116 = vmatprep.subr.mxu0 0.0
  %117 = vmatpush1.msra.mxu0 0.0
  %118 = vmatprep.subr.mxu0 0.0
  %119 = vmatpush1.msra.mxu0 0.0
  %120 = vmatprep.subr.mxu0 0.0
  %121 = vmatpush1.msra.mxu0 0.0
  %122 = vmatprep.subr.mxu0 0.0
  %123 = vmatpush1.msra.mxu0 0.0
  %124 = vmatprep.mubr.f32.mxu0 0.0
  %125 = vmatmul.mubr.f32.gmra.mrb[0].mxu0 %v14
  %v126 = vpop.f32.mrb[0].mxu0
  %v127 = vadd.f32 %v53, %v126
  %v128 = vpop.f32.mrb[0].mxu0
  %v129 = vadd.f32 %v57, %v128
  %130 = vmatprep.mubr.f32.mxu0 0.0
  %131 = vmatmul.mubr.f32.gmra.mrb[0].mxu0 %v15
  %v132 = vpop.f32.mrb[0].mxu0
  %v133 = vadd.f32 %v53, %v132
  %v134 = vpop.f32.mrb[0].mxu0
  %v135 = vadd.f32 %v57, %v134
  %136 = vdwg.mxu0
  %v137 = vmax.f32 %v127, 0.0
  %v138 = vmax.f32 %v129, 0.0
  %v139 = vmax.f32 %v133, 0.0
  %v140 = vmax.f32 %v135, 0.0
  %141 = vst [vmem:[%s3] sm:$0xff] %v137
  %142 = vst [vmem:[%s3 + $0x8] sm:$0xff] %v138
  %143 = vst [vmem:[%s3 + $0x10] sm:$0xff] %v139
  %144 = vst [vmem:[%s3 + $0x18] sm:$0xff] %v140
  // Predicated region
  $region14: #{encoder_decoder_forward.60} parent=0 // pred_check
    _
  $region15: #{encoder_decoder_forward.60} parent=0 // pred_check_branch
    %146 = sbr.rel (0) target = $region17
  $region16: #{encoder_decoder_forward.60} parent=0 // pred_region
    _
  $region17: #{encoder_decoder_forward.60} parent=0 // pred_fallthru
    _
  // Predicated region
  $region18: #{encoder_decoder_forward.60} parent=0 // pred_check
    _
  $region19: #{encoder_decoder_forward.60} parent=0 // pred_check_branch
    %148 = sbr.rel (0) target = $region21
  $region20: #{encoder_decoder_forward.60} parent=0 // pred_region
    _
  $region21: #{encoder_decoder_forward.60} parent=0 // pred_fallthru
    _

// kernel: encoder_decoder_forward.57
$region0: #{encoder_decoder_forward.57}
  #allocation0 [shape = 'u32[]', space=smem, size = 0x4, offset = 0x4, fixed_abs, tag = 'smem constant byte address 0x4 - core index']
  #allocation1 [shape = 'u32[144,128]{1,0:T(1,128)}', space=vmem, size = 0x12000, scoped, tag = 'internal scratch']
  %s0 = inlined_call_operand.vmem [shape: f32[2,4,8,32], index: 0, kind: input, shape index: {}]
  %s1 = inlined_call_operand.vmem [shape: f32[2,4,8,32], index: 1, kind: input, shape index: {}]
  %s2 = inlined_call_operand.vmem [shape: f32[2,4,8,32], index: 2, kind: input, shape index: {}]
  %s3 = inlined_call_operand.vmem [shape: f32[2,8,8], index: 3, kind: input, shape index: {}]
  %s4 = inlined_call_operand.vmem [shape: f32[2,4,8,32], index: 4, kind: output, shape index: {}]
  %s5 = sld [smem:[#allocation0]]
  $region49: #{encoder_decoder_forward.57} parent=0
    _
  %s7 = ssub.s32 1, %s5
  %s8 = scalar_select 0, %s7, %s5
  loop: start=0, step=1, limit=10
  $region2: #{encoder_decoder_forward.57} parent=0 // loop_pre_header
    _
  $region3: #{encoder_decoder_forward.57} parent=0 // loop_header
    %s10 = sphi 0, %s14
    %p11 = scmp.ge.s32.totalorder %s10, 10
    %s17 = sphi 0, %s29
    %s18 = sphi 0, %s25
    %s19 = sphi 0, %s17
    %s20 = sphi 0, %s18
    %s21 = sphi 0, %s19
    %s22 = sphi 0, %s20
    %s34 = sphi 0, %s36
    %s37 = sphi 0, %s34
    %s38 = sphi 0, %s37
    %s54 = sphi 0, %s38
    %s62 = sphi 0, %s64
    %s65 = sphi 0, %s62
    %s66 = sphi 0, %s65
    %s82 = sphi 0, %s66
    %s90 = sphi 0, %s92
    %s93 = sphi 0, %s90
    %s94 = sphi 0, %s93
    %s110 = sphi 0, %s94
    %s116 = sphi 0, %s118
    %s119 = sphi 0, %s116
    %s120 = sphi 0, %s119
    %s136 = sphi 0, %s120
    %s144 = sphi 0, %s146
    %s147 = sphi 0, %s144
    %s148 = sphi 0, %s147
    %s164 = sphi 0, %s148
  $region4: #{encoder_decoder_forward.57} parent=0 // loop_header_branch
    %13 = sbr.rel (%p11) target = $region8
  $region5: #{encoder_decoder_forward.57} parent=0 // loop_body
    %s15 = ssub.s32 %s10, 1
    %s16 = ssub.s32 %s10, 2
    %s23 = sadd.s32 1, %s18
    %p24 = scmp.ge.s32.totalorder %s23, 4
    %s25 = scalar_select %p24, 0, %s23
    %s26 = sadd.s32 1, %s17
    %s27 = scalar_select %p24, %s26, %s17
    %p28 = scmp.ge.s32.totalorder %s27, 2
    %s29 = scalar_select %p28, 0, %s27
    %s30 = ssub.s32 %s17, %s29
    %s31 = ssub.s32 %s18, %s25
    %s32 = sor.u32 %s30, %s31
    %p33 = scmp.eq.s32.totalorder %s32, 0
    %s35 = sadd.s32 %s34, 1
    %s36 = scalar_select %p33, %s34, %s35
    %p39 = pneg %p33
    %p40 = scmp.eq.s32.totalorder %s10, 7
    %p41 = por %p39, %p40
    %p42 = scmp.ne.s32.totalorder %s34, %s37
    %p43 = scmp.eq.s32.totalorder %s10, 0
    %p44 = por %p42, %p43
    %p45 = scmp.ne.s32.totalorder %s34, %s37
    %p46 = scmp.eq.s32.totalorder %s15, 7
    %p47 = por %p45, %p46
    %p48 = scmp.ne.s32.totalorder %s37, %s38
    %p49 = scmp.eq.s32.totalorder %s15, 0
    %p50 = por %p48, %p49
    %p51 = scmp.ne.s32.totalorder %s37, %s38
    %p52 = scmp.eq.s32.totalorder %s16, 7
    %p53 = por %p51, %p52
    %p55 = scmp.ne.s32.totalorder %s38, %s54
    %p56 = scmp.eq.s32.totalorder %s16, 0
    %p57 = por %p55, %p56
    %s58 = ssub.s32 %s17, %s29
    %s59 = ssub.s32 %s18, %s25
    %s60 = sor.u32 %s58, %s59
    %p61 = scmp.eq.s32.totalorder %s60, 0
    %s63 = sadd.s32 %s62, 1
    %s64 = scalar_select %p61, %s62, %s63
    %p67 = pneg %p61
    %p68 = scmp.eq.s32.totalorder %s10, 7
    %p69 = por %p67, %p68
    %p70 = scmp.ne.s32.totalorder %s62, %s65
    %p71 = scmp.eq.s32.totalorder %s10, 0
    %p72 = por %p70, %p71
    %p73 = scmp.ne.s32.totalorder %s62, %s65
    %p74 = scmp.eq.s32.totalorder %s15, 7
    %p75 = por %p73, %p74
    %p76 = scmp.ne.s32.totalorder %s65, %s66
    %p77 = scmp.eq.s32.totalorder %s15, 0
    %p78 = por %p76, %p77
    %p79 = scmp.ne.s32.totalorder %s65, %s66
    %p80 = scmp.eq.s32.totalorder %s16, 7
    %p81 = por %p79, %p80
    %p83 = scmp.ne.s32.totalorder %s66, %s82
    %p84 = scmp.eq.s32.totalorder %s16, 0
    %p85 = por %p83, %p84
    %s86 = ssub.s32 %s17, %s29
    %s87 = ssub.s32 %s18, %s25
    %s88 = sor.u32 %s86, %s87
    %p89 = scmp.eq.s32.totalorder %s88, 0
    %s91 = sadd.s32 %s90, 1
    %s92 = scalar_select %p89, %s90, %s91
    %p95 = pneg %p89
    %p96 = scmp.eq.s32.totalorder %s10, 7
    %p97 = por %p95, %p96
    %p98 = scmp.ne.s32.totalorder %s90, %s93
    %p99 = scmp.eq.s32.totalorder %s10, 0
    %p100 = por %p98, %p99
    %p101 = scmp.ne.s32.totalorder %s90, %s93
    %p102 = scmp.eq.s32.totalorder %s15, 7
    %p103 = por %p101, %p102
    %p104 = scmp.ne.s32.totalorder %s93, %s94
    %p105 = scmp.eq.s32.totalorder %s15, 0
    %p106 = por %p104, %p105
    %p107 = scmp.ne.s32.totalorder %s93, %s94
    %p108 = scmp.eq.s32.totalorder %s16, 7
    %p109 = por %p107, %p108
    %p111 = scmp.ne.s32.totalorder %s94, %s110
    %p112 = scmp.eq.s32.totalorder %s16, 0
    %p113 = por %p111, %p112
    %s114 = ssub.s32 %s17, %s29
    %p115 = scmp.eq.s32.totalorder %s114, 0
    %s117 = sadd.s32 %s116, 1
    %s118 = scalar_select %p115, %s116, %s117
    %p121 = pneg %p115
    %p122 = scmp.eq.s32.totalorder %s10, 7
    %p123 = por %p121, %p122
    %p124 = scmp.ne.s32.totalorder %s116, %s119
    %p125 = scmp.eq.s32.totalorder %s10, 0
    %p126 = por %p124, %p125
    %p127 = scmp.ne.s32.totalorder %s116, %s119
    %p128 = scmp.eq.s32.totalorder %s15, 7
    %p129 = por %p127, %p128
    %p130 = scmp.ne.s32.totalorder %s119, %s120
    %p131 = scmp.eq.s32.totalorder %s15, 0
    %p132 = por %p130, %p131
    %p133 = scmp.ne.s32.totalorder %s119, %s120
    %p134 = scmp.eq.s32.totalorder %s16, 7
    %p135 = por %p133, %p134
    %p137 = scmp.ne.s32.totalorder %s120, %s136
    %p138 = scmp.eq.s32.totalorder %s16, 0
    %p139 = por %p137, %p138
    %s140 = ssub.s32 %s17, %s29
    %s141 = ssub.s32 %s18, %s25
    %s142 = sor.u32 %s140, %s141
    %p143 = scmp.eq.s32.totalorder %s142, 0
    %s145 = sadd.s32 %s144, 1
    %s146 = scalar_select %p143, %s144, %s145
    %p149 = pneg %p143
    %p150 = scmp.eq.s32.totalorder %s10, 7
    %p151 = por %p149, %p150
    %p152 = scmp.ne.s32.totalorder %s144, %s147
    %p153 = scmp.eq.s32.totalorder %s10, 0
    %p154 = por %p152, %p153
    %p155 = scmp.ne.s32.totalorder %s144, %s147
    %p156 = scmp.eq.s32.totalorder %s15, 7
    %p157 = por %p155, %p156
    %p158 = scmp.ne.s32.totalorder %s147, %s148
    %p159 = scmp.eq.s32.totalorder %s15, 0
    %p160 = por %p158, %p159
    %p161 = scmp.ne.s32.totalorder %s147, %s148
    %p162 = scmp.eq.s32.totalorder %s16, 7
    %p163 = por %p161, %p162
    %p165 = scmp.ne.s32.totalorder %s148, %s164
    %p166 = scmp.eq.s32.totalorder %s16, 0
    %p167 = por %p165, %p166
    %p168 = scmp.le.s32.totalorder 1, %s10
    %p169 = scmp.lt.s32.totalorder %s10, 9
    %p170 = pnand %p168, %p169
    %p171 = pneg %p170
    // Predicated region
    $region9: #{encoder_decoder_forward.57} parent=5 // pred_check
      _
    $region10: #{encoder_decoder_forward.57} parent=5 // pred_check_branch
      %173 = sbr.rel (%p170) target = $region12
    $region11: #{encoder_decoder_forward.57} parent=5 // pred_region
      %s174 = ssub.s32 %s10, 1
    $region12: #{encoder_decoder_forward.57} parent=5 // pred_fallthru
      _
    %p175 = scmp.lt.s32.totalorder %s10, 8
    // Predicated region
    $region13: #{encoder_decoder_forward.57} parent=5 // pred_check
      %p176 = pneg %p175
    $region14: #{encoder_decoder_forward.57} parent=5 // pred_check_branch
      %178 = sbr.rel (%p176) target = $region16
    $region15: #{encoder_decoder_forward.57} parent=5 // pred_region
      // Predicated region
      $region17: #{encoder_decoder_forward.57} parent=15 // pred_check
        %p179 = pneg %p44
      $region18: #{encoder_decoder_forward.57} parent=15 // pred_check_branch
        %181 = sbr.rel (%p179) target = $region20
      $region19: #{encoder_decoder_forward.57} parent=15 // pred_region
        %p182 = scmp.lt.s32.totalorder %s17, 1
        %s183 = scalar_select %p182, %s17, 1
        %p184 = scmp.lt.s32.totalorder %s18, 3
        %s185 = scalar_select %p184, %s18, 3
        %s186 = smul.addr %s183, 4
        %s187 = sadd.s32 %s185, %s186
        %s188 = smul.addr %s187, 8
        %s189 = scalar_lea.vmem %s0, %s188
      $region20: #{encoder_decoder_forward.57} parent=15 // pred_fallthru
        _
      // Predicated region
      $region21: #{encoder_decoder_forward.57} parent=15 // pred_check
        %p190 = pneg %p72
      $region22: #{encoder_decoder_forward.57} parent=15 // pred_check_branch
        %192 = sbr.rel (%p190) target = $region24
      $region23: #{encoder_decoder_forward.57} parent=15 // pred_region
        %p193 = scmp.lt.s32.totalorder %s17, 1
        %s194 = scalar_select %p193, %s17, 1
        %p195 = scmp.lt.s32.totalorder %s18, 3
        %s196 = scalar_select %p195, %s18, 3
        %s197 = smul.addr %s194, 4
        %s198 = sadd.s32 %s196, %s197
        %s199 = smul.addr %s198, 8
        %s200 = scalar_lea.vmem %s1, %s199
      $region24: #{encoder_decoder_forward.57} parent=15 // pred_fallthru
        _
      // Predicated region
      $region25: #{encoder_decoder_forward.57} parent=15 // pred_check
        %p201 = pneg %p100
      $region26: #{encoder_decoder_forward.57} parent=15 // pred_check_branch
        %203 = sbr.rel (%p201) target = $region28
      $region27: #{encoder_decoder_forward.57} parent=15 // pred_region
        %p204 = scmp.lt.s32.totalorder %s17, 1
        %s205 = scalar_select %p204, %s17, 1
        %p206 = scmp.lt.s32.totalorder %s18, 3
        %s207 = scalar_select %p206, %s18, 3
        %s208 = smul.addr %s205, 4
        %s209 = sadd.s32 %s207, %s208
        %s210 = smul.addr %s209, 8
        %s211 = scalar_lea.vmem %s2, %s210
      $region28: #{encoder_decoder_forward.57} parent=15 // pred_fallthru
        _
      // Predicated region
      $region29: #{encoder_decoder_forward.57} parent=15 // pred_check
        %p212 = pneg %p126
      $region30: #{encoder_decoder_forward.57} parent=15 // pred_check_branch
        %214 = sbr.rel (%p212) target = $region32
      $region31: #{encoder_decoder_forward.57} parent=15 // pred_region
        %p215 = scmp.lt.s32.totalorder %s17, 1
        %s216 = scalar_select %p215, %s17, 1
        %s217 = smul.addr %s216, 8
        %s218 = scalar_lea.vmem %s3, %s217
      $region32: #{encoder_decoder_forward.57} parent=15 // pred_fallthru
        _
    $region16: #{encoder_decoder_forward.57} parent=5 // pred_fallthru
      _
    %p219 = scmp.le.s32.totalorder 1, %s10
    %p220 = scmp.lt.s32.totalorder %s10, 9
    %p221 = pnand %p219, %p220
    %p222 = pneg %p221
    // Predicated region
    $region33: #{encoder_decoder_forward.57} parent=5 // pred_check
      _
    $region34: #{encoder_decoder_forward.57} parent=5 // pred_check_branch
      %224 = sbr.rel (%p221) target = $region36
    $region35: #{encoder_decoder_forward.57} parent=5 // pred_region
      %s225 = ssub.s32 %s10, 1
      %p226 = scmp.lt.s32.totalorder %s19, 1
      %s227 = scalar_select %p226, %s19, 1
      %p228 = scmp.lt.s32.totalorder %s20, 3
      %s229 = scalar_select %p228, %s20, 3
      %s230 = smul.addr %s227, 4
      %s231 = sadd.s32 %s229, %s230
      %s232 = smul.addr %s231, 8
      %s233 = scalar_lea.vmem %s0, %s232
      %p234 = pneg %p50
      %p235 = pneg %p47
      %p236 = scmp.lt.s32.totalorder %s19, 1
      %s237 = scalar_select %p236, %s19, 1
      %p238 = scmp.lt.s32.totalorder %s20, 3
      %s239 = scalar_select %p238, %s20, 3
      %s240 = smul.addr %s237, 4
      %s241 = sadd.s32 %s239, %s240
      %s242 = smul.addr %s241, 8
      %s243 = scalar_lea.vmem %s1, %s242
      %p244 = pneg %p78
      %p245 = pneg %p75
      %p246 = scmp.lt.s32.totalorder %s19, 1
      %s247 = scalar_select %p246, %s19, 1
      %p248 = scmp.lt.s32.totalorder %s20, 3
      %s249 = scalar_select %p248, %s20, 3
      %s250 = smul.addr %s247, 4
      %s251 = sadd.s32 %s249, %s250
      %s252 = smul.addr %s251, 8
      %s253 = scalar_lea.vmem %s2, %s252
      %p254 = pneg %p106
      %p255 = pneg %p103
      %p256 = scmp.lt.s32.totalorder %s19, 1
      %s257 = scalar_select %p256, %s19, 1
      %s258 = smul.addr %s257, 8
      %s259 = scalar_lea.vmem %s3, %s258
      %p260 = pneg %p132
      %p261 = pneg %p129
      %p262 = pneg %p160
      %p263 = pneg %p157
      %p264 = scmp.lt.s32.totalorder %s19, 1
      %s265 = scalar_select %p264, %s19, 1
      %p266 = scmp.lt.s32.totalorder %s20, 3
      %s267 = scalar_select %p266, %s20, 3
      %s268 = smul.addr %s265, 4
      %s269 = sadd.s32 %s267, %s268
      %s270 = smul.addr %s269, 8
      %s271 = scalar_lea.vmem %s4, %s270
      %p272 = scmp.lt.s32.totalorder %s19, 1
      %s273 = scalar_select %p272, %s19, 1
      %p274 = scmp.lt.s32.totalorder %s20, 3
      %s275 = scalar_select %p274, %s20, 3
      %s276 = smul.addr %s273, 4
      %s277 = sadd.s32 %s275, %s276
      %s278 = smul.addr %s277, 8
      %s279 = scalar_lea.vmem %s0, %s278
      %p280 = scmp.lt.s32.totalorder %s19, 1
      %s281 = scalar_select %p280, %s19, 1
      %p282 = scmp.lt.s32.totalorder %s20, 3
      %s283 = scalar_select %p282, %s20, 3
      %s284 = smul.addr %s281, 4
      %s285 = sadd.s32 %s283, %s284
      %s286 = smul.addr %s285, 8
      %s287 = scalar_lea.vmem %s1, %s286
      %p288 = scmp.lt.s32.totalorder %s19, 1
      %s289 = scalar_select %p288, %s19, 1
      %p290 = scmp.lt.s32.totalorder %s20, 3
      %s291 = scalar_select %p290, %s20, 3
      %s292 = smul.addr %s289, 4
      %s293 = sadd.s32 %s291, %s292
      %s294 = smul.addr %s293, 8
      %s295 = scalar_lea.vmem %s2, %s294
      %p296 = scmp.lt.s32.totalorder %s19, 1
      %s297 = scalar_select %p296, %s19, 1
      %s298 = smul.addr %s297, 8
      %s299 = scalar_lea.vmem %s3, %s298
      %p300 = scmp.lt.s32.totalorder %s19, 1
      %s301 = scalar_select %p300, %s19, 1
      %p302 = scmp.lt.s32.totalorder %s20, 3
      %s303 = scalar_select %p302, %s20, 3
      %s304 = smul.addr %s301, 4
      %s305 = sadd.s32 %s303, %s304
      %s306 = smul.addr %s305, 8
      %s307 = scalar_lea.vmem %s4, %s306
      %v308 = vld [vmem:[%s279] sm:$0xff]
      %v309 = vld [vmem:[%s287] sm:$0xff]
      %v310 = vld [vmem:[%s295] sm:$0xff]
      %vm311 = vcmask 261120
      %v313 = vsel %vm311, %v308, 0
      %v316 = vsel %vm311, %v309, 0
      %318 = vmatprep.subr.mxu0 0.0
      %319 = vmatpush1.xpose.msra.mxu0 %v316
      %320 = vmatprep.subr.mxu0 0.0
      %321 = vmatpush1.xpose.msra.mxu0 0.0
      %322 = vmatprep.subr.mxu0 0.0
      %323 = vmatpush1.xpose.msra.mxu0 0.0
      %324 = vmatprep.subr.mxu0 0.0
      %325 = vmatpush1.xpose.msra.mxu0 0.0
      %326 = vmatprep.subr.mxu0 0.0
      %327 = vmatpush1.xpose.msra.mxu0 0.0
      %328 = vmatprep.subr.mxu0 0.0
      %329 = vmatpush1.xpose.msra.mxu0 0.0
      %330 = vmatprep.subr.mxu0 0.0
      %331 = vmatpush1.xpose.msra.mxu0 0.0
      %332 = vmatprep.subr.mxu0 0.0
      %333 = vmatpush1.xpose.msra.mxu0 0.0
      %334 = vmatprep.subr.mxu0 0.0
      %335 = vmatpush1.xpose.msra.mxu0 0.0
      %336 = vmatprep.subr.mxu0 0.0
      %337 = vmatpush1.xpose.msra.mxu0 0.0
      %338 = vmatprep.subr.mxu0 0.0
      %339 = vmatpush1.xpose.msra.mxu0 0.0
      %340 = vmatprep.subr.mxu0 0.0
      %341 = vmatpush1.xpose.msra.mxu0 0.0
      %342 = vmatprep.subr.mxu0 0.0
      %343 = vmatpush1.xpose.msra.mxu0 0.0
      %344 = vmatprep.subr.mxu0 0.0
      %345 = vmatpush1.xpose.msra.mxu0 0.0
      %346 = vmatprep.subr.mxu0 0.0
      %347 = vmatpush1.xpose.msra.mxu0 0.0
      %348 = vmatprep.subr.mxu0 0.0
      %349 = vmatpush1.xpose.msra.mxu0 0.0
      %350 = vmatprep.subr.mxu0 0.0
      %351 = vmatpush1.xpose.msra.mxu0 0.0
      %352 = vmatprep.subr.mxu0 0.0
      %353 = vmatpush1.xpose.msra.mxu0 0.0
      %354 = vmatprep.subr.mxu0 0.0
      %355 = vmatpush1.xpose.msra.mxu0 0.0
      %356 = vmatprep.subr.mxu0 0.0
      %357 = vmatpush1.xpose.msra.mxu0 0.0
      %358 = vmatprep.subr.mxu0 0.0
      %359 = vmatpush1.xpose.msra.mxu0 0.0
      %360 = vmatprep.subr.mxu0 0.0
      %361 = vmatpush1.xpose.msra.mxu0 0.0
      %362 = vmatprep.subr.mxu0 0.0
      %363 = vmatpush1.xpose.msra.mxu0 0.0
      %364 = vmatprep.subr.mxu0 0.0
      %365 = vmatpush1.xpose.msra.mxu0 0.0
      %366 = vmatprep.subr.mxu0 0.0
      %367 = vmatpush1.xpose.msra.mxu0 0.0
      %368 = vmatprep.subr.mxu0 0.0
      %369 = vmatpush1.xpose.msra.mxu0 0.0
      %370 = vmatprep.subr.mxu0 0.0
      %371 = vmatpush1.xpose.msra.mxu0 0.0
      %372 = vmatprep.subr.mxu0 0.0
      %373 = vmatpush1.xpose.msra.mxu0 0.0
      %374 = vmatprep.subr.mxu0 0.0
      %375 = vmatpush1.xpose.msra.mxu0 0.0
      %376 = vmatprep.subr.mxu0 0.0
      %377 = vmatpush1.xpose.msra.mxu0 0.0
      %378 = vmatprep.subr.mxu0 0.0
      %379 = vmatpush1.xpose.msra.mxu0 0.0
      %380 = vmatprep.subr.mxu0 0.0
      %381 = vmatpush1.xpose.msra.mxu0 0.0
      %382 = vmatprep.mubr.f32.mxu0 0.0
      %383 = vmatmul.mubr.f32.gmra.mrb[0].mxu0 %v313
      %v384 = vpop.f32.mrb[0].mxu0
      %v385 = vadd.f32 0.0, %v384
      %v386 = vpop.f32.mrb[0].mxu0
      %387 = vdwg.mxu0
      %v388 = vmul.f32 %v385, 0.17677669
      %v389 = vld [vmem:[%s299] sm:$0xff]
      %v390 = vadd.f32 %v388, %v389
      %vm391 = vcmask 64512
      %v392 = vsel %vm391, %v390, -inf
      %393 = vmax.xlane.f32.xlu0 %v392
      %v394 = vpop.xlane.xlu0 %393
      %v395 = vsub.f32 %v390, %v394
      %v396 = vmul.f32 %v395, 1.442695
      %v397 = vpow.pop %v396
      %v398 = vsel %vm391, %v397, 0.0
      %399 = vadd.xlane.f32.xlu0 %v398
      %v400 = vpop.xlane.xlu0 %399
      %v401 = vrcp.pop %v400
      %v402 = vmul.f32 %v397, %v401
      %v404 = vsel %vm391, %v402, 0
      %406 = vmatprep.subr.mxu0 0.0
      %407 = vmatpush1.msra.mxu0 %v310
      %408 = vmatprep.subr.mxu0 0.0
      %409 = vmatpush1.msra.mxu0 0.0
      %410 = vmatprep.subr.mxu0 0.0
      %411 = vmatpush1.msra.mxu0 0.0
      %412 = vmatprep.subr.mxu0 0.0
      %413 = vmatpush1.msra.mxu0 0.0
      %414 = vmatprep.subr.mxu0 0.0
      %415 = vmatpush1.msra.mxu0 0.0
      %416 = vmatprep.subr.mxu0 0.0
      %417 = vmatpush1.msra.mxu0 0.0
      %418 = vmatprep.subr.mxu0 0.0
      %419 = vmatpush1.msra.mxu0 0.0
      %420 = vmatprep.subr.mxu0 0.0
      %421 = vmatpush1.msra.mxu0 0.0
      %422 = vmatprep.subr.mxu0 0.0
      %423 = vmatpush1.msra.mxu0 0.0
      %424 = vmatprep.subr.mxu0 0.0
      %425 = vmatpush1.msra.mxu0 0.0
      %426 = vmatprep.subr.mxu0 0.0
      %427 = vmatpush1.msra.mxu0 0.0
      %428 = vmatprep.subr.mxu0 0.0
      %429 = vmatpush1.msra.mxu0 0.0
      %430 = vmatprep.subr.mxu0 0.0
      %431 = vmatpush1.msra.mxu0 0.0
      %432 = vmatprep.subr.mxu0 0.0
      %433 = vmatpush1.msra.mxu0 0.0
      %434 = vmatprep.subr.mxu0 0.0
      %435 = vmatpush1.msra.mxu0 0.0
      %436 = vmatprep.subr.mxu0 0.0
      %437 = vmatpush1.msra.mxu0 0.0
      %438 = vmatprep.subr.mxu0 0.0
      %439 = vmatpush1.msra.mxu0 0.0
      %440 = vmatprep.subr.mxu0 0.0
      %441 = vmatpush1.msra.mxu0 0.0
      %442 = vmatprep.subr.mxu0 0.0
      %443 = vmatpush1.msra.mxu0 0.0
      %444 = vmatprep.subr.mxu0 0.0
      %445 = vmatpush1.msra.mxu0 0.0
      %446 = vmatprep.subr.mxu0 0.0
      %447 = vmatpush1.msra.mxu0 0.0
      %448 = vmatprep.subr.mxu0 0.0
      %449 = vmatpush1.msra.mxu0 0.0
      %450 = vmatprep.subr.mxu0 0.0
      %451 = vmatpush1.msra.mxu0 0.0
      %452 = vmatprep.subr.mxu0 0.0
      %453 = vmatpush1.msra.mxu0 0.0
      %454 = vmatprep.subr.mxu0 0.0
      %455 = vmatpush1.msra.mxu0 0.0
      %456 = vmatprep.subr.mxu0 0.0
      %457 = vmatpush1.msra.mxu0 0.0
      %458 = vmatprep.subr.mxu0 0.0
      %459 = vmatpush1.msra.mxu0 0.0
      %460 = vmatprep.subr.mxu0 0.0
      %461 = vmatpush1.msra.mxu0 0.0
      %462 = vmatprep.subr.mxu0 0.0
      %463 = vmatpush1.msra.mxu0 0.0
      %464 = vmatprep.subr.mxu0 0.0
      %465 = vmatpush1.msra.mxu0 0.0
      %466 = vmatprep.subr.mxu0 0.0
      %467 = vmatpush1.msra.mxu0 0.0
      %468 = vmatprep.subr.mxu0 0.0
      %469 = vmatpush1.msra.mxu0 0.0
      %470 = vmatprep.mubr.f32.mxu0 0.0
      %471 = vmatmul.mubr.f32.gmra.mrb[0].mxu0 %v404
      %v472 = vpop.f32.mrb[0].mxu0
      %v473 = vadd.f32 0.0, %v472
      %v474 = vpop.f32.mrb[0].mxu0
      %475 = vdwg.mxu0
      %476 = vst.msk [vmem:[%s307] sm:$0xff] %vm311, %v473
      %p477 = scmp.lt.s32.totalorder %s19, 1
      %s478 = scalar_select %p477, %s19, 1
      %p479 = scmp.lt.s32.totalorder %s20, 3
      %s480 = scalar_select %p479, %s20, 3
      %s481 = smul.addr %s478, 4
      %s482 = sadd.s32 %s480, %s481
      %s483 = smul.addr %s482, 8
      %s484 = scalar_lea.vmem %s4, %s483
      // Predicated region
      $region37: #{encoder_decoder_forward.57} parent=35 // pred_check
        %p485 = pneg %p157
      $region38: #{encoder_decoder_forward.57} parent=35 // pred_check_branch
        %487 = sbr.rel (%p485) target = $region40
      $region39: #{encoder_decoder_forward.57} parent=35 // pred_region
        _
      $region40: #{encoder_decoder_forward.57} parent=35 // pred_fallthru
        _
    $region36: #{encoder_decoder_forward.57} parent=5 // pred_fallthru
      _
    %p488 = scmp.le.s32.totalorder 2, %s10
    // Predicated region
    $region41: #{encoder_decoder_forward.57} parent=5 // pred_check
      %p489 = pneg %p488
    $region42: #{encoder_decoder_forward.57} parent=5 // pred_check_branch
      %491 = sbr.rel (%p489) target = $region44
    $region43: #{encoder_decoder_forward.57} parent=5 // pred_region
      %s492 = ssub.s32 %s10, 2
      // Predicated region
      $region45: #{encoder_decoder_forward.57} parent=43 // pred_check
        %p493 = pneg %p163
      $region46: #{encoder_decoder_forward.57} parent=43 // pred_check_branch
        %495 = sbr.rel (%p493) target = $region48
      $region47: #{encoder_decoder_forward.57} parent=43 // pred_region
        %p496 = scmp.lt.s32.totalorder %s21, 1
        %s497 = scalar_select %p496, %s21, 1
        %p498 = scmp.lt.s32.totalorder %s22, 3
        %s499 = scalar_select %p498, %s22, 3
        %s500 = smul.addr %s497, 4
        %s501 = sadd.s32 %s499, %s500
        %s502 = smul.addr %s501, 8
        %s503 = scalar_lea.vmem %s4, %s502
      $region48: #{encoder_decoder_forward.57} parent=43 // pred_fallthru
        _
    $region44: #{encoder_decoder_forward.57} parent=5 // pred_fallthru
      _
  $region6: #{encoder_decoder_forward.57} parent=0 // loop_footer
    %s14 = sadd.s32 1, %s10
  $region7: #{encoder_decoder_forward.57} parent=0 // loop_footer_branch
    %9 = sbr.rel target = $region3
  $region8: #{encoder_decoder_forward.57} parent=0 // loop_exit
    _

// kernel: encoder_decoder_forward.58
$region0: #{encoder_decoder_forward.58}
  #allocation0 [shape = 'u32[]', space=smem, size = 0x4, offset = 0x4, fixed_abs, tag = 'smem constant byte address 0x4 - core index']
  #allocation1 [shape = 'u32[144,128]{1,0:T(1,128)}', space=vmem, size = 0x12000, scoped, tag = 'internal scratch']
  %s0 = inlined_call_operand.vmem [shape: f32[16,128], index: 0, kind: input, shape index: {}]
  %s1 = inlined_call_operand.vmem [shape: f32[128,128], index: 1, kind: input, shape index: {}]
  %s2 = inlined_call_operand.vmem [shape: f32[1,128], index: 2, kind: input, shape index: {}]
  %s3 = inlined_call_operand.vmem [shape: f32[16,128], index: 3, kind: input, shape index: {}]
  %s4 = inlined_call_operand.vmem [shape: f32[16,128], index: 4, kind: output, shape index: {}]
  %s5 = sld [smem:[#allocation0]]
  $region26: #{encoder_decoder_forward.58} parent=0
    _
  %s7 = ssub.s32 1, %s5
  %s8 = scalar_select 0, %s7, %s5
  // Predicated region
  $region2: #{encoder_decoder_forward.58} parent=0 // pred_check
    _
  $region3: #{encoder_decoder_forward.58} parent=0 // pred_check_branch
    %10 = sbr.rel (0) target = $region5
  $region4: #{encoder_decoder_forward.58} parent=0 // pred_region
    _
  $region5: #{encoder_decoder_forward.58} parent=0 // pred_fallthru
    _
  // Predicated region
  $region6: #{encoder_decoder_forward.58} parent=0 // pred_check
    _
  $region7: #{encoder_decoder_forward.58} parent=0 // pred_check_branch
    %12 = sbr.rel (0) target = $region9
  $region8: #{encoder_decoder_forward.58} parent=0 // pred_region
    _
  $region9: #{encoder_decoder_forward.58} parent=0 // pred_fallthru
    _
  // Predicated region
  $region10: #{encoder_decoder_forward.58} parent=0 // pred_check
    _
  $region11: #{encoder_decoder_forward.58} parent=0 // pred_check_branch
    %14 = sbr.rel (0) target = $region13
  $region12: #{encoder_decoder_forward.58} parent=0 // pred_region
    _
  $region13: #{encoder_decoder_forward.58} parent=0 // pred_fallthru
    _
  // Predicated region
  $region14: #{encoder_decoder_forward.58} parent=0 // pred_check
    _
  $region15: #{encoder_decoder_forward.58} parent=0 // pred_check_branch
    %16 = sbr.rel (0) target = $region17
  $region16: #{encoder_decoder_forward.58} parent=0 // pred_region
    _
  $region17: #{encoder_decoder_forward.58} parent=0 // pred_fallthru
    _
  %v17 = vld [vmem:[%s0] sm:$0xff]
  %v18 = vld [vmem:[%s0 + $0x8] sm:$0xff]
  %v19 = vld [vmem:[%s1] sm:$0xff]
  %v20 = vld [vmem:[%s1 + $0x8] sm:$0xff]
  %v21 = vld [vmem:[%s1 + $0x10] sm:$0xff]
  %v22 = vld [vmem:[%s1 + $0x18] sm:$0xff]
  %v23 = vld [vmem:[%s1 + $0x20] sm:$0xff]
  %v24 = vld [vmem:[%s1 + $0x28] sm:$0xff]
  %v25 = vld [vmem:[%s1 + $0x30] sm:$0xff]
  %v26 = vld [vmem:[%s1 + $0x38] sm:$0xff]
  %v27 = vld [vmem:[%s1 + $0x40] sm:$0xff]
  %v28 = vld [vmem:[%s1 + $0x48] sm:$0xff]
  %v29 = vld [vmem:[%s1 + $0x50] sm:$0xff]
  %v30 = vld [vmem:[%s1 + $0x58] sm:$0xff]
  %v31 = vld [vmem:[%s1 + $0x60] sm:$0xff]
  %v32 = vld [vmem:[%s1 + $0x68] sm:$0xff]
  %v33 = vld [vmem:[%s1 + $0x70] sm:$0xff]
  %v34 = vld [vmem:[%s1 + $0x78] sm:$0xff]
  %v35 = vld [vmem:[%s2] sm:$0x1]
  %v37 = vlaneseq
  %v38 = vshrl.u32 %v37, 7
  %v39 = vsub.s32 0, %v38
  %v40 = vrot.slane %v35, %v39
  %42 = vmatprep.subr.mxu0 0.0
  %43 = vmatpush1.msra.mxu0 %v19
  %44 = vmatprep.subr.mxu0 0.0
  %45 = vmatpush1.msra.mxu0 %v20
  %46 = vmatprep.subr.mxu0 0.0
  %47 = vmatpush1.msra.mxu0 %v21
  %48 = vmatprep.subr.mxu0 0.0
  %49 = vmatpush1.msra.mxu0 %v22
  %50 = vmatprep.subr.mxu0 0.0
  %51 = vmatpush1.msra.mxu0 %v23
  %52 = vmatprep.subr.mxu0 0.0
  %53 = vmatpush1.msra.mxu0 %v24
  %54 = vmatprep.subr.mxu0 0.0
  %55 = vmatpush1.msra.mxu0 %v25
  %56 = vmatprep.subr.mxu0 0.0
  %57 = vmatpush1.msra.mxu0 %v26
  %58 = vmatprep.subr.mxu0 0.0
  %59 = vmatpush1.msra.mxu0 %v27
  %60 = vmatprep.subr.mxu0 0.0
  %61 = vmatpush1.msra.mxu0 %v28
  %62 = vmatprep.subr.mxu0 0.0
  %63 = vmatpush1.msra.mxu0 %v29
  %64 = vmatprep.subr.mxu0 0.0
  %65 = vmatpush1.msra.mxu0 %v30
  %66 = vmatprep.subr.mxu0 0.0
  %67 = vmatpush1.msra.mxu0 %v31
  %68 = vmatprep.subr.mxu0 0.0
  %69 = vmatpush1.msra.mxu0 %v32
  %70 = vmatprep.subr.mxu0 0.0
  %71 = vmatpush1.msra.mxu0 %v33
  %72 = vmatprep.subr.mxu0 0.0
  %73 = vmatpush1.msra.mxu0 %v34
  %74 = vmatprep.subr.mxu0 0.0
  %75 = vmatpush1.msra.mxu0 0.0
  %76 = vmatprep.subr.mxu0 0.0
  %77 = vmatpush1.msra.mxu0 0.0
  %78 = vmatprep.subr.mxu0 0.0
  %79 = vmatpush1.msra.mxu0 0.0
  %80 = vmatprep.subr.mxu0 0.0
  %81 = vmatpush1.msra.mxu0 0.0
  %82 = vmatprep.subr.mxu0 0.0
  %83 = vmatpush1.msra.mxu0 0.0
  %84 = vmatprep.subr.mxu0 0.0
  %85 = vmatpush1.msra.mxu0 0.0
  %86 = vmatprep.subr.mxu0 0.0
  %87 = vmatpush1.msra.mxu0 0.0
  %88 = vmatprep.subr.mxu0 0.0
  %89 = vmatpush1.msra.mxu0 0.0
  %90 = vmatprep.subr.mxu0 0.0
  %91 = vmatpush1.msra.mxu0 0.0
  %92 = vmatprep.subr.mxu0 0.0
  %93 = vmatpush1.msra.mxu0 0.0
  %94 = vmatprep.subr.mxu0 0.0
  %95 = vmatpush1.msra.mxu0 0.0
  %96 = vmatprep.subr.mxu0 0.0
  %97 = vmatpush1.msra.mxu0 0.0
  %98 = vmatprep.subr.mxu0 0.0
  %99 = vmatpush1.msra.mxu0 0.0
  %100 = vmatprep.subr.mxu0 0.0
  %101 = vmatpush1.msra.mxu0 0.0
  %102 = vmatprep.subr.mxu0 0.0
  %103 = vmatpush1.msra.mxu0 0.0
  %104 = vmatprep.subr.mxu0 0.0
  %105 = vmatpush1.msra.mxu0 0.0
  %106 = vmatprep.mubr.f32.mxu0 0.0
  %107 = vmatmul.mubr.f32.gmra.mrb[0].mxu0 %v17
  %v108 = vpop.f32.mrb[0].mxu0
  %v109 = vadd.f32 %v40, %v108
  %v110 = vpop.f32.mrb[0].mxu0
  %111 = vmatprep.mubr.f32.mxu0 0.0
  %112 = vmatmul.mubr.f32.gmra.mrb[0].mxu0 %v18
  %v113 = vpop.f32.mrb[0].mxu0
  %v114 = vadd.f32 %v40, %v113
  %v115 = vpop.f32.mrb[0].mxu0
  %116 = vdwg.mxu0
  %v117 = vld [vmem:[%s3] sm:$0xff]
  %v118 = vld [vmem:[%s3 + $0x8] sm:$0xff]
  %v119 = vadd.f32 %v109, %v117
  %v120 = vadd.f32 %v114, %v118
  %121 = vst [vmem:[%s4] sm:$0xff] %v119
  %122 = vst [vmem:[%s4 + $0x8] sm:$0xff] %v120
  // Predicated region
  $region18: #{encoder_decoder_forward.58} parent=0 // pred_check
    _
  $region19: #{encoder_decoder_forward.58} parent=0 // pred_check_branch
    %124 = sbr.rel (0) target = $region21
  $region20: #{encoder_decoder_forward.58} parent=0 // pred_region
    _
  $region21: #{encoder_decoder_forward.58} parent=0 // pred_fallthru
    _
  // Predicated region
  $region22: #{encoder_decoder_forward.58} parent=0 // pred_check
    _
  $region23: #{encoder_decoder_forward.58} parent=0 // pred_check_branch
    %126 = sbr.rel (0) target = $region25
  $region24: #{encoder_decoder_forward.58} parent=0 // pred_region
    _
  $region25: #{encoder_decoder_forward.58} parent=0 // pred_fallthru
    _

// kernel: encoder_decoder_forward.61
$region0: #{encoder_decoder_forward.61}
  #allocation0 [shape = 'u32[]', space=smem, size = 0x4, offset = 0x4, fixed_abs, tag = 'smem constant byte address 0x4 - core index']
  #allocation1 [shape = 'u32[144,128]{1,0:T(1,128)}', space=vmem, size = 0x12000, scoped, tag = 'internal scratch']
  %s0 = inlined_call_operand.vmem [shape: f32[16,256], index: 0, kind: input, shape index: {}]
  %s1 = inlined_call_operand.vmem [shape: f32[256,128], index: 1, kind: input, shape index: {}]
  %s2 = inlined_call_operand.vmem [shape: f32[1,128], index: 2, kind: input, shape index: {}]
  %s3 = inlined_call_operand.vmem [shape: f32[16,128], index: 3, kind: input, shape index: {}]
  %s4 = inlined_call_operand.vmem [shape: f32[16,128], index: 4, kind: output, shape index: {}]
  %s5 = sld [smem:[#allocation0]]
  $region26: #{encoder_decoder_forward.61} parent=0
    _
  %s7 = ssub.s32 1, %s5
  %s8 = scalar_select 0, %s7, %s5
  // Predicated region
  $region2: #{encoder_decoder_forward.61} parent=0 // pred_check
    _
  $region3: #{encoder_decoder_forward.61} parent=0 // pred_check_branch
    %10 = sbr.rel (0) target = $region5
  $region4: #{encoder_decoder_forward.61} parent=0 // pred_region
    _
  $region5: #{encoder_decoder_forward.61} parent=0 // pred_fallthru
    _
  // Predicated region
  $region6: #{encoder_decoder_forward.61} parent=0 // pred_check
    _
  $region7: #{encoder_decoder_forward.61} parent=0 // pred_check_branch
    %12 = sbr.rel (0) target = $region9
  $region8: #{encoder_decoder_forward.61} parent=0 // pred_region
    _
  $region9: #{encoder_decoder_forward.61} parent=0 // pred_fallthru
    _
  // Predicated region
  $region10: #{encoder_decoder_forward.61} parent=0 // pred_check
    _
  $region11: #{encoder_decoder_forward.61} parent=0 // pred_check_branch
    %14 = sbr.rel (0) target = $region13
  $region12: #{encoder_decoder_forward.61} parent=0 // pred_region
    _
  $region13: #{encoder_decoder_forward.61} parent=0 // pred_fallthru
    _
  // Predicated region
  $region14: #{encoder_decoder_forward.61} parent=0 // pred_check
    _
  $region15: #{encoder_decoder_forward.61} parent=0 // pred_check_branch
    %16 = sbr.rel (0) target = $region17
  $region16: #{encoder_decoder_forward.61} parent=0 // pred_region
    _
  $region17: #{encoder_decoder_forward.61} parent=0 // pred_fallthru
    _
  %v17 = vld [vmem:[%s0] sm:$0xff]
  %v18 = vld [vmem:[%s0 + $0x8] sm:$0xff]
  %v19 = vld [vmem:[%s0 + $0x10] sm:$0xff]
  %v20 = vld [vmem:[%s0 + $0x18] sm:$0xff]
  %v21 = vld [vmem:[%s1] sm:$0xff]
  %v22 = vld [vmem:[%s1 + $0x8] sm:$0xff]
  %v23 = vld [vmem:[%s1 + $0x10] sm:$0xff]
  %v24 = vld [vmem:[%s1 + $0x18] sm:$0xff]
  %v25 = vld [vmem:[%s1 + $0x20] sm:$0xff]
  %v26 = vld [vmem:[%s1 + $0x28] sm:$0xff]
  %v27 = vld [vmem:[%s1 + $0x30] sm:$0xff]
  %v28 = vld [vmem:[%s1 + $0x38] sm:$0xff]
  %v29 = vld [vmem:[%s1 + $0x40] sm:$0xff]
  %v30 = vld [vmem:[%s1 + $0x48] sm:$0xff]
  %v31 = vld [vmem:[%s1 + $0x50] sm:$0xff]
  %v32 = vld [vmem:[%s1 + $0x58] sm:$0xff]
  %v33 = vld [vmem:[%s1 + $0x60] sm:$0xff]
  %v34 = vld [vmem:[%s1 + $0x68] sm:$0xff]
  %v35 = vld [vmem:[%s1 + $0x70] sm:$0xff]
  %v36 = vld [vmem:[%s1 + $0x78] sm:$0xff]
  %v37 = vld [vmem:[%s1 + $0x80] sm:$0xff]
  %v38 = vld [vmem:[%s1 + $0x88] sm:$0xff]
  %v39 = vld [vmem:[%s1 + $0x90] sm:$0xff]
  %v40 = vld [vmem:[%s1 + $0x98] sm:$0xff]
  %v41 = vld [vmem:[%s1 + $0xa0] sm:$0xff]
  %v42 = vld [vmem:[%s1 + $0xa8] sm:$0xff]
  %v43 = vld [vmem:[%s1 + $0xb0] sm:$0xff]
  %v44 = vld [vmem:[%s1 + $0xb8] sm:$0xff]
  %v45 = vld [vmem:[%s1 + $0xc0] sm:$0xff]
  %v46 = vld [vmem:[%s1 + $0xc8] sm:$0xff]
  %v47 = vld [vmem:[%s1 + $0xd0] sm:$0xff]
  %v48 = vld [vmem:[%s1 + $0xd8] sm:$0xff]
  %v49 = vld [vmem:[%s1 + $0xe0] sm:$0xff]
  %v50 = vld [vmem:[%s1 + $0xe8] sm:$0xff]
  %v51 = vld [vmem:[%s1 + $0xf0] sm:$0xff]
  %v52 = vld [vmem:[%s1 + $0xf8] sm:$0xff]
  %v53 = vld [vmem:[%s2] sm:$0x1]
  %v55 = vlaneseq
  %v56 = vshrl.u32 %v55, 7
  %v57 = vsub.s32 0, %v56
  %v58 = vrot.slane %v53, %v57
  %60 = vmatprep.subr.mxu0 0.0
  %61 = vmatpush1.msra.mxu0 %v21
  %62 = vmatprep.subr.mxu0 0.0
  %63 = vmatpush1.msra.mxu0 %v22
  %64 = vmatprep.subr.mxu0 0.0
  %65 = vmatpush1.msra.mxu0 %v23
  %66 = vmatprep.subr.mxu0 0.0
  %67 = vmatpush1.msra.mxu0 %v24
  %68 = vmatprep.subr.mxu0 0.0
  %69 = vmatpush1.msra.mxu0 %v25
  %70 = vmatprep.subr.mxu0 0.0
  %71 = vmatpush1.msra.mxu0 %v26
  %72 = vmatprep.subr.mxu0 0.0
  %73 = vmatpush1.msra.mxu0 %v27
  %74 = vmatprep.subr.mxu0 0.0
  %75 = vmatpush1.msra.mxu0 %v28
  %76 = vmatprep.subr.mxu0 0.0
  %77 = vmatpush1.msra.mxu0 %v29
  %78 = vmatprep.subr.mxu0 0.0
  %79 = vmatpush1.msra.mxu0 %v30
  %80 = vmatprep.subr.mxu0 0.0
  %81 = vmatpush1.msra.mxu0 %v31
  %82 = vmatprep.subr.mxu0 0.0
  %83 = vmatpush1.msra.mxu0 %v32
  %84 = vmatprep.subr.mxu0 0.0
  %85 = vmatpush1.msra.mxu0 %v33
  %86 = vmatprep.subr.mxu0 0.0
  %87 = vmatpush1.msra.mxu0 %v34
  %88 = vmatprep.subr.mxu0 0.0
  %89 = vmatpush1.msra.mxu0 %v35
  %90 = vmatprep.subr.mxu0 0.0
  %91 = vmatpush1.msra.mxu0 %v36
  %92 = vmatprep.subr.mxu0 0.0
  %93 = vmatpush1.msra.mxu0 %v37
  %94 = vmatprep.subr.mxu0 0.0
  %95 = vmatpush1.msra.mxu0 %v38
  %96 = vmatprep.subr.mxu0 0.0
  %97 = vmatpush1.msra.mxu0 %v39
  %98 = vmatprep.subr.mxu0 0.0
  %99 = vmatpush1.msra.mxu0 %v40
  %100 = vmatprep.subr.mxu0 0.0
  %101 = vmatpush1.msra.mxu0 %v41
  %102 = vmatprep.subr.mxu0 0.0
  %103 = vmatpush1.msra.mxu0 %v42
  %104 = vmatprep.subr.mxu0 0.0
  %105 = vmatpush1.msra.mxu0 %v43
  %106 = vmatprep.subr.mxu0 0.0
  %107 = vmatpush1.msra.mxu0 %v44
  %108 = vmatprep.subr.mxu0 0.0
  %109 = vmatpush1.msra.mxu0 %v45
  %110 = vmatprep.subr.mxu0 0.0
  %111 = vmatpush1.msra.mxu0 %v46
  %112 = vmatprep.subr.mxu0 0.0
  %113 = vmatpush1.msra.mxu0 %v47
  %114 = vmatprep.subr.mxu0 0.0
  %115 = vmatpush1.msra.mxu0 %v48
  %116 = vmatprep.subr.mxu0 0.0
  %117 = vmatpush1.msra.mxu0 %v49
  %118 = vmatprep.subr.mxu0 0.0
  %119 = vmatpush1.msra.mxu0 %v50
  %120 = vmatprep.subr.mxu0 0.0
  %121 = vmatpush1.msra.mxu0 %v51
  %122 = vmatprep.subr.mxu0 0.0
  %123 = vmatpush1.msra.mxu0 %v52
  %124 = vmatprep.mubr.f32.mxu0 %v18
  %125 = vmatmul.mubr.f32.gmra.mrb[0].mxu0 %v17
  %v126 = vpop.f32.mrb[0].mxu0
  %v127 = vadd.f32 %v58, %v126
  %v128 = vpop.f32.mrb[0].mxu0
  %129 = vmatprep.mubr.f32.mxu0 %v20
  %130 = vmatmul.mubr.f32.gmra.mrb[0].mxu0 %v19
  %v131 = vpop.f32.mrb[0].mxu0
  %v132 = vadd.f32 %v58, %v131
  %v133 = vpop.f32.mrb[0].mxu0
  %134 = vdwg.mxu0
  %v135 = vld [vmem:[%s3] sm:$0xff]
  %v136 = vld [vmem:[%s3 + $0x8] sm:$0xff]
  %v137 = vadd.f32 %v127, %v135
  %v138 = vadd.f32 %v132, %v136
  %139 = vst [vmem:[%s4] sm:$0xff] %v137
  %140 = vst [vmem:[%s4 + $0x8] sm:$0xff] %v138
  // Predicated region
  $region18: #{encoder_decoder_forward.61} parent=0 // pred_check
    _
  $region19: #{encoder_decoder_forward.61} parent=0 // pred_check_branch
    %142 = sbr.rel (0) target = $region21
  $region20: #{encoder_decoder_forward.61} parent=0 // pred_region
    _
  $region21: #{encoder_decoder_forward.61} parent=0 // pred_fallthru
    _
  // Predicated region
  $region22: #{encoder_decoder_forward.61} parent=0 // pred_check
    _
  $region23: #{encoder_decoder_forward.61} parent=0 // pred_check_branch
    %144 = sbr.rel (0) target = $region25
  $region24: #{encoder_decoder_forward.61} parent=0 // pred_region
    _
  $region25: #{encoder_decoder_forward.61} parent=0 // pred_fallthru
    _

// kernel: encoder_decoder_forward.83
$region0: #{encoder_decoder_forward.83}
  #allocation0 [shape = 'u32[]', space=smem, size = 0x4, offset = 0x4, fixed_abs, tag = 'smem constant byte address 0x4 - core index']
  #allocation1 [shape = 'u32[144,128]{1,0:T(1,128)}', space=vmem, size = 0x12000, scoped, tag = 'internal scratch']
  %s0 = inlined_call_operand.vmem [shape: f32[2,4,16,32], index: 0, kind: input, shape index: {}]
  %s1 = inlined_call_operand.vmem [shape: f32[2,4,8,32], index: 1, kind: input, shape index: {}]
  %s2 = inlined_call_operand.vmem [shape: f32[2,4,8,32], index: 2, kind: input, shape index: {}]
  %s3 = inlined_call_operand.vmem [shape: f32[2,16,8], index: 3, kind: input, shape index: {}]
  %s4 = inlined_call_operand.vmem [shape: f32[2,4,16,32], index: 4, kind: output, shape index: {}]
  %s5 = sld [smem:[#allocation0]]
  $region49: #{encoder_decoder_forward.83} parent=0
    _
  %s7 = ssub.s32 1, %s5
  %s8 = scalar_select 0, %s7, %s5
  loop: start=0, step=1, limit=10
  $region2: #{encoder_decoder_forward.83} parent=0 // loop_pre_header
    _
  $region3: #{encoder_decoder_forward.83} parent=0 // loop_header
    %s10 = sphi 0, %s14
    %p11 = scmp.ge.s32.totalorder %s10, 10
    %s17 = sphi 0, %s29
    %s18 = sphi 0, %s25
    %s19 = sphi 0, %s17
    %s20 = sphi 0, %s18
    %s21 = sphi 0, %s19
    %s22 = sphi 0, %s20
    %s34 = sphi 0, %s36
    %s37 = sphi 0, %s34
    %s38 = sphi 0, %s37
    %s54 = sphi 0, %s38
    %s62 = sphi 0, %s64
    %s65 = sphi 0, %s62
    %s66 = sphi 0, %s65
    %s82 = sphi 0, %s66
    %s90 = sphi 0, %s92
    %s93 = sphi 0, %s90
    %s94 = sphi 0, %s93
    %s110 = sphi 0, %s94
    %s116 = sphi 0, %s118
    %s119 = sphi 0, %s116
    %s120 = sphi 0, %s119
    %s136 = sphi 0, %s120
    %s144 = sphi 0, %s146
    %s147 = sphi 0, %s144
    %s148 = sphi 0, %s147
    %s164 = sphi 0, %s148
  $region4: #{encoder_decoder_forward.83} parent=0 // loop_header_branch
    %13 = sbr.rel (%p11) target = $region8
  $region5: #{encoder_decoder_forward.83} parent=0 // loop_body
    %s15 = ssub.s32 %s10, 1
    %s16 = ssub.s32 %s10, 2
    %s23 = sadd.s32 1, %s18
    %p24 = scmp.ge.s32.totalorder %s23, 4
    %s25 = scalar_select %p24, 0, %s23
    %s26 = sadd.s32 1, %s17
    %s27 = scalar_select %p24, %s26, %s17
    %p28 = scmp.ge.s32.totalorder %s27, 2
    %s29 = scalar_select %p28, 0, %s27
    %s30 = ssub.s32 %s17, %s29
    %s31 = ssub.s32 %s18, %s25
    %s32 = sor.u32 %s30, %s31
    %p33 = scmp.eq.s32.totalorder %s32, 0
    %s35 = sadd.s32 %s34, 1
    %s36 = scalar_select %p33, %s34, %s35
    %p39 = pneg %p33
    %p40 = scmp.eq.s32.totalorder %s10, 7
    %p41 = por %p39, %p40
    %p42 = scmp.ne.s32.totalorder %s34, %s37
    %p43 = scmp.eq.s32.totalorder %s10, 0
    %p44 = por %p42, %p43
    %p45 = scmp.ne.s32.totalorder %s34, %s37
    %p46 = scmp.eq.s32.totalorder %s15, 7
    %p47 = por %p45, %p46
    %p48 = scmp.ne.s32.totalorder %s37, %s38
    %p49 = scmp.eq.s32.totalorder %s15, 0
    %p50 = por %p48, %p49
    %p51 = scmp.ne.s32.totalorder %s37, %s38
    %p52 = scmp.eq.s32.totalorder %s16, 7
    %p53 = por %p51, %p52
    %p55 = scmp.ne.s32.totalorder %s38, %s54
    %p56 = scmp.eq.s32.totalorder %s16, 0
    %p57 = por %p55, %p56
    %s58 = ssub.s32 %s17, %s29
    %s59 = ssub.s32 %s18, %s25
    %s60 = sor.u32 %s58, %s59
    %p61 = scmp.eq.s32.totalorder %s60, 0
    %s63 = sadd.s32 %s62, 1
    %s64 = scalar_select %p61, %s62, %s63
    %p67 = pneg %p61
    %p68 = scmp.eq.s32.totalorder %s10, 7
    %p69 = por %p67, %p68
    %p70 = scmp.ne.s32.totalorder %s62, %s65
    %p71 = scmp.eq.s32.totalorder %s10, 0
    %p72 = por %p70, %p71
    %p73 = scmp.ne.s32.totalorder %s62, %s65
    %p74 = scmp.eq.s32.totalorder %s15, 7
    %p75 = por %p73, %p74
    %p76 = scmp.ne.s32.totalorder %s65, %s66
    %p77 = scmp.eq.s32.totalorder %s15, 0
    %p78 = por %p76, %p77
    %p79 = scmp.ne.s32.totalorder %s65, %s66
    %p80 = scmp.eq.s32.totalorder %s16, 7
    %p81 = por %p79, %p80
    %p83 = scmp.ne.s32.totalorder %s66, %s82
    %p84 = scmp.eq.s32.totalorder %s16, 0
    %p85 = por %p83, %p84
    %s86 = ssub.s32 %s17, %s29
    %s87 = ssub.s32 %s18, %s25
    %s88 = sor.u32 %s86, %s87
    %p89 = scmp.eq.s32.totalorder %s88, 0
    %s91 = sadd.s32 %s90, 1
    %s92 = scalar_select %p89, %s90, %s91
    %p95 = pneg %p89
    %p96 = scmp.eq.s32.totalorder %s10, 7
    %p97 = por %p95, %p96
    %p98 = scmp.ne.s32.totalorder %s90, %s93
    %p99 = scmp.eq.s32.totalorder %s10, 0
    %p100 = por %p98, %p99
    %p101 = scmp.ne.s32.totalorder %s90, %s93
    %p102 = scmp.eq.s32.totalorder %s15, 7
    %p103 = por %p101, %p102
    %p104 = scmp.ne.s32.totalorder %s93, %s94
    %p105 = scmp.eq.s32.totalorder %s15, 0
    %p106 = por %p104, %p105
    %p107 = scmp.ne.s32.totalorder %s93, %s94
    %p108 = scmp.eq.s32.totalorder %s16, 7
    %p109 = por %p107, %p108
    %p111 = scmp.ne.s32.totalorder %s94, %s110
    %p112 = scmp.eq.s32.totalorder %s16, 0
    %p113 = por %p111, %p112
    %s114 = ssub.s32 %s17, %s29
    %p115 = scmp.eq.s32.totalorder %s114, 0
    %s117 = sadd.s32 %s116, 1
    %s118 = scalar_select %p115, %s116, %s117
    %p121 = pneg %p115
    %p122 = scmp.eq.s32.totalorder %s10, 7
    %p123 = por %p121, %p122
    %p124 = scmp.ne.s32.totalorder %s116, %s119
    %p125 = scmp.eq.s32.totalorder %s10, 0
    %p126 = por %p124, %p125
    %p127 = scmp.ne.s32.totalorder %s116, %s119
    %p128 = scmp.eq.s32.totalorder %s15, 7
    %p129 = por %p127, %p128
    %p130 = scmp.ne.s32.totalorder %s119, %s120
    %p131 = scmp.eq.s32.totalorder %s15, 0
    %p132 = por %p130, %p131
    %p133 = scmp.ne.s32.totalorder %s119, %s120
    %p134 = scmp.eq.s32.totalorder %s16, 7
    %p135 = por %p133, %p134
    %p137 = scmp.ne.s32.totalorder %s120, %s136
    %p138 = scmp.eq.s32.totalorder %s16, 0
    %p139 = por %p137, %p138
    %s140 = ssub.s32 %s17, %s29
    %s141 = ssub.s32 %s18, %s25
    %s142 = sor.u32 %s140, %s141
    %p143 = scmp.eq.s32.totalorder %s142, 0
    %s145 = sadd.s32 %s144, 1
    %s146 = scalar_select %p143, %s144, %s145
    %p149 = pneg %p143
    %p150 = scmp.eq.s32.totalorder %s10, 7
    %p151 = por %p149, %p150
    %p152 = scmp.ne.s32.totalorder %s144, %s147
    %p153 = scmp.eq.s32.totalorder %s10, 0
    %p154 = por %p152, %p153
    %p155 = scmp.ne.s32.totalorder %s144, %s147
    %p156 = scmp.eq.s32.totalorder %s15, 7
    %p157 = por %p155, %p156
    %p158 = scmp.ne.s32.totalorder %s147, %s148
    %p159 = scmp.eq.s32.totalorder %s15, 0
    %p160 = por %p158, %p159
    %p161 = scmp.ne.s32.totalorder %s147, %s148
    %p162 = scmp.eq.s32.totalorder %s16, 7
    %p163 = por %p161, %p162
    %p165 = scmp.ne.s32.totalorder %s148, %s164
    %p166 = scmp.eq.s32.totalorder %s16, 0
    %p167 = por %p165, %p166
    %p168 = scmp.le.s32.totalorder 1, %s10
    %p169 = scmp.lt.s32.totalorder %s10, 9
    %p170 = pnand %p168, %p169
    %p171 = pneg %p170
    // Predicated region
    $region9: #{encoder_decoder_forward.83} parent=5 // pred_check
      _
    $region10: #{encoder_decoder_forward.83} parent=5 // pred_check_branch
      %173 = sbr.rel (%p170) target = $region12
    $region11: #{encoder_decoder_forward.83} parent=5 // pred_region
      %s174 = ssub.s32 %s10, 1
    $region12: #{encoder_decoder_forward.83} parent=5 // pred_fallthru
      _
    %p175 = scmp.lt.s32.totalorder %s10, 8
    // Predicated region
    $region13: #{encoder_decoder_forward.83} parent=5 // pred_check
      %p176 = pneg %p175
    $region14: #{encoder_decoder_forward.83} parent=5 // pred_check_branch
      %178 = sbr.rel (%p176) target = $region16
    $region15: #{encoder_decoder_forward.83} parent=5 // pred_region
      // Predicated region
      $region17: #{encoder_decoder_forward.83} parent=15 // pred_check
        %p179 = pneg %p44
      $region18: #{encoder_decoder_forward.83} parent=15 // pred_check_branch
        %181 = sbr.rel (%p179) target = $region20
      $region19: #{encoder_decoder_forward.83} parent=15 // pred_region
        %p182 = scmp.lt.s32.totalorder %s17, 1
        %s183 = scalar_select %p182, %s17, 1
        %p184 = scmp.lt.s32.totalorder %s18, 3
        %s185 = scalar_select %p184, %s18, 3
        %s186 = smul.addr %s185, 2
        %s187 = smul.addr %s183, 8
        %s188 = sadd.s32 %s186, %s187
        %s189 = smul.addr %s188, 8
        %s190 = scalar_lea.vmem %s0, %s189
      $region20: #{encoder_decoder_forward.83} parent=15 // pred_fallthru
        _
      // Predicated region
      $region21: #{encoder_decoder_forward.83} parent=15 // pred_check
        %p191 = pneg %p72
      $region22: #{encoder_decoder_forward.83} parent=15 // pred_check_branch
        %193 = sbr.rel (%p191) target = $region24
      $region23: #{encoder_decoder_forward.83} parent=15 // pred_region
        %p194 = scmp.lt.s32.totalorder %s17, 1
        %s195 = scalar_select %p194, %s17, 1
        %p196 = scmp.lt.s32.totalorder %s18, 3
        %s197 = scalar_select %p196, %s18, 3
        %s198 = smul.addr %s195, 4
        %s199 = sadd.s32 %s197, %s198
        %s200 = smul.addr %s199, 8
        %s201 = scalar_lea.vmem %s1, %s200
      $region24: #{encoder_decoder_forward.83} parent=15 // pred_fallthru
        _
      // Predicated region
      $region25: #{encoder_decoder_forward.83} parent=15 // pred_check
        %p202 = pneg %p100
      $region26: #{encoder_decoder_forward.83} parent=15 // pred_check_branch
        %204 = sbr.rel (%p202) target = $region28
      $region27: #{encoder_decoder_forward.83} parent=15 // pred_region
        %p205 = scmp.lt.s32.totalorder %s17, 1
        %s206 = scalar_select %p205, %s17, 1
        %p207 = scmp.lt.s32.totalorder %s18, 3
        %s208 = scalar_select %p207, %s18, 3
        %s209 = smul.addr %s206, 4
        %s210 = sadd.s32 %s208, %s209
        %s211 = smul.addr %s210, 8
        %s212 = scalar_lea.vmem %s2, %s211
      $region28: #{encoder_decoder_forward.83} parent=15 // pred_fallthru
        _
      // Predicated region
      $region29: #{encoder_decoder_forward.83} parent=15 // pred_check
        %p213 = pneg %p126
      $region30: #{encoder_decoder_forward.83} parent=15 // pred_check_branch
        %215 = sbr.rel (%p213) target = $region32
      $region31: #{encoder_decoder_forward.83} parent=15 // pred_region
        %p216 = scmp.lt.s32.totalorder %s17, 1
        %s217 = scalar_select %p216, %s17, 1
        %s218 = smul.addr %s217, 2
        %s219 = smul.addr %s218, 8
        %s220 = scalar_lea.vmem %s3, %s219
      $region32: #{encoder_decoder_forward.83} parent=15 // pred_fallthru
        _
    $region16: #{encoder_decoder_forward.83} parent=5 // pred_fallthru
      _
    %p221 = scmp.le.s32.totalorder 1, %s10
    %p222 = scmp.lt.s32.totalorder %s10, 9
    %p223 = pnand %p221, %p222
    %p224 = pneg %p223
    // Predicated region
    $region33: #{encoder_decoder_forward.83} parent=5 // pred_check
      _
    $region34: #{encoder_decoder_forward.83} parent=5 // pred_check_branch
      %226 = sbr.rel (%p223) target = $region36
    $region35: #{encoder_decoder_forward.83} parent=5 // pred_region
      %s227 = ssub.s32 %s10, 1
      %p228 = scmp.lt.s32.totalorder %s19, 1
      %s229 = scalar_select %p228, %s19, 1
      %p230 = scmp.lt.s32.totalorder %s20, 3
      %s231 = scalar_select %p230, %s20, 3
      %s232 = smul.addr %s231, 2
      %s233 = smul.addr %s229, 8
      %s234 = sadd.s32 %s232, %s233
      %s235 = smul.addr %s234, 8
      %s236 = scalar_lea.vmem %s0, %s235
      %p237 = pneg %p50
      %p238 = pneg %p47
      %p239 = scmp.lt.s32.totalorder %s19, 1
      %s240 = scalar_select %p239, %s19, 1
      %p241 = scmp.lt.s32.totalorder %s20, 3
      %s242 = scalar_select %p241, %s20, 3
      %s243 = smul.addr %s240, 4
      %s244 = sadd.s32 %s242, %s243
      %s245 = smul.addr %s244, 8
      %s246 = scalar_lea.vmem %s1, %s245
      %p247 = pneg %p78
      %p248 = pneg %p75
      %p249 = scmp.lt.s32.totalorder %s19, 1
      %s250 = scalar_select %p249, %s19, 1
      %p251 = scmp.lt.s32.totalorder %s20, 3
      %s252 = scalar_select %p251, %s20, 3
      %s253 = smul.addr %s250, 4
      %s254 = sadd.s32 %s252, %s253
      %s255 = smul.addr %s254, 8
      %s256 = scalar_lea.vmem %s2, %s255
      %p257 = pneg %p106
      %p258 = pneg %p103
      %p259 = scmp.lt.s32.totalorder %s19, 1
      %s260 = scalar_select %p259, %s19, 1
      %s261 = smul.addr %s260, 2
      %s262 = smul.addr %s261, 8
      %s263 = scalar_lea.vmem %s3, %s262
      %p264 = pneg %p132
      %p265 = pneg %p129
      %p266 = pneg %p160
      %p267 = pneg %p157
      %p268 = scmp.lt.s32.totalorder %s19, 1
      %s269 = scalar_select %p268, %s19, 1
      %p270 = scmp.lt.s32.totalorder %s20, 3
      %s271 = scalar_select %p270, %s20, 3
      %s272 = smul.addr %s271, 2
      %s273 = smul.addr %s269, 8
      %s274 = sadd.s32 %s272, %s273
      %s275 = smul.addr %s274, 8
      %s276 = scalar_lea.vmem %s4, %s275
      %p277 = scmp.lt.s32.totalorder %s19, 1
      %s278 = scalar_select %p277, %s19, 1
      %p279 = scmp.lt.s32.totalorder %s20, 3
      %s280 = scalar_select %p279, %s20, 3
      %s281 = smul.addr %s280, 2
      %s282 = smul.addr %s278, 8
      %s283 = sadd.s32 %s281, %s282
      %s284 = smul.addr %s283, 8
      %s285 = scalar_lea.vmem %s0, %s284
      %p286 = scmp.lt.s32.totalorder %s19, 1
      %s287 = scalar_select %p286, %s19, 1
      %p288 = scmp.lt.s32.totalorder %s20, 3
      %s289 = scalar_select %p288, %s20, 3
      %s290 = smul.addr %s287, 4
      %s291 = sadd.s32 %s289, %s290
      %s292 = smul.addr %s291, 8
      %s293 = scalar_lea.vmem %s1, %s292
      %p294 = scmp.lt.s32.totalorder %s19, 1
      %s295 = scalar_select %p294, %s19, 1
      %p296 = scmp.lt.s32.totalorder %s20, 3
      %s297 = scalar_select %p296, %s20, 3
      %s298 = smul.addr %s295, 4
      %s299 = sadd.s32 %s297, %s298
      %s300 = smul.addr %s299, 8
      %s301 = scalar_lea.vmem %s2, %s300
      %p302 = scmp.lt.s32.totalorder %s19, 1
      %s303 = scalar_select %p302, %s19, 1
      %s304 = smul.addr %s303, 2
      %s305 = smul.addr %s304, 8
      %s306 = scalar_lea.vmem %s3, %s305
      %p307 = scmp.lt.s32.totalorder %s19, 1
      %s308 = scalar_select %p307, %s19, 1
      %p309 = scmp.lt.s32.totalorder %s20, 3
      %s310 = scalar_select %p309, %s20, 3
      %s311 = smul.addr %s310, 2
      %s312 = smul.addr %s308, 8
      %s313 = sadd.s32 %s311, %s312
      %s314 = smul.addr %s313, 8
      %s315 = scalar_lea.vmem %s4, %s314
      %v316 = vld [vmem:[%s285] sm:$0xff]
      %v317 = vld [vmem:[%s285 + $0x8] sm:$0xff]
      %v318 = vld [vmem:[%s293] sm:$0xff]
      %v319 = vld [vmem:[%s301] sm:$0xff]
      %vm320 = vcmask 261120
      %v322 = vsel %vm320, %v316, 0
      %v325 = vsel %vm320, %v317, 0
      %v328 = vsel %vm320, %v318, 0
      %330 = vmatprep.subr.mxu0 0.0
      %331 = vmatpush1.xpose.msra.mxu0 %v328
      %332 = vmatprep.subr.mxu0 0.0
      %333 = vmatpush1.xpose.msra.mxu0 0.0
      %334 = vmatprep.subr.mxu0 0.0
      %335 = vmatpush1.xpose.msra.mxu0 0.0
      %336 = vmatprep.subr.mxu0 0.0
      %337 = vmatpush1.xpose.msra.mxu0 0.0
      %338 = vmatprep.subr.mxu0 0.0
      %339 = vmatpush1.xpose.msra.mxu0 0.0
      %340 = vmatprep.subr.mxu0 0.0
      %341 = vmatpush1.xpose.msra.mxu0 0.0
      %342 = vmatprep.subr.mxu0 0.0
      %343 = vmatpush1.xpose.msra.mxu0 0.0
      %344 = vmatprep.subr.mxu0 0.0
      %345 = vmatpush1.xpose.msra.mxu0 0.0
      %346 = vmatprep.subr.mxu0 0.0
      %347 = vmatpush1.xpose.msra.mxu0 0.0
      %348 = vmatprep.subr.mxu0 0.0
      %349 = vmatpush1.xpose.msra.mxu0 0.0
      %350 = vmatprep.subr.mxu0 0.0
      %351 = vmatpush1.xpose.msra.mxu0 0.0
      %352 = vmatprep.subr.mxu0 0.0
      %353 = vmatpush1.xpose.msra.mxu0 0.0
      %354 = vmatprep.subr.mxu0 0.0
      %355 = vmatpush1.xpose.msra.mxu0 0.0
      %356 = vmatprep.subr.mxu0 0.0
      %357 = vmatpush1.xpose.msra.mxu0 0.0
      %358 = vmatprep.subr.mxu0 0.0
      %359 = vmatpush1.xpose.msra.mxu0 0.0
      %360 = vmatprep.subr.mxu0 0.0
      %361 = vmatpush1.xpose.msra.mxu0 0.0
      %362 = vmatprep.subr.mxu0 0.0
      %363 = vmatpush1.xpose.msra.mxu0 0.0
      %364 = vmatprep.subr.mxu0 0.0
      %365 = vmatpush1.xpose.msra.mxu0 0.0
      %366 = vmatprep.subr.mxu0 0.0
      %367 = vmatpush1.xpose.msra.mxu0 0.0
      %368 = vmatprep.subr.mxu0 0.0
      %369 = vmatpush1.xpose.msra.mxu0 0.0
      %370 = vmatprep.subr.mxu0 0.0
      %371 = vmatpush1.xpose.msra.mxu0 0.0
      %372 = vmatprep.subr.mxu0 0.0
      %373 = vmatpush1.xpose.msra.mxu0 0.0
      %374 = vmatprep.subr.mxu0 0.0
      %375 = vmatpush1.xpose.msra.mxu0 0.0
      %376 = vmatprep.subr.mxu0 0.0
      %377 = vmatpush1.xpose.msra.mxu0 0.0
      %378 = vmatprep.subr.mxu0 0.0
      %379 = vmatpush1.xpose.msra.mxu0 0.0
      %380 = vmatprep.subr.mxu0 0.0
      %381 = vmatpush1.xpose.msra.mxu0 0.0
      %382 = vmatprep.subr.mxu0 0.0
      %383 = vmatpush1.xpose.msra.mxu0 0.0
      %384 = vmatprep.subr.mxu0 0.0
      %385 = vmatpush1.xpose.msra.mxu0 0.0
      %386 = vmatprep.subr.mxu0 0.0
      %387 = vmatpush1.xpose.msra.mxu0 0.0
      %388 = vmatprep.subr.mxu0 0.0
      %389 = vmatpush1.xpose.msra.mxu0 0.0
      %390 = vmatprep.subr.mxu0 0.0
      %391 = vmatpush1.xpose.msra.mxu0 0.0
      %392 = vmatprep.subr.mxu0 0.0
      %393 = vmatpush1.xpose.msra.mxu0 0.0
      %394 = vmatprep.mubr.f32.mxu0 0.0
      %395 = vmatmul.mubr.f32.gmra.mrb[0].mxu0 %v322
      %v396 = vpop.f32.mrb[0].mxu0
      %v397 = vadd.f32 0.0, %v396
      %v398 = vpop.f32.mrb[0].mxu0
      %399 = vmatprep.mubr.f32.mxu0 0.0
      %400 = vmatmul.mubr.f32.gmra.mrb[0].mxu0 %v325
      %v401 = vpop.f32.mrb[0].mxu0
      %v402 = vadd.f32 0.0, %v401
      %v403 = vpop.f32.mrb[0].mxu0
      %404 = vdwg.mxu0
      %v405 = vmul.f32 %v397, 0.17677669
      %v406 = vmul.f32 %v402, 0.17677669
      %v407 = vld [vmem:[%s306] sm:$0xff]
      %v408 = vld [vmem:[%s306 + $0x8] sm:$0xff]
      %v409 = vadd.f32 %v405, %v407
      %v410 = vadd.f32 %v406, %v408
      %vm411 = vcmask 64512
      %v412 = vsel %vm411, %v409, -inf
      %413 = vmax.xlane.f32.xlu0 %v412
      %v414 = vpop.xlane.xlu0 %413
      %v415 = vsel %vm411, %v410, -inf
      %416 = vmax.xlane.f32.xlu0 %v415
      %v417 = vpop.xlane.xlu0 %416
      %v418 = vsub.f32 %v409, %v414
      %v419 = vsub.f32 %v410, %v417
      %v420 = vmul.f32 %v418, 1.442695
      %v421 = vpow.pop %v420
      %v422 = vmul.f32 %v419, 1.442695
      %v423 = vpow.pop %v422
      %v424 = vsel %vm411, %v421, 0.0
      %425 = vadd.xlane.f32.xlu0 %v424
      %v426 = vpop.xlane.xlu0 %425
      %v427 = vsel %vm411, %v423, 0.0
      %428 = vadd.xlane.f32.xlu0 %v427
      %v429 = vpop.xlane.xlu0 %428
      %v430 = vrcp.pop %v426
      %v431 = vmul.f32 %v421, %v430
      %v432 = vrcp.pop %v429
      %v433 = vmul.f32 %v423, %v432
      %v435 = vsel %vm411, %v431, 0
      %v438 = vsel %vm411, %v433, 0
      %440 = vmatprep.subr.mxu0 0.0
      %441 = vmatpush1.msra.mxu0 %v319
      %442 = vmatprep.subr.mxu0 0.0
      %443 = vmatpush1.msra.mxu0 0.0
      %444 = vmatprep.subr.mxu0 0.0
      %445 = vmatpush1.msra.mxu0 0.0
      %446 = vmatprep.subr.mxu0 0.0
      %447 = vmatpush1.msra.mxu0 0.0
      %448 = vmatprep.subr.mxu0 0.0
      %449 = vmatpush1.msra.mxu0 0.0
      %450 = vmatprep.subr.mxu0 0.0
      %451 = vmatpush1.msra.mxu0 0.0
      %452 = vmatprep.subr.mxu0 0.0
      %453 = vmatpush1.msra.mxu0 0.0
      %454 = vmatprep.subr.mxu0 0.0
      %455 = vmatpush1.msra.mxu0 0.0
      %456 = vmatprep.subr.mxu0 0.0
      %457 = vmatpush1.msra.mxu0 0.0
      %458 = vmatprep.subr.mxu0 0.0
      %459 = vmatpush1.msra.mxu0 0.0
      %460 = vmatprep.subr.mxu0 0.0
      %461 = vmatpush1.msra.mxu0 0.0
      %462 = vmatprep.subr.mxu0 0.0
      %463 = vmatpush1.msra.mxu0 0.0
      %464 = vmatprep.subr.mxu0 0.0
      %465 = vmatpush1.msra.mxu0 0.0
      %466 = vmatprep.subr.mxu0 0.0
      %467 = vmatpush1.msra.mxu0 0.0
      %468 = vmatprep.subr.mxu0 0.0
      %469 = vmatpush1.msra.mxu0 0.0
      %470 = vmatprep.subr.mxu0 0.0
      %471 = vmatpush1.msra.mxu0 0.0
      %472 = vmatprep.subr.mxu0 0.0
      %473 = vmatpush1.msra.mxu0 0.0
      %474 = vmatprep.subr.mxu0 0.0
      %475 = vmatpush1.msra.mxu0 0.0
      %476 = vmatprep.subr.mxu0 0.0
      %477 = vmatpush1.msra.mxu0 0.0
      %478 = vmatprep.subr.mxu0 0.0
      %479 = vmatpush1.msra.mxu0 0.0
      %480 = vmatprep.subr.mxu0 0.0
      %481 = vmatpush1.msra.mxu0 0.0
      %482 = vmatprep.subr.mxu0 0.0
      %483 = vmatpush1.msra.mxu0 0.0
      %484 = vmatprep.subr.mxu0 0.0
      %485 = vmatpush1.msra.mxu0 0.0
      %486 = vmatprep.subr.mxu0 0.0
      %487 = vmatpush1.msra.mxu0 0.0
      %488 = vmatprep.subr.mxu0 0.0
      %489 = vmatpush1.msra.mxu0 0.0
      %490 = vmatprep.subr.mxu0 0.0
      %491 = vmatpush1.msra.mxu0 0.0
      %492 = vmatprep.subr.mxu0 0.0
      %493 = vmatpush1.msra.mxu0 0.0
      %494 = vmatprep.subr.mxu0 0.0
      %495 = vmatpush1.msra.mxu0 0.0
      %496 = vmatprep.subr.mxu0 0.0
      %497 = vmatpush1.msra.mxu0 0.0
      %498 = vmatprep.subr.mxu0 0.0
      %499 = vmatpush1.msra.mxu0 0.0
      %500 = vmatprep.subr.mxu0 0.0
      %501 = vmatpush1.msra.mxu0 0.0
      %502 = vmatprep.subr.mxu0 0.0
      %503 = vmatpush1.msra.mxu0 0.0
      %504 = vmatprep.mubr.f32.mxu0 0.0
      %505 = vmatmul.mubr.f32.gmra.mrb[0].mxu0 %v435
      %v506 = vpop.f32.mrb[0].mxu0
      %v507 = vadd.f32 0.0, %v506
      %v508 = vpop.f32.mrb[0].mxu0
      %509 = vmatprep.mubr.f32.mxu0 0.0
      %510 = vmatmul.mubr.f32.gmra.mrb[0].mxu0 %v438
      %v511 = vpop.f32.mrb[0].mxu0
      %v512 = vadd.f32 0.0, %v511
      %v513 = vpop.f32.mrb[0].mxu0
      %514 = vdwg.mxu0
      %515 = vst.msk [vmem:[%s315] sm:$0xff] %vm320, %v507
      %516 = vst.msk [vmem:[%s315 + $0x8] sm:$0xff] %vm320, %v512
      %p517 = scmp.lt.s32.totalorder %s19, 1
      %s518 = scalar_select %p517, %s19, 1
      %p519 = scmp.lt.s32.totalorder %s20, 3
      %s520 = scalar_select %p519, %s20, 3
      %s521 = smul.addr %s520, 2
      %s522 = smul.addr %s518, 8
      %s523 = sadd.s32 %s521, %s522
      %s524 = smul.addr %s523, 8
      %s525 = scalar_lea.vmem %s4, %s524
      // Predicated region
      $region37: #{encoder_decoder_forward.83} parent=35 // pred_check
        %p526 = pneg %p157
      $region38: #{encoder_decoder_forward.83} parent=35 // pred_check_branch
        %528 = sbr.rel (%p526) target = $region40
      $region39: #{encoder_decoder_forward.83} parent=35 // pred_region
        _
      $region40: #{encoder_decoder_forward.83} parent=35 // pred_fallthru
        _
    $region36: #{encoder_decoder_forward.83} parent=5 // pred_fallthru
      _
    %p529 = scmp.le.s32.totalorder 2, %s10
    // Predicated region
    $region41: #{encoder_decoder_forward.83} parent=5 // pred_check
      %p530 = pneg %p529
    $region42: #{encoder_decoder_forward.83} parent=5 // pred_check_branch
      %532 = sbr.rel (%p530) target = $region44
    $region43: #{encoder_decoder_forward.83} parent=5 // pred_region
      %s533 = ssub.s32 %s10, 2
      // Predicated region
      $region45: #{encoder_decoder_forward.83} parent=43 // pred_check
        %p534 = pneg %p163
      $region46: #{encoder_decoder_forward.83} parent=43 // pred_check_branch
        %536 = sbr.rel (%p534) target = $region48
      $region47: #{encoder_decoder_forward.83} parent=43 // pred_region
        %p537 = scmp.lt.s32.totalorder %s21, 1
        %s538 = scalar_select %p537, %s21, 1
        %p539 = scmp.lt.s32.totalorder %s22, 3
        %s540 = scalar_select %p539, %s22, 3
        %s541 = smul.addr %s540, 2
        %s542 = smul.addr %s538, 8
        %s543 = sadd.s32 %s541, %s542
        %s544 = smul.addr %s543, 8
        %s545 = scalar_lea.vmem %s4, %s544
      $region48: #{encoder_decoder_forward.83} parent=43 // pred_fallthru
        _
    $region44: #{encoder_decoder_forward.83} parent=5 // pred_fallthru
      _
  $region6: #{encoder_decoder_forward.83} parent=0 // loop_footer
    %s14 = sadd.s32 1, %s10
  $region7: #{encoder_decoder_forward.83} parent=0 // loop_footer_branch
    %9 = sbr.rel target = $region3
  $region8: #{encoder_decoder_forward.83} parent=0 // loop_exit
    _

// kernel: encoder_decoder_forward.86
$region0: #{encoder_decoder_forward.86}
  #allocation0 [shape = 'u32[]', space=smem, size = 0x4, offset = 0x4, fixed_abs, tag = 'smem constant byte address 0x4 - core index']
  #allocation1 [shape = 'u32[144,128]{1,0:T(1,128)}', space=vmem, size = 0x12000, scoped, tag = 'internal scratch']
  %s0 = inlined_call_operand.vmem [shape: f32[32,128], index: 0, kind: input, shape index: {}]
  %s1 = inlined_call_operand.vmem [shape: f32[128,256], index: 1, kind: input, shape index: {}]
  %s2 = inlined_call_operand.vmem [shape: f32[1,256], index: 2, kind: input, shape index: {}]
  %s3 = inlined_call_operand.vmem [shape: f32[32,256], index: 3, kind: output, shape index: {}]
  %s4 = sld [smem:[#allocation0]]
  $region22: #{encoder_decoder_forward.86} parent=0
    _
  %s6 = ssub.s32 1, %s4
  %s7 = scalar_select 0, %s6, %s4
  // Predicated region
  $region2: #{encoder_decoder_forward.86} parent=0 // pred_check
    _
  $region3: #{encoder_decoder_forward.86} parent=0 // pred_check_branch
    %9 = sbr.rel (0) target = $region5
  $region4: #{encoder_decoder_forward.86} parent=0 // pred_region
    _
  $region5: #{encoder_decoder_forward.86} parent=0 // pred_fallthru
    _
  // Predicated region
  $region6: #{encoder_decoder_forward.86} parent=0 // pred_check
    _
  $region7: #{encoder_decoder_forward.86} parent=0 // pred_check_branch
    %11 = sbr.rel (0) target = $region9
  $region8: #{encoder_decoder_forward.86} parent=0 // pred_region
    _
  $region9: #{encoder_decoder_forward.86} parent=0 // pred_fallthru
    _
  // Predicated region
  $region10: #{encoder_decoder_forward.86} parent=0 // pred_check
    _
  $region11: #{encoder_decoder_forward.86} parent=0 // pred_check_branch
    %13 = sbr.rel (0) target = $region13
  $region12: #{encoder_decoder_forward.86} parent=0 // pred_region
    _
  $region13: #{encoder_decoder_forward.86} parent=0 // pred_fallthru
    _
  %v14 = vld [vmem:[%s0] sm:$0xff]
  %v15 = vld [vmem:[%s0 + $0x8] sm:$0xff]
  %v16 = vld [vmem:[%s0 + $0x10] sm:$0xff]
  %v17 = vld [vmem:[%s0 + $0x18] sm:$0xff]
  %v18 = vld [vmem:[%s1] sm:$0xff]
  %v19 = vld [vmem:[%s1 + $0x8] sm:$0xff]
  %v20 = vld [vmem:[%s1 + $0x10] sm:$0xff]
  %v21 = vld [vmem:[%s1 + $0x18] sm:$0xff]
  %v22 = vld [vmem:[%s1 + $0x20] sm:$0xff]
  %v23 = vld [vmem:[%s1 + $0x28] sm:$0xff]
  %v24 = vld [vmem:[%s1 + $0x30] sm:$0xff]
  %v25 = vld [vmem:[%s1 + $0x38] sm:$0xff]
  %v26 = vld [vmem:[%s1 + $0x40] sm:$0xff]
  %v27 = vld [vmem:[%s1 + $0x48] sm:$0xff]
  %v28 = vld [vmem:[%s1 + $0x50] sm:$0xff]
  %v29 = vld [vmem:[%s1 + $0x58] sm:$0xff]
  %v30 = vld [vmem:[%s1 + $0x60] sm:$0xff]
  %v31 = vld [vmem:[%s1 + $0x68] sm:$0xff]
  %v32 = vld [vmem:[%s1 + $0x70] sm:$0xff]
  %v33 = vld [vmem:[%s1 + $0x78] sm:$0xff]
  %v34 = vld [vmem:[%s1 + $0x80] sm:$0xff]
  %v35 = vld [vmem:[%s1 + $0x88] sm:$0xff]
  %v36 = vld [vmem:[%s1 + $0x90] sm:$0xff]
  %v37 = vld [vmem:[%s1 + $0x98] sm:$0xff]
  %v38 = vld [vmem:[%s1 + $0xa0] sm:$0xff]
  %v39 = vld [vmem:[%s1 + $0xa8] sm:$0xff]
  %v40 = vld [vmem:[%s1 + $0xb0] sm:$0xff]
  %v41 = vld [vmem:[%s1 + $0xb8] sm:$0xff]
  %v42 = vld [vmem:[%s1 + $0xc0] sm:$0xff]
  %v43 = vld [vmem:[%s1 + $0xc8] sm:$0xff]
  %v44 = vld [vmem:[%s1 + $0xd0] sm:$0xff]
  %v45 = vld [vmem:[%s1 + $0xd8] sm:$0xff]
  %v46 = vld [vmem:[%s1 + $0xe0] sm:$0xff]
  %v47 = vld [vmem:[%s1 + $0xe8] sm:$0xff]
  %v48 = vld [vmem:[%s1 + $0xf0] sm:$0xff]
  %v49 = vld [vmem:[%s1 + $0xf8] sm:$0xff]
  %v50 = vld [vmem:[%s2] sm:$0x3]
  %v52 = vlaneseq
  %v53 = vshrl.u32 %v52, 7
  %v54 = vsub.s32 0, %v53
  %v55 = vrot.slane %v50, %v54
  %v56 = vlaneseq
  %v57 = vshrl.u32 %v56, 7
  %v58 = vsub.s32 1, %v57
  %v59 = vrot.slane %v50, %v58
  %62 = vmatprep.subr.mxu0 %v19
  %63 = vmatpush1.msra.mxu0 %v18
  %64 = vmatprep.subr.mxu0 %v21
  %65 = vmatpush1.msra.mxu0 %v20
  %66 = vmatprep.subr.mxu0 %v23
  %67 = vmatpush1.msra.mxu0 %v22
  %68 = vmatprep.subr.mxu0 %v25
  %69 = vmatpush1.msra.mxu0 %v24
  %70 = vmatprep.subr.mxu0 %v27
  %71 = vmatpush1.msra.mxu0 %v26
  %72 = vmatprep.subr.mxu0 %v29
  %73 = vmatpush1.msra.mxu0 %v28
  %74 = vmatprep.subr.mxu0 %v31
  %75 = vmatpush1.msra.mxu0 %v30
  %76 = vmatprep.subr.mxu0 %v33
  %77 = vmatpush1.msra.mxu0 %v32
  %78 = vmatprep.subr.mxu0 %v35
  %79 = vmatpush1.msra.mxu0 %v34
  %80 = vmatprep.subr.mxu0 %v37
  %81 = vmatpush1.msra.mxu0 %v36
  %82 = vmatprep.subr.mxu0 %v39
  %83 = vmatpush1.msra.mxu0 %v38
  %84 = vmatprep.subr.mxu0 %v41
  %85 = vmatpush1.msra.mxu0 %v40
  %86 = vmatprep.subr.mxu0 %v43
  %87 = vmatpush1.msra.mxu0 %v42
  %88 = vmatprep.subr.mxu0 %v45
  %89 = vmatpush1.msra.mxu0 %v44
  %90 = vmatprep.subr.mxu0 %v47
  %91 = vmatpush1.msra.mxu0 %v46
  %92 = vmatprep.subr.mxu0 %v49
  %93 = vmatpush1.msra.mxu0 %v48
  %94 = vmatprep.subr.mxu0 0.0
  %95 = vmatpush1.msra.mxu0 0.0
  %96 = vmatprep.subr.mxu0 0.0
  %97 = vmatpush1.msra.mxu0 0.0
  %98 = vmatprep.subr.mxu0 0.0
  %99 = vmatpush1.msra.mxu0 0.0
  %100 = vmatprep.subr.mxu0 0.0
  %101 = vmatpush1.msra.mxu0 0.0
  %102 = vmatprep.subr.mxu0 0.0
  %103 = vmatpush1.msra.mxu0 0.0
  %104 = vmatprep.subr.mxu0 0.0
  %105 = vmatpush1.msra.mxu0 0.0
  %106 = vmatprep.subr.mxu0 0.0
  %107 = vmatpush1.msra.mxu0 0.0
  %108 = vmatprep.subr.mxu0 0.0
  %109 = vmatpush1.msra.mxu0 0.0
  %110 = vmatprep.subr.mxu0 0.0
  %111 = vmatpush1.msra.mxu0 0.0
  %112 = vmatprep.subr.mxu0 0.0
  %113 = vmatpush1.msra.mxu0 0.0
  %114 = vmatprep.subr.mxu0 0.0
  %115 = vmatpush1.msra.mxu0 0.0
  %116 = vmatprep.subr.mxu0 0.0
  %117 = vmatpush1.msra.mxu0 0.0
  %118 = vmatprep.subr.mxu0 0.0
  %119 = vmatpush1.msra.mxu0 0.0
  %120 = vmatprep.subr.mxu0 0.0
  %121 = vmatpush1.msra.mxu0 0.0
  %122 = vmatprep.subr.mxu0 0.0
  %123 = vmatpush1.msra.mxu0 0.0
  %124 = vmatprep.subr.mxu0 0.0
  %125 = vmatpush1.msra.mxu0 0.0
  %126 = vmatprep.mubr.f32.mxu0 0.0
  %127 = vmatmul.mubr.f32.gmra.mrb[0].mxu0 %v14
  %v128 = vpop.f32.mrb[0].mxu0
  %v129 = vadd.f32 %v55, %v128
  %v130 = vpop.f32.mrb[0].mxu0
  %v131 = vadd.f32 %v59, %v130
  %132 = vmatprep.mubr.f32.mxu0 0.0
  %133 = vmatmul.mubr.f32.gmra.mrb[0].mxu0 %v15
  %v134 = vpop.f32.mrb[0].mxu0
  %v135 = vadd.f32 %v55, %v134
  %v136 = vpop.f32.mrb[0].mxu0
  %v137 = vadd.f32 %v59, %v136
  %138 = vmatprep.mubr.f32.mxu0 0.0
  %139 = vmatmul.mubr.f32.gmra.mrb[0].mxu0 %v16
  %v140 = vpop.f32.mrb[0].mxu0
  %v141 = vadd.f32 %v55, %v140
  %v142 = vpop.f32.mrb[0].mxu0
  %v143 = vadd.f32 %v59, %v142
  %144 = vmatprep.mubr.f32.mxu0 0.0
  %145 = vmatmul.mubr.f32.gmra.mrb[0].mxu0 %v17
  %v146 = vpop.f32.mrb[0].mxu0
  %v147 = vadd.f32 %v55, %v146
  %v148 = vpop.f32.mrb[0].mxu0
  %v149 = vadd.f32 %v59, %v148
  %150 = vdwg.mxu0
  %v151 = vmax.f32 %v129, 0.0
  %v152 = vmax.f32 %v131, 0.0
  %v153 = vmax.f32 %v135, 0.0
  %v154 = vmax.f32 %v137, 0.0
  %v155 = vmax.f32 %v141, 0.0
  %v156 = vmax.f32 %v143, 0.0
  %v157 = vmax.f32 %v147, 0.0
  %v158 = vmax.f32 %v149, 0.0
  %159 = vst [vmem:[%s3] sm:$0xff] %v151
  %160 = vst [vmem:[%s3 + $0x8] sm:$0xff] %v152
  %161 = vst [vmem:[%s3 + $0x10] sm:$0xff] %v153
  %162 = vst [vmem:[%s3 + $0x18] sm:$0xff] %v154
  %163 = vst [vmem:[%s3 + $0x20] sm:$0xff] %v155
  %164 = vst [vmem:[%s3 + $0x28] sm:$0xff] %v156
  %165 = vst [vmem:[%s3 + $0x30] sm:$0xff] %v157
  %166 = vst [vmem:[%s3 + $0x38] sm:$0xff] %v158
  // Predicated region
  $region14: #{encoder_decoder_forward.86} parent=0 // pred_check
    _
  $region15: #{encoder_decoder_forward.86} parent=0 // pred_check_branch
    %168 = sbr.rel (0) target = $region17
  $region16: #{encoder_decoder_forward.86} parent=0 // pred_region
    _
  $region17: #{encoder_decoder_forward.86} parent=0 // pred_fallthru
    _
  // Predicated region
  $region18: #{encoder_decoder_forward.86} parent=0 // pred_check
    _
  $region19: #{encoder_decoder_forward.86} parent=0 // pred_check_branch
    %170 = sbr.rel (0) target = $region21
  $region20: #{encoder_decoder_forward.86} parent=0 // pred_region
    _
  $region21: #{encoder_decoder_forward.86} parent=0 // pred_fallthru
    _

// kernel: encoder_decoder_forward.87
$region0: #{encoder_decoder_forward.87}
  #allocation0 [shape = 'u32[]', space=smem, size = 0x4, offset = 0x4, fixed_abs, tag = 'smem constant byte address 0x4 - core index']
  #allocation1 [shape = 'u32[144,128]{1,0:T(1,128)}', space=vmem, size = 0x12000, scoped, tag = 'internal scratch']
  %s0 = inlined_call_operand.vmem [shape: f32[32,256], index: 0, kind: input, shape index: {}]
  %s1 = inlined_call_operand.vmem [shape: f32[256,128], index: 1, kind: input, shape index: {}]
  %s2 = inlined_call_operand.vmem [shape: f32[1,128], index: 2, kind: input, shape index: {}]
  %s3 = inlined_call_operand.vmem [shape: f32[32,128], index: 3, kind: input, shape index: {}]
  %s4 = inlined_call_operand.vmem [shape: f32[32,128], index: 4, kind: output, shape index: {}]
  %s5 = sld [smem:[#allocation0]]
  $region26: #{encoder_decoder_forward.87} parent=0
    _
  %s7 = ssub.s32 1, %s5
  %s8 = scalar_select 0, %s7, %s5
  // Predicated region
  $region2: #{encoder_decoder_forward.87} parent=0 // pred_check
    _
  $region3: #{encoder_decoder_forward.87} parent=0 // pred_check_branch
    %10 = sbr.rel (0) target = $region5
  $region4: #{encoder_decoder_forward.87} parent=0 // pred_region
    _
  $region5: #{encoder_decoder_forward.87} parent=0 // pred_fallthru
    _
  // Predicated region
  $region6: #{encoder_decoder_forward.87} parent=0 // pred_check
    _
  $region7: #{encoder_decoder_forward.87} parent=0 // pred_check_branch
    %12 = sbr.rel (0) target = $region9
  $region8: #{encoder_decoder_forward.87} parent=0 // pred_region
    _
  $region9: #{encoder_decoder_forward.87} parent=0 // pred_fallthru
    _
  // Predicated region
  $region10: #{encoder_decoder_forward.87} parent=0 // pred_check
    _
  $region11: #{encoder_decoder_forward.87} parent=0 // pred_check_branch
    %14 = sbr.rel (0) target = $region13
  $region12: #{encoder_decoder_forward.87} parent=0 // pred_region
    _
  $region13: #{encoder_decoder_forward.87} parent=0 // pred_fallthru
    _
  // Predicated region
  $region14: #{encoder_decoder_forward.87} parent=0 // pred_check
    _
  $region15: #{encoder_decoder_forward.87} parent=0 // pred_check_branch
    %16 = sbr.rel (0) target = $region17
  $region16: #{encoder_decoder_forward.87} parent=0 // pred_region
    _
  $region17: #{encoder_decoder_forward.87} parent=0 // pred_fallthru
    _
  %v17 = vld [vmem:[%s0] sm:$0xff]
  %v18 = vld [vmem:[%s0 + $0x8] sm:$0xff]
  %v19 = vld [vmem:[%s0 + $0x10] sm:$0xff]
  %v20 = vld [vmem:[%s0 + $0x18] sm:$0xff]
  %v21 = vld [vmem:[%s0 + $0x20] sm:$0xff]
  %v22 = vld [vmem:[%s0 + $0x28] sm:$0xff]
  %v23 = vld [vmem:[%s0 + $0x30] sm:$0xff]
  %v24 = vld [vmem:[%s0 + $0x38] sm:$0xff]
  %v25 = vld [vmem:[%s1] sm:$0xff]
  %v26 = vld [vmem:[%s1 + $0x8] sm:$0xff]
  %v27 = vld [vmem:[%s1 + $0x10] sm:$0xff]
  %v28 = vld [vmem:[%s1 + $0x18] sm:$0xff]
  %v29 = vld [vmem:[%s1 + $0x20] sm:$0xff]
  %v30 = vld [vmem:[%s1 + $0x28] sm:$0xff]
  %v31 = vld [vmem:[%s1 + $0x30] sm:$0xff]
  %v32 = vld [vmem:[%s1 + $0x38] sm:$0xff]
  %v33 = vld [vmem:[%s1 + $0x40] sm:$0xff]
  %v34 = vld [vmem:[%s1 + $0x48] sm:$0xff]
  %v35 = vld [vmem:[%s1 + $0x50] sm:$0xff]
  %v36 = vld [vmem:[%s1 + $0x58] sm:$0xff]
  %v37 = vld [vmem:[%s1 + $0x60] sm:$0xff]
  %v38 = vld [vmem:[%s1 + $0x68] sm:$0xff]
  %v39 = vld [vmem:[%s1 + $0x70] sm:$0xff]
  %v40 = vld [vmem:[%s1 + $0x78] sm:$0xff]
  %v41 = vld [vmem:[%s1 + $0x80] sm:$0xff]
  %v42 = vld [vmem:[%s1 + $0x88] sm:$0xff]
  %v43 = vld [vmem:[%s1 + $0x90] sm:$0xff]
  %v44 = vld [vmem:[%s1 + $0x98] sm:$0xff]
  %v45 = vld [vmem:[%s1 + $0xa0] sm:$0xff]
  %v46 = vld [vmem:[%s1 + $0xa8] sm:$0xff]
  %v47 = vld [vmem:[%s1 + $0xb0] sm:$0xff]
  %v48 = vld [vmem:[%s1 + $0xb8] sm:$0xff]
  %v49 = vld [vmem:[%s1 + $0xc0] sm:$0xff]
  %v50 = vld [vmem:[%s1 + $0xc8] sm:$0xff]
  %v51 = vld [vmem:[%s1 + $0xd0] sm:$0xff]
  %v52 = vld [vmem:[%s1 + $0xd8] sm:$0xff]
  %v53 = vld [vmem:[%s1 + $0xe0] sm:$0xff]
  %v54 = vld [vmem:[%s1 + $0xe8] sm:$0xff]
  %v55 = vld [vmem:[%s1 + $0xf0] sm:$0xff]
  %v56 = vld [vmem:[%s1 + $0xf8] sm:$0xff]
  %v57 = vld [vmem:[%s2] sm:$0x1]
  %v59 = vlaneseq
  %v60 = vshrl.u32 %v59, 7
  %v61 = vsub.s32 0, %v60
  %v62 = vrot.slane %v57, %v61
  %64 = vmatprep.subr.mxu0 0.0
  %65 = vmatpush1.msra.mxu0 %v25
  %66 = vmatprep.subr.mxu0 0.0
  %67 = vmatpush1.msra.mxu0 %v26
  %68 = vmatprep.subr.mxu0 0.0
  %69 = vmatpush1.msra.mxu0 %v27
  %70 = vmatprep.subr.mxu0 0.0
  %71 = vmatpush1.msra.mxu0 %v28
  %72 = vmatprep.subr.mxu0 0.0
  %73 = vmatpush1.msra.mxu0 %v29
  %74 = vmatprep.subr.mxu0 0.0
  %75 = vmatpush1.msra.mxu0 %v30
  %76 = vmatprep.subr.mxu0 0.0
  %77 = vmatpush1.msra.mxu0 %v31
  %78 = vmatprep.subr.mxu0 0.0
  %79 = vmatpush1.msra.mxu0 %v32
  %80 = vmatprep.subr.mxu0 0.0
  %81 = vmatpush1.msra.mxu0 %v33
  %82 = vmatprep.subr.mxu0 0.0
  %83 = vmatpush1.msra.mxu0 %v34
  %84 = vmatprep.subr.mxu0 0.0
  %85 = vmatpush1.msra.mxu0 %v35
  %86 = vmatprep.subr.mxu0 0.0
  %87 = vmatpush1.msra.mxu0 %v36
  %88 = vmatprep.subr.mxu0 0.0
  %89 = vmatpush1.msra.mxu0 %v37
  %90 = vmatprep.subr.mxu0 0.0
  %91 = vmatpush1.msra.mxu0 %v38
  %92 = vmatprep.subr.mxu0 0.0
  %93 = vmatpush1.msra.mxu0 %v39
  %94 = vmatprep.subr.mxu0 0.0
  %95 = vmatpush1.msra.mxu0 %v40
  %96 = vmatprep.subr.mxu0 0.0
  %97 = vmatpush1.msra.mxu0 %v41
  %98 = vmatprep.subr.mxu0 0.0
  %99 = vmatpush1.msra.mxu0 %v42
  %100 = vmatprep.subr.mxu0 0.0
  %101 = vmatpush1.msra.mxu0 %v43
  %102 = vmatprep.subr.mxu0 0.0
  %103 = vmatpush1.msra.mxu0 %v44
  %104 = vmatprep.subr.mxu0 0.0
  %105 = vmatpush1.msra.mxu0 %v45
  %106 = vmatprep.subr.mxu0 0.0
  %107 = vmatpush1.msra.mxu0 %v46
  %108 = vmatprep.subr.mxu0 0.0
  %109 = vmatpush1.msra.mxu0 %v47
  %110 = vmatprep.subr.mxu0 0.0
  %111 = vmatpush1.msra.mxu0 %v48
  %112 = vmatprep.subr.mxu0 0.0
  %113 = vmatpush1.msra.mxu0 %v49
  %114 = vmatprep.subr.mxu0 0.0
  %115 = vmatpush1.msra.mxu0 %v50
  %116 = vmatprep.subr.mxu0 0.0
  %117 = vmatpush1.msra.mxu0 %v51
  %118 = vmatprep.subr.mxu0 0.0
  %119 = vmatpush1.msra.mxu0 %v52
  %120 = vmatprep.subr.mxu0 0.0
  %121 = vmatpush1.msra.mxu0 %v53
  %122 = vmatprep.subr.mxu0 0.0
  %123 = vmatpush1.msra.mxu0 %v54
  %124 = vmatprep.subr.mxu0 0.0
  %125 = vmatpush1.msra.mxu0 %v55
  %126 = vmatprep.subr.mxu0 0.0
  %127 = vmatpush1.msra.mxu0 %v56
  %128 = vmatprep.mubr.f32.mxu0 %v18
  %129 = vmatmul.mubr.f32.gmra.mrb[0].mxu0 %v17
  %v130 = vpop.f32.mrb[0].mxu0
  %v131 = vadd.f32 %v62, %v130
  %v132 = vpop.f32.mrb[0].mxu0
  %133 = vmatprep.mubr.f32.mxu0 %v20
  %134 = vmatmul.mubr.f32.gmra.mrb[0].mxu0 %v19
  %v135 = vpop.f32.mrb[0].mxu0
  %v136 = vadd.f32 %v62, %v135
  %v137 = vpop.f32.mrb[0].mxu0
  %138 = vmatprep.mubr.f32.mxu0 %v22
  %139 = vmatmul.mubr.f32.gmra.mrb[0].mxu0 %v21
  %v140 = vpop.f32.mrb[0].mxu0
  %v141 = vadd.f32 %v62, %v140
  %v142 = vpop.f32.mrb[0].mxu0
  %143 = vmatprep.mubr.f32.mxu0 %v24
  %144 = vmatmul.mubr.f32.gmra.mrb[0].mxu0 %v23
  %v145 = vpop.f32.mrb[0].mxu0
  %v146 = vadd.f32 %v62, %v145
  %v147 = vpop.f32.mrb[0].mxu0
  %148 = vdwg.mxu0
  %v149 = vld [vmem:[%s3] sm:$0xff]
  %v150 = vld [vmem:[%s3 + $0x8] sm:$0xff]
  %v151 = vld [vmem:[%s3 + $0x10] sm:$0xff]
  %v152 = vld [vmem:[%s3 + $0x18] sm:$0xff]
  %v153 = vadd.f32 %v131, %v149
  %v154 = vadd.f32 %v136, %v150
  %v155 = vadd.f32 %v141, %v151
  %v156 = vadd.f32 %v146, %v152
  %157 = vst [vmem:[%s4] sm:$0xff] %v153
  %158 = vst [vmem:[%s4 + $0x8] sm:$0xff] %v154
  %159 = vst [vmem:[%s4 + $0x10] sm:$0xff] %v155
  %160 = vst [vmem:[%s4 + $0x18] sm:$0xff] %v156
  // Predicated region
  $region18: #{encoder_decoder_forward.87} parent=0 // pred_check
    _
  $region19: #{encoder_decoder_forward.87} parent=0 // pred_check_branch
    %162 = sbr.rel (0) target = $region21
  $region20: #{encoder_decoder_forward.87} parent=0 // pred_region
    _
  $region21: #{encoder_decoder_forward.87} parent=0 // pred_fallthru
    _
  // Predicated region
  $region22: #{encoder_decoder_forward.87} parent=0 // pred_check
    _
  $region23: #{encoder_decoder_forward.87} parent=0 // pred_check_branch
    %164 = sbr.rel (0) target = $region25
  $region24: #{encoder_decoder_forward.87} parent=0 // pred_region
    _
  $region25: #{encoder_decoder_forward.87} parent=0 // pred_fallthru
    _

// kernel: encoder_decoder_forward.103
$region0: #{encoder_decoder_forward.103}
  #allocation0 [shape = 'u32[]', space=smem, size = 0x4, offset = 0x4, fixed_abs, tag = 'smem constant byte address 0x4 - core index']
  #allocation1 [shape = 'u32[144,128]{1,0:T(1,128)}', space=vmem, size = 0x12000, scoped, tag = 'internal scratch']
  %s0 = inlined_call_operand.vmem [shape: f32[32,128], index: 0, kind: input, shape index: {}]
  %s1 = inlined_call_operand.vmem [shape: f32[1,128], index: 1, kind: input, shape index: {}]
  %s2 = inlined_call_operand.vmem [shape: f32[1,128], index: 2, kind: input, shape index: {}]
  %s3 = inlined_call_operand.hbm [shape: f32[32,128], index: 3, kind: output, shape index: {}]
  %s4 = sld [smem:[#allocation0]]
  $region22: #{encoder_decoder_forward.103} parent=0
    _
  %s6 = ssub.s32 1, %s4
  %s7 = scalar_select 0, %s6, %s4
  $region1: #{encoder_decoder_forward.103} parent=0
    #allocation2 [shape = 'u8[16384]{0}', space=vmem, size = 0x4000, scoped, tag = 'output window, operand 0, single buffered']
    #allocation3 [shape = 's32[1]{0}', space=sflag, size = 0x4, scoped, tag = 'scoped memory for encoder_decoder_forward.103']
    %8 = vsyncpa [#allocation3], 0
    // Predicated region
    $region2: #{encoder_decoder_forward.103} parent=1 // pred_check
      _
    $region3: #{encoder_decoder_forward.103} parent=1 // pred_check_branch
      %10 = sbr.rel (0) target = $region5
    $region4: #{encoder_decoder_forward.103} parent=1 // pred_region
      _
    $region5: #{encoder_decoder_forward.103} parent=1 // pred_fallthru
      _
    // Predicated region
    $region6: #{encoder_decoder_forward.103} parent=1 // pred_check
      _
    $region7: #{encoder_decoder_forward.103} parent=1 // pred_check_branch
      %12 = sbr.rel (0) target = $region9
    $region8: #{encoder_decoder_forward.103} parent=1 // pred_region
      _
    $region9: #{encoder_decoder_forward.103} parent=1 // pred_fallthru
      _
    // Predicated region
    $region10: #{encoder_decoder_forward.103} parent=1 // pred_check
      _
    $region11: #{encoder_decoder_forward.103} parent=1 // pred_check_branch
      %14 = sbr.rel (0) target = $region13
    $region12: #{encoder_decoder_forward.103} parent=1 // pred_region
      _
    $region13: #{encoder_decoder_forward.103} parent=1 // pred_fallthru
      _
    %v15 = vld [vmem:[%s0] sm:$0xff]
    %v16 = vld [vmem:[%s0 + $0x8] sm:$0xff]
    %v17 = vld [vmem:[%s0 + $0x10] sm:$0xff]
    %v18 = vld [vmem:[%s0 + $0x18] sm:$0xff]
    %19 = vadd.xlane.f32.xlu0 %v15
    %v20 = vpop.xlane.xlu0 %19
    %21 = vadd.xlane.f32.xlu0 %v16
    %v22 = vpop.xlane.xlu0 %21
    %23 = vadd.xlane.f32.xlu0 %v17
    %v24 = vpop.xlane.xlu0 %23
    %25 = vadd.xlane.f32.xlu0 %v18
    %v26 = vpop.xlane.xlu0 %25
    %v27 = vrcp.pop 128.0
    %v28 = vmul.f32 %v20, %v27
    %v29 = vmul.f32 %v22, %v27
    %v30 = vmul.f32 %v24, %v27
    %v31 = vmul.f32 %v26, %v27
    %v32 = vsub.f32 %v15, %v28
    %v33 = vsub.f32 %v16, %v29
    %v34 = vsub.f32 %v17, %v30
    %v35 = vsub.f32 %v18, %v31
    %v36 = vmul.f32 %v32, %v32
    %v37 = vmul.f32 %v33, %v33
    %v38 = vmul.f32 %v34, %v34
    %v39 = vmul.f32 %v35, %v35
    %40 = vadd.xlane.f32.xlu0 %v36
    %v41 = vpop.xlane.xlu0 %40
    %42 = vadd.xlane.f32.xlu0 %v37
    %v43 = vpop.xlane.xlu0 %42
    %44 = vadd.xlane.f32.xlu0 %v38
    %v45 = vpop.xlane.xlu0 %44
    %46 = vadd.xlane.f32.xlu0 %v39
    %v47 = vpop.xlane.xlu0 %46
    %v48 = vmul.f32 %v41, %v27
    %v49 = vmul.f32 %v43, %v27
    %v50 = vmul.f32 %v45, %v27
    %v51 = vmul.f32 %v47, %v27
    %v52 = vadd.f32 %v48, 1e-06
    %v53 = vadd.f32 %v49, 1e-06
    %v54 = vadd.f32 %v50, 1e-06
    %v55 = vadd.f32 %v51, 1e-06
    %v56 = vrsqrt.pop %v52
    %v57 = vrsqrt.pop %v53
    %v58 = vrsqrt.pop %v54
    %v59 = vrsqrt.pop %v55
    %v60 = vmul.f32 %v32, %v56
    %v61 = vmul.f32 %v33, %v57
    %v62 = vmul.f32 %v34, %v58
    %v63 = vmul.f32 %v35, %v59
    %v64 = vld [vmem:[%s1] sm:$0x1]
    %v66 = vlaneseq
    %v67 = vshrl.u32 %v66, 7
    %v68 = vsub.s32 0, %v67
    %v69 = vrot.slane %v64, %v68
    %v71 = vmul.f32 %v60, %v69
    %v72 = vmul.f32 %v61, %v69
    %v73 = vmul.f32 %v62, %v69
    %v74 = vmul.f32 %v63, %v69
    %v75 = vld [vmem:[%s2] sm:$0x1]
    %v77 = vlaneseq
    %v78 = vshrl.u32 %v77, 7
    %v79 = vsub.s32 0, %v78
    %v80 = vrot.slane %v75, %v79
    %v82 = vadd.f32 %v71, %v80
    %v83 = vadd.f32 %v72, %v80
    %v84 = vadd.f32 %v73, %v80
    %v85 = vadd.f32 %v74, %v80
    %86 = vst [vmem:[#allocation2] sm:$0xff] %v82
    %87 = vst [vmem:[#allocation2 + $0x8] sm:$0xff] %v83
    %88 = vst [vmem:[#allocation2 + $0x10] sm:$0xff] %v84
    %89 = vst [vmem:[#allocation2 + $0x18] sm:$0xff] %v85
    // Predicated region
    $region14: #{encoder_decoder_forward.103} parent=1 // pred_check
      _
    $region15: #{encoder_decoder_forward.103} parent=1 // pred_check_branch
      %91 = sbr.rel (0) target = $region17
    $region16: #{encoder_decoder_forward.103} parent=1 // pred_region
      %s93 = ssub.s32 512, 512
      %94 = vsyncadd [#allocation3], %s93
      %s95 = sshll.u32 [#allocation2], 4
      %s96 = int_to_ptr.vmem [resolvable:$true] %s95
      %101 = dma.vmem_to_hbm [thread:$0]  %s96, 512, %s3, [#allocation3], 128, 128, 8
    $region17: #{encoder_decoder_forward.103} parent=1 // pred_fallthru
      _
    // Predicated region
    $region18: #{encoder_decoder_forward.103} parent=1 // pred_check
      _
    $region19: #{encoder_decoder_forward.103} parent=1 // pred_check_branch
      %103 = sbr.rel (0) target = $region21
    $region20: #{encoder_decoder_forward.103} parent=1 // pred_region
      %104 = dma.done [#allocation3], 512
    $region21: #{encoder_decoder_forward.103} parent=1 // pred_fallthru
      _
    %105 = vsyncpa [#allocation3], 1

</llo_original>
